<compile_context>
chip_gen: v5e
topology: v5e:2x2
jax: 0.10.0
libtpu: 0.0.40
codegen_flags: <defaults>
</compile_context>

<pallas_src>
import functools
import math

import jax
import jax.numpy as jnp
from jax import lax
from jax.experimental import pallas as pl
from jax.experimental.pallas import tpu as pltpu

EPS = 1e-5
_LANE = 128
_MAX_TM = 512
_MAX_TK = 512
_MAX_TN = 512


# ---------------------------------------------------------------------------
# Tiling helpers
# ---------------------------------------------------------------------------
def _round_up(x, m):
    return ((x + m - 1) // m) * m


def _choose_m_tile(m):
    """Row tile.  Prefer no activation padding: full extent, else a divisor."""
    if m <= _MAX_TM:
        return m, m
    for t in range(_MAX_TM, 7, -8):
        if m % t == 0:
            return t, m
    mp = _round_up(m, 256)
    return 256, mp


def _choose_n_tile(n):
    """Output-channel tile: lane-dense (>=128, multiple of 128)."""
    np_ = max(_round_up(n, _LANE), _LANE)
    tn = min(np_, _MAX_TN)
    while np_ % tn:
        tn -= _LANE
    return tn, np_


def _choose_k_tile(k):
    if k <= _MAX_TK:
        return k, k
    kp = _round_up(k, _LANE)
    for t in range(_MAX_TK, _LANE - 1, -_LANE):
        if kp % t == 0:
            return t, kp
    return _LANE, kp


def _pad2d(a, rows, cols):
    r, c = a.shape
    if r == rows and c == cols:
        return a
    return jnp.pad(a, ((0, rows - r), (0, cols - c)))


def _vmem_limit(block_bytes):
    return int(min(max(2 * block_bytes, 32 * 1024 * 1024), 64 * 1024 * 1024))


# ---------------------------------------------------------------------------
# Generic fused GEMM kernel:
#   out = [relu]( sum_s X_s @ W_s + bias [+ residual] )
# with the reduction grid axis partitioned across the segments (split-K).
# ---------------------------------------------------------------------------
def _make_gemm_kernel(seg_bounds, relu, has_res, want_pre):
    n_seg = len(seg_bounds)

    def kernel(*refs):
        xs = [refs[2 * s] for s in range(n_seg)]
        ws = [refs[2 * s + 1] for s in range(n_seg)]
        pos = 2 * n_seg
        b_ref = refs[pos]
        pos += 1
        if has_res:
            r_ref = refs[pos]
            pos += 1
        else:
            r_ref = None
        o_ref = refs[pos]
        pos += 1
        pre_ref = refs[pos] if want_pre else None
        acc_ref = refs[-1]

        k = pl.program_id(2)

        @pl.when(k == 0)
        def _init():
            # Bias folded into the accumulator init (saves an epilogue add).
            acc_ref[...] = jnp.broadcast_to(b_ref[...], acc_ref.shape)

        for s, (start, steps) in enumerate(seg_bounds):
            if n_seg == 1:
                acc_ref[...] += jnp.dot(xs[s][...], ws[s][...],
                                        preferred_element_type=jnp.float32)
            else:
                @pl.when(jnp.logical_and(k >= start, k < start + steps))
                def _acc(s=s):
                    acc_ref[...] += jnp.dot(xs[s][...], ws[s][...],
                                            preferred_element_type=jnp.float32)

        @pl.when(k == pl.num_programs(2) - 1)
        def _epilogue():
            y = acc_ref[...]
            if has_res:
                y = y + r_ref[...].astype(jnp.float32)
            if want_pre:
                pre_ref[...] = y.astype(pre_ref.dtype)
            z = jnp.maximum(y, 0.0) if relu else y
            o_ref[...] = z.astype(o_ref.dtype)

    return kernel


def fused_matmul_bias(segments, bias, *, relu, residual=None, want_pre=False,
                      out_dtype=jnp.bfloat16):
    """act(sum_s x_s @ w_s + bias [+ residual]) as one tiled Pallas GEMM.

    segments: list of (x2d (M, K_s), w (K_s, N)) pairs sharing M and N.  The
    reduction grid axis is split across the segments, so no activation
    concatenation / extra HBM round trip is needed for fused shortcuts.
    """
    M = segments[0][0].shape[0]
    N = segments[0][1].shape[1]

    TM, Mp = _choose_m_tile(M)
    TN, Np = _choose_n_tile(N)
    # v7x megacore occupancy: expose >= 2 parallel tiles when possible.
    if (Mp // TM) * (Np // TN) == 1 and TM % 16 == 0:
        TM //= 2

    in_specs, args, seg_bounds = [], [], []
    vmem = 0
    k_start = 0
    for x2d, w in segments:
        K = x2d.shape[1]
        TK, Kp = _choose_k_tile(K)
        steps = Kp // TK
        seg_bounds.append((k_start, steps))
        args.append(_pad2d(x2d.astype(jnp.bfloat16), Mp, Kp))
        args.append(_pad2d(w.astype(jnp.bfloat16), Kp, Np))
        in_specs.append(pl.BlockSpec(
            (TM, TK),
            lambda i, j, k, s0=k_start, ns=steps: (i, jnp.clip(k - s0, 0, ns - 1))))
        in_specs.append(pl.BlockSpec(
            (TK, TN),
            lambda i, j, k, s0=k_start, ns=steps: (jnp.clip(k - s0, 0, ns - 1), j)))
        vmem += 2 * (TM * TK + TK * TN) * 2
        k_start += steps
    k_total = k_start

    args.append(_pad2d(bias.astype(jnp.float32).reshape(1, -1), 1, Np))
    in_specs.append(pl.BlockSpec((1, TN), lambda i, j, k: (0, j)))
    vmem += 2 * TN * 4

    has_res = residual is not None
    if has_res:
        args.append(_pad2d(residual.astype(jnp.bfloat16), Mp, Np))
        in_specs.append(pl.BlockSpec((TM, TN), lambda i, j, k: (i, j)))
        vmem += 2 * TM * TN * 2

    out_spec = pl.BlockSpec((TM, TN), lambda i, j, k: (i, j))
    if want_pre:
        out_shape = (jax.ShapeDtypeStruct((Mp, Np), out_dtype),
                     jax.ShapeDtypeStruct((Mp, Np), jnp.float32))
        out_specs = (out_spec, out_spec)
        vmem += 2 * TM * TN * (2 + 4)
    else:
        out_shape = jax.ShapeDtypeStruct((Mp, Np), out_dtype)
        out_specs = out_spec
        vmem += 2 * TM * TN * 2
    vmem += TM * TN * 4  # f32 accumulator scratch

    result = pl.pallas_call(
        _make_gemm_kernel(tuple(seg_bounds), relu, has_res, want_pre),
        grid=(Mp // TM, Np // TN, k_total),
        in_specs=in_specs,
        out_specs=out_specs,
        out_shape=out_shape,
        scratch_shapes=[pltpu.VMEM((TM, TN), jnp.float32)],
        compiler_params=pltpu.CompilerParams(
            dimension_semantics=("parallel", "parallel", "arbitrary"),
            vmem_limit_bytes=_vmem_limit(vmem)),
    )(*args)

    if want_pre:
        o, pre = result
        return o[:M, :N], pre[:M, :N]
    return result[:M, :N]


# ---------------------------------------------------------------------------
# Fused 3x3 conv (stride 1, pad 1) + folded BN + ReLU.
# The padded image is flattened to (Hp*Wp, Cin): every tap (ky, kx) is then a
# contiguous row-shifted 2-D slab x_flat[ky*Wp+kx : ky*Wp+kx+L], so the kernel
# is 9 plain GEMMs per image — no im2col, no in-kernel reshapes.
# ---------------------------------------------------------------------------
def _make_conv3x3_kernel(Wp, L):
    def kernel(x_ref, w_ref, b_ref, o_ref, acc_ref):
        acc_ref[...] = jnp.broadcast_to(b_ref[...], acc_ref.shape)
        for ky in range(3):
            for kx in range(3):
                off = ky * Wp + kx
                acc_ref[...] += jnp.dot(x_ref[off:off + L, :],
                                        w_ref[3 * ky + kx],
                                        preferred_element_type=jnp.float32)
        o_ref[...] = jnp.maximum(acc_ref[...], 0.0).astype(o_ref.dtype)

    return kernel


def conv3x3_bn_relu_s1(h_nhwc, w9, bias):
    """h: (N, H, W, Cin) bf16; w9: (9, Cin, Cout) folded; bias: (Cout,).

    Returns (N, H, W, Cout) bf16.  Reads h from HBM exactly once.
    """
    N, H, W, Cin = h_nhwc.shape
    Cout = w9.shape[-1]
    Ho, Wo = H, W
    Hp, Wp = H + 3, W + 2          # one extra bottom pad row keeps taps in bounds
    L = Ho * Wp                    # output rows per image in padded-flat coords

    TN, Np = _choose_n_tile(Cout)

    xp = jnp.pad(h_nhwc, ((0, 0), (1, 2), (1, 1), (0, 0))).reshape(N, Hp * Wp, Cin)
    wb = w9.astype(jnp.bfloat16)
    if Np != Cout:
        wb = jnp.pad(wb, ((0, 0), (0, 0), (0, Np - Cout)))
    bb = _pad2d(bias.astype(jnp.float32).reshape(1, -1), 1, Np)

    vmem = (2 * Hp * Wp * Cin * 2 + 2 * 9 * Cin * TN * 2 + 2 * TN * 4
            + 2 * L * TN * 2 + L * TN * 4)

    out = pl.pallas_call(
        _make_conv3x3_kernel(Wp, L),
        grid=(N, Np // TN),
        in_specs=[
            pl.BlockSpec((None, Hp * Wp, Cin), lambda n, j: (n, 0, 0)),
            pl.BlockSpec((9, Cin, TN), lambda n, j: (0, 0, j)),
            pl.BlockSpec((1, TN), lambda n, j: (0, j)),
        ],
        out_specs=pl.BlockSpec((None, L, TN), lambda n, j: (n, 0, j)),
        out_shape=jax.ShapeDtypeStruct((N, L, Np), jnp.bfloat16),
        scratch_shapes=[pltpu.VMEM((L, TN), jnp.float32)],
        compiler_params=pltpu.CompilerParams(
            dimension_semantics=("parallel", "parallel"),
            vmem_limit_bytes=_vmem_limit(vmem)),
    )(xp, wb, bb)

    # Drop the junk columns created by the horizontal padding positions.
    return out.reshape(N, Ho, Wp, Np)[:, :, :Wo, :Cout]


# ---------------------------------------------------------------------------
# Parameter setup (deterministic, synthetic) + one-time BN folding
# ---------------------------------------------------------------------------
def fold_bn(gamma, beta, mean, var):
    scale = gamma / jnp.sqrt(var + EPS)
    return scale, beta - mean * scale


def init_bottleneck_params(key, in_planes, planes, stride, expansion=4):
    ks = jax.random.split(key, 8)

    def conv_w(k, o, i, kh, kw):
        fan_in = i * kh * kw
        return jax.random.normal(k, (o, i, kh, kw), jnp.float32) / math.sqrt(fan_in)

    def bn_p(k, c):
        k1, k2, k3, k4 = jax.random.split(k, 4)
        gamma = 1.0 + 0.1 * jax.random.normal(k1, (c,), jnp.float32)
        beta = 0.1 * jax.random.normal(k2, (c,), jnp.float32)
        mean = 0.1 * jax.random.normal(k3, (c,), jnp.float32)
        var = jnp.abs(jax.random.normal(k4, (c,), jnp.float32)) + 0.5
        return gamma, beta, mean, var

    p = {
        "w1": conv_w(ks[0], planes, in_planes, 1, 1),
        "bn1": bn_p(ks[1], planes),
        "w2": conv_w(ks[2], planes, planes, 3, 3),
        "bn2": bn_p(ks[3], planes),
        "w3": conv_w(ks[4], expansion * planes, planes, 1, 1),
        "bn3": bn_p(ks[5], expansion * planes),
    }
    if stride != 1 or in_planes != expansion * planes:
        p["ws"] = conv_w(ks[6], expansion * planes, in_planes, 1, 1)
        p["bns"] = bn_p(ks[7], expansion * planes)
    return p


def prepare_bottleneck(params, stride):
    """Fold BN (eval mode) into conv weights, transpose/cast once (inference)."""
    prep = {}
    s1, b1 = fold_bn(*params["bn1"])
    prep["w1"] = (jnp.transpose(params["w1"][:, :, 0, 0], (1, 0))
                  * s1[None, :]).astype(jnp.bfloat16)
    prep["b1"] = b1

    s2, b2 = fold_bn(*params["bn2"])
    w2 = jnp.transpose(params["w2"], (2, 3, 1, 0)) * s2      # (kh, kw, Cin, Cout)
    P = w2.shape[-1]
    if stride == 1:
        prep["w2"] = w2.reshape(9, P, P).astype(jnp.bfloat16)       # fused taps
    else:
        prep["w2"] = w2.reshape(9 * P, P).astype(jnp.bfloat16)      # im2col layout
    prep["b2"] = b2

    s3, b3 = fold_bn(*params["bn3"])
    prep["w3"] = (jnp.transpose(params["w3"][:, :, 0, 0], (1, 0))
                  * s3[None, :]).astype(jnp.bfloat16)
    prep["b3"] = b3

    if "ws" in params:
        ss, bs = fold_bn(*params["bns"])
        prep["ws"] = (jnp.transpose(params["ws"][:, :, 0, 0], (1, 0))
                      * ss[None, :]).astype(jnp.bfloat16)
        prep["b3s"] = b3 + bs
    return prep


# ---------------------------------------------------------------------------
# Bottleneck forward (Pallas path)
# ---------------------------------------------------------------------------
@functools.partial(jax.jit, static_argnames=("stride", "is_last"))
def bottleneck_forward(x_nchw, prep, *, stride=1, is_last=False):
    # TODO(synk): keep activations NHWC bf16 end-to-end across blocks; here we
    # convert only at the module boundary to preserve the PyTorch NCHW interface.
    x = jnp.transpose(x_nchw, (0, 2, 3, 1)).astype(jnp.bfloat16)   # NCHW -> NHWC
    N, H, W, Cin = x.shape
    P = prep["w1"].shape[1]
    Cout = prep["w3"].shape[1]
    Ho = (H - 1) // stride + 1
    Wo = (W - 1) // stride + 1

    # conv1 (1x1) + bn1 + relu
    h1 = fused_matmul_bias([(x.reshape(-1, Cin), prep["w1"])], prep["b1"],
                           relu=True).reshape(N, H, W, P)

    # conv2 (3x3, pad=1, stride) + bn2 + relu
    if stride == 1:
        h2 = conv3x3_bn_relu_s1(h1, prep["w2"], prep["b2"]).reshape(-1, P)
    else:
        # TODO(synk): strided 3x3 still goes through a (small) bf16 im2col.
        pad = jnp.pad(h1, ((0, 0), (1, 1), (1, 1), (0, 0)))
        cols = [pad[:, ky:ky + stride * (Ho - 1) + 1:stride,
                    kx:kx + stride * (Wo - 1) + 1:stride, :]
                for ky in range(3) for kx in range(3)]
        col = jnp.concatenate(cols, axis=-1).reshape(-1, 9 * P)
        h2 = fused_matmul_bias([(col, prep["w2"])], prep["b2"], relu=True)

    # conv3 (1x1) + bn3 + shortcut + relu — one Pallas GEMM (split-K fusion)
    if "ws" in prep:
        xs = x[:, ::stride, ::stride, :].reshape(-1, Cin)
        res = fused_matmul_bias([(h2, prep["w3"]), (xs, prep["ws"])],
                                prep["b3s"], relu=True, want_pre=is_last)
    else:
        assert stride == 1 and Cin == Cout
        res = fused_matmul_bias([(h2, prep["w3"])], prep["b3"], relu=True,
                                residual=x.reshape(-1, Cout), want_pre=is_last)

    def to_nchw(a2d):
        return jnp.transpose(a2d.reshape(N, Ho, Wo, Cout),
                             (0, 3, 1, 2)).astype(jnp.float32)

    if is_last:
        out2d, pre2d = res
        return to_nchw(out2d), to_nchw(pre2d)
    return to_nchw(res)


# ---------------------------------------------------------------------------
# Plain-JAX f32 reference for verification
# ---------------------------------------------------------------------------
def reference_forward(x, p, *, stride, is_last):
    def conv(x, w, s, pad):
        return lax.conv_general_dilated(
            x, w, (s, s), [(pad, pad), (pad, pad)],
            dimension_numbers=("NCHW", "OIHW", "NCHW"))

    def bn(x, prm):
        g, b, m, v = (t[None, :, None, None] for t in prm)
        return (x - m) / jnp.sqrt(v + EPS) * g + b

    out = jax.nn.relu(bn(conv(x, p["w1"], 1, 0), p["bn1"]))
    out = jax.nn.relu(bn(conv(out, p["w2"], stride, 1), p["bn2"]))
    out = bn(conv(out, p["w3"], 1, 0), p["bn3"])
    sc = bn(conv(x, p["ws"], stride, 0), p["bns"]) if "ws" in p else x
    pre = out + sc
    o = jax.nn.relu(pre)
    return (o, pre) if is_last else o


def _close(a, b):
    a = jnp.asarray(a, jnp.float32)
    b = jnp.asarray(b, jnp.float32)
    rel = jnp.linalg.norm(a - b) / (jnp.linalg.norm(b) + 1e-12)
    return bool(rel < 2.5e-2) and bool(jnp.max(jnp.abs(a - b)) < 0.25)


if __name__ == "__main__":
    key = jax.random.PRNGKey(0)
    batch, spatial = 2, 8

    # (in_planes, planes, stride, is_last): downsample / identity / strided paths
    configs = [(16, 8, 1, True), (32, 8, 1, False), (16, 8, 2, True)]
    for idx, (in_planes, planes, stride, is_last) in enumerate(configs):
        kxi, kpi = jax.random.split(jax.random.fold_in(key, idx))
        x = jax.random.normal(kxi, (batch, in_planes, spatial, spatial), jnp.float32)
        params = init_bottleneck_params(kpi, in_planes, planes, stride)
        prep = prepare_bottleneck(params, stride)

        res = bottleneck_forward(x, prep, stride=stride, is_last=is_last)
        res = jax.block_until_ready(res)
        ref = reference_forward(x, params, stride=stride, is_last=is_last)

        if is_last:
            out, pre = res
            ref_out, ref_pre = ref
            ok = _close(out, ref_out) and _close(pre, ref_pre)
        else:
            out, ref_out = res, ref
            ok = _close(out, ref_out)

        so = (spatial - 1) // stride + 1
        assert out.shape == (batch, 4 * planes, so, so)
        if not ok:
            raise AssertionError(f"Pallas Bottleneck mismatch for config {configs[idx]}")

    print("KERNEL_OK")
</pallas_src>

<mosaic_0001>
module attributes {stable_mosaic.version = 11 : i64} {
  func.func @kernel(%arg0: i32, %arg1: i32, %arg2: i32, %arg3: memref<64x16xbf16, #tpu.memory_space<vmem>>, %arg4: memref<16x128xbf16, #tpu.memory_space<vmem>>, %arg5: memref<1x128xf32, #tpu.memory_space<vmem>>, %arg6: memref<64x128xbf16, #tpu.memory_space<vmem>>, %arg7: memref<64x128xf32, #tpu.memory_space<vmem>>) attributes {dimension_semantics = [#tpu.dimension_semantics<parallel>, #tpu.dimension_semantics<parallel>, #tpu.dimension_semantics<arbitrary>], iteration_bounds = array<i64: 2, 1, 1>, scalar_prefetch = 0 : i64, scratch_operands = 1 : i64, tpu.core_type = #tpu.core_type<tc>, window_params = [{transform_indices = @transform_0, window_bounds = array<i64: 64, 16>}, {transform_indices = @transform_1, window_bounds = array<i64: 16, 128>}, {transform_indices = @transform_2, window_bounds = array<i64: 1, 128>}, {transform_indices = @transform_3, window_bounds = array<i64: 64, 128>}]} {
    %c0_i32 = arith.constant 0 : i32
    %0 = arith.cmpi eq, %arg2, %c0_i32 : i32
    %1 = arith.extui %0 : i1 to i32
    %c0_i32_0 = arith.constant 0 : i32
    %2 = arith.cmpi ne, %1, %c0_i32_0 : i32
    scf.if %2 {
      %c0_10 = arith.constant 0 : index
      %c0_11 = arith.constant 0 : index
      %12 = vector.load %arg5[%c0_10, %c0_11] : memref<1x128xf32, #tpu.memory_space<vmem>>, vector<1x128xf32>
      %13 = vector.shape_cast %12 : vector<1x128xf32> to vector<1x128xf32>
      %14 = vector.broadcast %13 : vector<1x128xf32> to vector<64x128xf32>
      %c0_12 = arith.constant 0 : index
      %c0_13 = arith.constant 0 : index
      %15 = vector.load %arg7[%c0_12, %c0_13] : memref<64x128xf32, #tpu.memory_space<vmem>>, vector<64x128xf32>
      tpu.vector_store %arg7[%c0_12, %c0_13], %14 {strides = array<i32>} : memref<64x128xf32, #tpu.memory_space<vmem>>, vector<64x128xf32>,
    } else {
    }
    %c0 = arith.constant 0 : index
    %c0_1 = arith.constant 0 : index
    %3 = vector.load %arg7[%c0, %c0_1] : memref<64x128xf32, #tpu.memory_space<vmem>>, vector<64x128xf32>
    %c0_2 = arith.constant 0 : index
    %c0_3 = arith.constant 0 : index
    %4 = vector.load %arg3[%c0_2, %c0_3] : memref<64x16xbf16, #tpu.memory_space<vmem>>, vector<64x16xbf16>
    %c0_4 = arith.constant 0 : index
    %c0_5 = arith.constant 0 : index
    %5 = vector.load %arg4[%c0_4, %c0_5] : memref<16x128xbf16, #tpu.memory_space<vmem>>, vector<16x128xbf16>
    %cst = arith.constant dense<0.000000e+00> : vector<64x128xf32>
    %6 = tpu.matmul %4, %5, %cst {dimension_numbers = #tpu.dot_dimension_numbers<[1], [0], [0], [1], [0, 0, 1, 1], [], []>} : vector<64x16xbf16>, vector<16x128xbf16>, vector<64x128xf32> -> vector<64x128xf32>
    %7 = arith.addf %3, %6 : vector<64x128xf32>
    %c0_6 = arith.constant 0 : index
    %c0_7 = arith.constant 0 : index
    %8 = vector.load %arg7[%c0_6, %c0_7] : memref<64x128xf32, #tpu.memory_space<vmem>>, vector<64x128xf32>
    tpu.vector_store %arg7[%c0_6, %c0_7], %7 {strides = array<i32>} : memref<64x128xf32, #tpu.memory_space<vmem>>, vector<64x128xf32>,
    %c0_i32_8 = arith.constant 0 : i32
    %9 = arith.cmpi eq, %arg2, %c0_i32_8 : i32
    %10 = arith.extui %9 : i1 to i32
    %c0_i32_9 = arith.constant 0 : i32
    %11 = arith.cmpi ne, %10, %c0_i32_9 : i32
    scf.if %11 {
      %c0_10 = arith.constant 0 : index
      %c0_11 = arith.constant 0 : index
      %12 = vector.load %arg7[%c0_10, %c0_11] : memref<64x128xf32, #tpu.memory_space<vmem>>, vector<64x128xf32>
      %cst_12 = arith.constant 0.000000e+00 : f32
      %13 = vector.broadcast %cst_12 : f32 to vector<64x128xf32>
      %14 = arith.maximumf %12, %13 : vector<64x128xf32>
      %15 = arith.truncf %14 : vector<64x128xf32> to vector<64x128xbf16>
      %c0_13 = arith.constant 0 : index
      %c0_14 = arith.constant 0 : index
      %16 = vector.load %arg6[%c0_13, %c0_14] : memref<64x128xbf16, #tpu.memory_space<vmem>>, vector<64x128xbf16>
      tpu.vector_store %arg6[%c0_13, %c0_14], %15 {strides = array<i32>} : memref<64x128xbf16, #tpu.memory_space<vmem>>, vector<64x128xbf16>,
    } else {
    }
    return
  }
  func.func @transform_0(%arg0: i32, %arg1: i32, %arg2: i32) -> (i32, i32) {
    %c0_i32 = arith.constant 0 : i32
    %0 = arith.subi %arg2, %c0_i32 : i32
    %c0_i32_0 = arith.constant 0 : i32
    %c0_i32_1 = arith.constant 0 : i32
    %1 = arith.maxsi %c0_i32_0, %0 : i32
    %2 = arith.minsi %c0_i32_1, %1 : i32
    %c0_i32_2 = arith.constant 0 : i32
    return %arg0, %2 : i32, i32
  }
  func.func @transform_1(%arg0: i32, %arg1: i32, %arg2: i32) -> (i32, i32) {
    %c0_i32 = arith.constant 0 : i32
    %0 = arith.subi %arg2, %c0_i32 : i32
    %c0_i32_0 = arith.constant 0 : i32
    %c0_i32_1 = arith.constant 0 : i32
    %1 = arith.maxsi %c0_i32_0, %0 : i32
    %2 = arith.minsi %c0_i32_1, %1 : i32
    %c0_i32_2 = arith.constant 0 : i32
    return %2, %arg1 : i32, i32
  }
  func.func @transform_2(%arg0: i32, %arg1: i32, %arg2: i32) -> (i32, i32) {
    %c0_i32 = arith.constant 0 : i32
    %c0_i32_0 = arith.constant 0 : i32
    return %c0_i32, %arg1 : i32, i32
  }
  func.func @transform_3(%arg0: i32, %arg1: i32, %arg2: i32) -> (i32, i32) {
    %c0_i32 = arith.constant 0 : i32
    return %arg0, %arg1 : i32, i32
  }
}

module attributes {stable_mosaic.version = 11 : i64} {
  func.func @kernel(%arg0: i32, %arg1: i32, %arg2: memref<1x110x8xbf16, #tpu.memory_space<vmem>>, %arg3: memref<9x8x128xbf16, #tpu.memory_space<vmem>>, %arg4: memref<1x128xf32, #tpu.memory_space<vmem>>, %arg5: memref<1x80x128xbf16, #tpu.memory_space<vmem>>, %arg6: memref<80x128xf32, #tpu.memory_space<vmem>>) attributes {dimension_semantics = [#tpu.dimension_semantics<parallel>, #tpu.dimension_semantics<parallel>], iteration_bounds = array<i64: 2, 1>, scalar_prefetch = 0 : i64, scratch_operands = 1 : i64, tpu.core_type = #tpu.core_type<tc>, window_params = [{transform_indices = @transform_0, window_bounds = array<i64: 1, 110, 8>}, {transform_indices = @transform_1, window_bounds = array<i64: 9, 8, 128>}, {transform_indices = @transform_2, window_bounds = array<i64: 1, 128>}, {transform_indices = @transform_3, window_bounds = array<i64: 1, 80, 128>}]} {
    %c0 = arith.constant 0 : index
    %c0_0 = arith.constant 0 : index
    %0 = vector.load %arg4[%c0, %c0_0] : memref<1x128xf32, #tpu.memory_space<vmem>>, vector<1x128xf32>
    %1 = vector.shape_cast %0 : vector<1x128xf32> to vector<1x128xf32>
    %2 = vector.broadcast %1 : vector<1x128xf32> to vector<80x128xf32>
    %c0_1 = arith.constant 0 : index
    %c0_2 = arith.constant 0 : index
    %3 = vector.load %arg6[%c0_1, %c0_2] : memref<80x128xf32, #tpu.memory_space<vmem>>, vector<80x128xf32>
    tpu.vector_store %arg6[%c0_1, %c0_2], %2 {strides = array<i32>} : memref<80x128xf32, #tpu.memory_space<vmem>>, vector<80x128xf32>,
    %c0_3 = arith.constant 0 : index
    %c0_4 = arith.constant 0 : index
    %4 = vector.load %arg6[%c0_3, %c0_4] : memref<80x128xf32, #tpu.memory_space<vmem>>, vector<80x128xf32>
    %c0_5 = arith.constant 0 : index
    %c0_6 = arith.constant 0 : index
    %c0_7 = arith.constant 0 : index
    %5 = vector.load %arg2[%c0_5, %c0_6, %c0_7] : memref<1x110x8xbf16, #tpu.memory_space<vmem>>, vector<1x80x8xbf16>
    %6 = vector.shape_cast %5 : vector<1x80x8xbf16> to vector<80x8xbf16>
    %c0_8 = arith.constant 0 : index
    %c0_9 = arith.constant 0 : index
    %c0_10 = arith.constant 0 : index
    %7 = vector.load %arg3[%c0_8, %c0_9, %c0_10] : memref<9x8x128xbf16, #tpu.memory_space<vmem>>, vector<1x8x128xbf16>
    %8 = vector.shape_cast %7 : vector<1x8x128xbf16> to vector<8x128xbf16>
    %cst = arith.constant dense<0.000000e+00> : vector<80x128xf32>
    %9 = tpu.matmul %6, %8, %cst {dimension_numbers = #tpu.dot_dimension_numbers<[1], [0], [0], [1], [0, 0, 1, 1], [], []>} : vector<80x8xbf16>, vector<8x128xbf16>, vector<80x128xf32> -> vector<80x128xf32>
    %10 = arith.addf %4, %9 : vector<80x128xf32>
    %c0_11 = arith.constant 0 : index
    %c0_12 = arith.constant 0 : index
    %11 = vector.load %arg6[%c0_11, %c0_12] : memref<80x128xf32, #tpu.memory_space<vmem>>, vector<80x128xf32>
    tpu.vector_store %arg6[%c0_11, %c0_12], %10 {strides = array<i32>} : memref<80x128xf32, #tpu.memory_space<vmem>>, vector<80x128xf32>,
    %c0_13 = arith.constant 0 : index
    %c0_14 = arith.constant 0 : index
    %12 = vector.load %arg6[%c0_13, %c0_14] : memref<80x128xf32, #tpu.memory_space<vmem>>, vector<80x128xf32>
    %c0_15 = arith.constant 0 : index
    %c1 = arith.constant 1 : index
    %c0_16 = arith.constant 0 : index
    %13 = vector.load %arg2[%c0_15, %c1, %c0_16] : memref<1x110x8xbf16, #tpu.memory_space<vmem>>, vector<1x80x8xbf16>
    %14 = vector.shape_cast %13 : vector<1x80x8xbf16> to vector<80x8xbf16>
    %c1_17 = arith.constant 1 : index
    %c0_18 = arith.constant 0 : index
    %c0_19 = arith.constant 0 : index
    %15 = vector.load %arg3[%c1_17, %c0_18, %c0_19] : memref<9x8x128xbf16, #tpu.memory_space<vmem>>, vector<1x8x128xbf16>
    %16 = vector.shape_cast %15 : vector<1x8x128xbf16> to vector<8x128xbf16>
    %cst_20 = arith.constant dense<0.000000e+00> : vector<80x128xf32>
    %17 = tpu.matmul %14, %16, %cst_20 {dimension_numbers = #tpu.dot_dimension_numbers<[1], [0], [0], [1], [0, 0, 1, 1], [], []>} : vector<80x8xbf16>, vector<8x128xbf16>, vector<80x128xf32> -> vector<80x128xf32>
    %18 = arith.addf %12, %17 : vector<80x128xf32>
    %c0_21 = arith.constant 0 : index
    %c0_22 = arith.constant 0 : index
    %19 = vector.load %arg6[%c0_21, %c0_22] : memref<80x128xf32, #tpu.memory_space<vmem>>, vector<80x128xf32>
    tpu.vector_store %arg6[%c0_21, %c0_22], %18 {strides = array<i32>} : memref<80x128xf32, #tpu.memory_space<vmem>>, vector<80x128xf32>,
    %c0_23 = arith.constant 0 : index
    %c0_24 = arith.constant 0 : index
    %20 = vector.load %arg6[%c0_23, %c0_24] : memref<80x128xf32, #tpu.memory_space<vmem>>, vector<80x128xf32>
    %c0_25 = arith.constant 0 : index
    %c2 = arith.constant 2 : index
    %c0_26 = arith.constant 0 : index
    %21 = vector.load %arg2[%c0_25, %c2, %c0_26] : memref<1x110x8xbf16, #tpu.memory_space<vmem>>, vector<1x80x8xbf16>
    %22 = vector.shape_cast %21 : vector<1x80x8xbf16> to vector<80x8xbf16>
    %c2_27 = arith.constant 2 : index
    %c0_28 = arith.constant 0 : index
    %c0_29 = arith.constant 0 : index
    %23 = vector.load %arg3[%c2_27, %c0_28, %c0_29] : memref<9x8x128xbf16, #tpu.memory_space<vmem>>, vector<1x8x128xbf16>
    %24 = vector.shape_cast %23 : vector<1x8x128xbf16> to vector<8x128xbf16>
    %cst_30 = arith.constant dense<0.000000e+00> : vector<80x128xf32>
    %25 = tpu.matmul %22, %24, %cst_30 {dimension_numbers = #tpu.dot_dimension_numbers<[1], [0], [0], [1], [0, 0, 1, 1], [], []>} : vector<80x8xbf16>, vector<8x128xbf16>, vector<80x128xf32> -> vector<80x128xf32>
    %26 = arith.addf %20, %25 : vector<80x128xf32>
    %c0_31 = arith.constant 0 : index
    %c0_32 = arith.constant 0 : index
    %27 = vector.load %arg6[%c0_31, %c0_32] : memref<80x128xf32, #tpu.memory_space<vmem>>, vector<80x128xf32>
    tpu.vector_store %arg6[%c0_31, %c0_32], %26 {strides = array<i32>} : memref<80x128xf32, #tpu.memory_space<vmem>>, vector<80x128xf32>,
    %c0_33 = arith.constant 0 : index
    %c0_34 = arith.constant 0 : index
    %28 = vector.load %arg6[%c0_33, %c0_34] : memref<80x128xf32, #tpu.memory_space<vmem>>, vector<80x128xf32>
    %c0_35 = arith.constant 0 : index
    %c10 = arith.constant 10 : index
    %c0_36 = arith.constant 0 : index
    %29 = vector.load %arg2[%c0_35, %c10, %c0_36] : memref<1x110x8xbf16, #tpu.memory_space<vmem>>, vector<1x80x8xbf16>
    %30 = vector.shape_cast %29 : vector<1x80x8xbf16> to vector<80x8xbf16>
    %c3 = arith.constant 3 : index
    %c0_37 = arith.constant 0 : index
    %c0_38 = arith.constant 0 : index
    %31 = vector.load %arg3[%c3, %c0_37, %c0_38] : memref<9x8x128xbf16, #tpu.memory_space<vmem>>, vector<1x8x128xbf16>
    %32 = vector.shape_cast %31 : vector<1x8x128xbf16> to vector<8x128xbf16>
    %cst_39 = arith.constant dense<0.000000e+00> : vector<80x128xf32>
    %33 = tpu.matmul %30, %32, %cst_39 {dimension_numbers = #tpu.dot_dimension_numbers<[1], [0], [0], [1], [0, 0, 1, 1], [], []>} : vector<80x8xbf16>, vector<8x128xbf16>, vector<80x128xf32> -> vector<80x128xf32>
    %34 = arith.addf %28, %33 : vector<80x128xf32>
    %c0_40 = arith.constant 0 : index
    %c0_41 = arith.constant 0 : index
    %35 = vector.load %arg6[%c0_40, %c0_41] : memref<80x128xf32, #tpu.memory_space<vmem>>, vector<80x128xf32>
    tpu.vector_store %arg6[%c0_40, %c0_41], %34 {strides = array<i32>} : memref<80x128xf32, #tpu.memory_space<vmem>>, vector<80x128xf32>,
    %c0_42 = arith.constant 0 : index
    %c0_43 = arith.constant 0 : index
    %36 = vector.load %arg6[%c0_42, %c0_43] : memref<80x128xf32, #tpu.memory_space<vmem>>, vector<80x128xf32>
    %c0_44 = arith.constant 0 : index
    %c11 = arith.constant 11 : index
    %c0_45 = arith.constant 0 : index
    %37 = vector.load %arg2[%c0_44, %c11, %c0_45] : memref<1x110x8xbf16, #tpu.memory_space<vmem>>, vector<1x80x8xbf16>
    %38 = vector.shape_cast %37 : vector<1x80x8xbf16> to vector<80x8xbf16>
    %c4 = arith.constant 4 : index
    %c0_46 = arith.constant 0 : index
    %c0_47 = arith.constant 0 : index
    %39 = vector.load %arg3[%c4, %c0_46, %c0_47] : memref<9x8x128xbf16, #tpu.memory_space<vmem>>, vector<1x8x128xbf16>
    %40 = vector.shape_cast %39 : vector<1x8x128xbf16> to vector<8x128xbf16>
    %cst_48 = arith.constant dense<0.000000e+00> : vector<80x128xf32>
    %41 = tpu.matmul %38, %40, %cst_48 {dimension_numbers = #tpu.dot_dimension_numbers<[1], [0], [0], [1], [0, 0, 1, 1], [], []>} : vector<80x8xbf16>, vector<8x128xbf16>, vector<80x128xf32> -> vector<80x128xf32>
    %42 = arith.addf %36, %41 : vector<80x128xf32>
    %c0_49 = arith.constant 0 : index
    %c0_50 = arith.constant 0 : index
    %43 = vector.load %arg6[%c0_49, %c0_50] : memref<80x128xf32, #tpu.memory_space<vmem>>, vector<80x128xf32>
    tpu.vector_store %arg6[%c0_49, %c0_50], %42 {strides = array<i32>} : memref<80x128xf32, #tpu.memory_space<vmem>>, vector<80x128xf32>,
    %c0_51 = arith.constant 0 : index
    %c0_52 = arith.constant 0 : index
    %44 = vector.load %arg6[%c0_51, %c0_52] : memref<80x128xf32, #tpu.memory_space<vmem>>, vector<80x128xf32>
    %c0_53 = arith.constant 0 : index
    %c12 = arith.constant 12 : index
    %c0_54 = arith.constant 0 : index
    %45 = vector.load %arg2[%c0_53, %c12, %c0_54] : memref<1x110x8xbf16, #tpu.memory_space<vmem>>, vector<1x80x8xbf16>
    %46 = vector.shape_cast %45 : vector<1x80x8xbf16> to vector<80x8xbf16>
    %c5 = arith.constant 5 : index
    %c0_55 = arith.constant 0 : index
    %c0_56 = arith.constant 0 : index
    %47 = vector.load %arg3[%c5, %c0_55, %c0_56] : memref<9x8x128xbf16, #tpu.memory_space<vmem>>, vector<1x8x128xbf16>
    %48 = vector.shape_cast %47 : vector<1x8x128xbf16> to vector<8x128xbf16>
    %cst_57 = arith.constant dense<0.000000e+00> : vector<80x128xf32>
    %49 = tpu.matmul %46, %48, %cst_57 {dimension_numbers = #tpu.dot_dimension_numbers<[1], [0], [0], [1], [0, 0, 1, 1], [], []>} : vector<80x8xbf16>, vector<8x128xbf16>, vector<80x128xf32> -> vector<80x128xf32>
    %50 = arith.addf %44, %49 : vector<80x128xf32>
    %c0_58 = arith.constant 0 : index
    %c0_59 = arith.constant 0 : index
    %51 = vector.load %arg6[%c0_58, %c0_59] : memref<80x128xf32, #tpu.memory_space<vmem>>, vector<80x128xf32>
    tpu.vector_store %arg6[%c0_58, %c0_59], %50 {strides = array<i32>} : memref<80x128xf32, #tpu.memory_space<vmem>>, vector<80x128xf32>,
    %c0_60 = arith.constant 0 : index
    %c0_61 = arith.constant 0 : index
    %52 = vector.load %arg6[%c0_60, %c0_61] : memref<80x128xf32, #tpu.memory_space<vmem>>, vector<80x128xf32>
    %c0_62 = arith.constant 0 : index
    %c20 = arith.constant 20 : index
    %c0_63 = arith.constant 0 : index
    %53 = vector.load %arg2[%c0_62, %c20, %c0_63] : memref<1x110x8xbf16, #tpu.memory_space<vmem>>, vector<1x80x8xbf16>
    %54 = vector.shape_cast %53 : vector<1x80x8xbf16> to vector<80x8xbf16>
    %c6 = arith.constant 6 : index
    %c0_64 = arith.constant 0 : index
    %c0_65 = arith.constant 0 : index
    %55 = vector.load %arg3[%c6, %c0_64, %c0_65] : memref<9x8x128xbf16, #tpu.memory_space<vmem>>, vector<1x8x128xbf16>
    %56 = vector.shape_cast %55 : vector<1x8x128xbf16> to vector<8x128xbf16>
    %cst_66 = arith.constant dense<0.000000e+00> : vector<80x128xf32>
    %57 = tpu.matmul %54, %56, %cst_66 {dimension_numbers = #tpu.dot_dimension_numbers<[1], [0], [0], [1], [0, 0, 1, 1], [], []>} : vector<80x8xbf16>, vector<8x128xbf16>, vector<80x128xf32> -> vector<80x128xf32>
    %58 = arith.addf %52, %57 : vector<80x128xf32>
    %c0_67 = arith.constant 0 : index
    %c0_68 = arith.constant 0 : index
    %59 = vector.load %arg6[%c0_67, %c0_68] : memref<80x128xf32, #tpu.memory_space<vmem>>, vector<80x128xf32>
    tpu.vector_store %arg6[%c0_67, %c0_68], %58 {strides = array<i32>} : memref<80x128xf32, #tpu.memory_space<vmem>>, vector<80x128xf32>,
    %c0_69 = arith.constant 0 : index
    %c0_70 = arith.constant 0 : index
    %60 = vector.load %arg6[%c0_69, %c0_70] : memref<80x128xf32, #tpu.memory_space<vmem>>, vector<80x128xf32>
    %c0_71 = arith.constant 0 : index
    %c21 = arith.constant 21 : index
    %c0_72 = arith.constant 0 : index
    %61 = vector.load %arg2[%c0_71, %c21, %c0_72] : memref<1x110x8xbf16, #tpu.memory_space<vmem>>, vector<1x80x8xbf16>
    %62 = vector.shape_cast %61 : vector<1x80x8xbf16> to vector<80x8xbf16>
    %c7 = arith.constant 7 : index
    %c0_73 = arith.constant 0 : index
    %c0_74 = arith.constant 0 : index
    %63 = vector.load %arg3[%c7, %c0_73, %c0_74] : memref<9x8x128xbf16, #tpu.memory_space<vmem>>, vector<1x8x128xbf16>
    %64 = vector.shape_cast %63 : vector<1x8x128xbf16> to vector<8x128xbf16>
    %cst_75 = arith.constant dense<0.000000e+00> : vector<80x128xf32>
    %65 = tpu.matmul %62, %64, %cst_75 {dimension_numbers = #tpu.dot_dimension_numbers<[1], [0], [0], [1], [0, 0, 1, 1], [], []>} : vector<80x8xbf16>, vector<8x128xbf16>, vector<80x128xf32> -> vector<80x128xf32>
    %66 = arith.addf %60, %65 : vector<80x128xf32>
    %c0_76 = arith.constant 0 : index
    %c0_77 = arith.constant 0 : index
    %67 = vector.load %arg6[%c0_76, %c0_77] : memref<80x128xf32, #tpu.memory_space<vmem>>, vector<80x128xf32>
    tpu.vector_store %arg6[%c0_76, %c0_77], %66 {strides = array<i32>} : memref<80x128xf32, #tpu.memory_space<vmem>>, vector<80x128xf32>,
    %c0_78 = arith.constant 0 : index
    %c0_79 = arith.constant 0 : index
    %68 = vector.load %arg6[%c0_78, %c0_79] : memref<80x128xf32, #tpu.memory_space<vmem>>, vector<80x128xf32>
    %c0_80 = arith.constant 0 : index
    %c22 = arith.constant 22 : index
    %c0_81 = arith.constant 0 : index
    %69 = vector.load %arg2[%c0_80, %c22, %c0_81] : memref<1x110x8xbf16, #tpu.memory_space<vmem>>, vector<1x80x8xbf16>
    %70 = vector.shape_cast %69 : vector<1x80x8xbf16> to vector<80x8xbf16>
    %c8 = arith.constant 8 : index
    %c0_82 = arith.constant 0 : index
    %c0_83 = arith.constant 0 : index
    %71 = vector.load %arg3[%c8, %c0_82, %c0_83] : memref<9x8x128xbf16, #tpu.memory_space<vmem>>, vector<1x8x128xbf16>
    %72 = vector.shape_cast %71 : vector<1x8x128xbf16> to vector<8x128xbf16>
    %cst_84 = arith.constant dense<0.000000e+00> : vector<80x128xf32>
    %73 = tpu.matmul %70, %72, %cst_84 {dimension_numbers = #tpu.dot_dimension_numbers<[1], [0], [0], [1], [0, 0, 1, 1], [], []>} : vector<80x8xbf16>, vector<8x128xbf16>, vector<80x128xf32> -> vector<80x128xf32>
    %74 = arith.addf %68, %73 : vector<80x128xf32>
    %c0_85 = arith.constant 0 : index
    %c0_86 = arith.constant 0 : index
    %75 = vector.load %arg6[%c0_85, %c0_86] : memref<80x128xf32, #tpu.memory_space<vmem>>, vector<80x128xf32>
    tpu.vector_store %arg6[%c0_85, %c0_86], %74 {strides = array<i32>} : memref<80x128xf32, #tpu.memory_space<vmem>>, vector<80x128xf32>,
    %c0_87 = arith.constant 0 : index
    %c0_88 = arith.constant 0 : index
    %76 = vector.load %arg6[%c0_87, %c0_88] : memref<80x128xf32, #tpu.memory_space<vmem>>, vector<80x128xf32>
    %cst_89 = arith.constant 0.000000e+00 : f32
    %77 = vector.broadcast %cst_89 : f32 to vector<80x128xf32>
    %78 = arith.maximumf %76, %77 : vector<80x128xf32>
    %79 = arith.truncf %78 : vector<80x128xf32> to vector<80x128xbf16>
    %c0_90 = arith.constant 0 : index
    %c0_91 = arith.constant 0 : index
    %c0_92 = arith.constant 0 : index
    %80 = vector.load %arg5[%c0_90, %c0_91, %c0_92] : memref<1x80x128xbf16, #tpu.memory_space<vmem>>, vector<1x80x128xbf16>
    %81 = vector.shape_cast %80 : vector<1x80x128xbf16> to vector<80x128xbf16>
    %82 = vector.shape_cast %79 : vector<80x128xbf16> to vector<1x80x128xbf16>
    tpu.vector_store %arg5[%c0_90, %c0_91, %c0_92], %82 {strides = array<i32>} : memref<1x80x128xbf16, #tpu.memory_space<vmem>>, vector<1x80x128xbf16>,
    return
  }
  func.func @transform_0(%arg0: i32, %arg1: i32) -> (i32, i32, i32) {
    %c0_i32 = arith.constant 0 : i32
    %c0_i32_0 = arith.constant 0 : i32
    %c0_i32_1 = arith.constant 0 : i32
    return %arg0, %c0_i32, %c0_i32_0 : i32, i32, i32
  }
  func.func @transform_1(%arg0: i32, %arg1: i32) -> (i32, i32, i32) {
    %c0_i32 = arith.constant 0 : i32
    %c0_i32_0 = arith.constant 0 : i32
    %c0_i32_1 = arith.constant 0 : i32
    return %c0_i32, %c0_i32_0, %arg1 : i32, i32, i32
  }
  func.func @transform_2(%arg0: i32, %arg1: i32) -> (i32, i32) {
    %c0_i32 = arith.constant 0 : i32
    %c0_i32_0 = arith.constant 0 : i32
    return %c0_i32, %arg1 : i32, i32
  }
  func.func @transform_3(%arg0: i32, %arg1: i32) -> (i32, i32, i32) {
    %c0_i32 = arith.constant 0 : i32
    %c0_i32_0 = arith.constant 0 : i32
    return %arg0, %c0_i32, %arg1 : i32, i32, i32
  }
}

module attributes {stable_mosaic.version = 11 : i64} {
  func.func @kernel(%arg0: i32, %arg1: i32, %arg2: i32, %arg3: memref<64x8xbf16, #tpu.memory_space<vmem>>, %arg4: memref<8x128xbf16, #tpu.memory_space<vmem>>, %arg5: memref<64x16xbf16, #tpu.memory_space<vmem>>, %arg6: memref<16x128xbf16, #tpu.memory_space<vmem>>, %arg7: memref<1x128xf32, #tpu.memory_space<vmem>>, %arg8: memref<64x128xbf16, #tpu.memory_space<vmem>>, %arg9: memref<64x128xf32, #tpu.memory_space<vmem>>, %arg10: memref<64x128xf32, #tpu.memory_space<vmem>>) attributes {dimension_semantics = [#tpu.dimension_semantics<parallel>, #tpu.dimension_semantics<parallel>, #tpu.dimension_semantics<arbitrary>], iteration_bounds = array<i64: 2, 1, 2>, scalar_prefetch = 0 : i64, scratch_operands = 1 : i64, tpu.core_type = #tpu.core_type<tc>, window_params = [{transform_indices = @transform_0, window_bounds = array<i64: 64, 8>}, {transform_indices = @transform_1, window_bounds = array<i64: 8, 128>}, {transform_indices = @transform_2, window_bounds = array<i64: 64, 16>}, {transform_indices = @transform_3, window_bounds = array<i64: 16, 128>}, {transform_indices = @transform_4, window_bounds = array<i64: 1, 128>}, {transform_indices = @transform_5, window_bounds = array<i64: 64, 128>}, {transform_indices = @transform_6, window_bounds = array<i64: 64, 128>}]} {
    %c0_i32 = arith.constant 0 : i32
    %0 = arith.cmpi eq, %arg2, %c0_i32 : i32
    %1 = arith.extui %0 : i1 to i32
    %c0_i32_0 = arith.constant 0 : i32
    %2 = arith.cmpi ne, %1, %c0_i32_0 : i32
    scf.if %2 {
      %c0 = arith.constant 0 : index
      %c0_7 = arith.constant 0 : index
      %16 = vector.load %arg7[%c0, %c0_7] : memref<1x128xf32, #tpu.memory_space<vmem>>, vector<1x128xf32>
      %17 = vector.shape_cast %16 : vector<1x128xf32> to vector<1x128xf32>
      %18 = vector.broadcast %17 : vector<1x128xf32> to vector<64x128xf32>
      %c0_8 = arith.constant 0 : index
      %c0_9 = arith.constant 0 : index
      %19 = vector.load %arg10[%c0_8, %c0_9] : memref<64x128xf32, #tpu.memory_space<vmem>>, vector<64x128xf32>
      tpu.vector_store %arg10[%c0_8, %c0_9], %18 {strides = array<i32>} : memref<64x128xf32, #tpu.memory_space<vmem>>, vector<64x128xf32>,
    } else {
    }
    %c0_i32_1 = arith.constant 0 : i32
    %3 = arith.cmpi sge, %arg2, %c0_i32_1 : i32
    %c1_i32 = arith.constant 1 : i32
    %4 = arith.cmpi slt, %arg2, %c1_i32 : i32
    %5 = arith.andi %3, %4 : i1
    %6 = arith.extui %5 : i1 to i32
    %c0_i32_2 = arith.constant 0 : i32
    %7 = arith.cmpi ne, %6, %c0_i32_2 : i32
    scf.if %7 {
      %c0 = arith.constant 0 : index
      %c0_7 = arith.constant 0 : index
      %16 = vector.load %arg10[%c0, %c0_7] : memref<64x128xf32, #tpu.memory_space<vmem>>, vector<64x128xf32>
      %c0_8 = arith.constant 0 : index
      %c0_9 = arith.constant 0 : index
      %17 = vector.load %arg3[%c0_8, %c0_9] : memref<64x8xbf16, #tpu.memory_space<vmem>>, vector<64x8xbf16>
      %c0_10 = arith.constant 0 : index
      %c0_11 = arith.constant 0 : index
      %18 = vector.load %arg4[%c0_10, %c0_11] : memref<8x128xbf16, #tpu.memory_space<vmem>>, vector<8x128xbf16>
      %cst = arith.constant dense<0.000000e+00> : vector<64x128xf32>
      %19 = tpu.matmul %17, %18, %cst {dimension_numbers = #tpu.dot_dimension_numbers<[1], [0], [0], [1], [0, 0, 1, 1], [], []>} : vector<64x8xbf16>, vector<8x128xbf16>, vector<64x128xf32> -> vector<64x128xf32>
      %20 = arith.addf %16, %19 : vector<64x128xf32>
      %c0_12 = arith.constant 0 : index
      %c0_13 = arith.constant 0 : index
      %21 = vector.load %arg10[%c0_12, %c0_13] : memref<64x128xf32, #tpu.memory_space<vmem>>, vector<64x128xf32>
      tpu.vector_store %arg10[%c0_12, %c0_13], %20 {strides = array<i32>} : memref<64x128xf32, #tpu.memory_space<vmem>>, vector<64x128xf32>,
    } else {
    }
    %c1_i32_3 = arith.constant 1 : i32
    %8 = arith.cmpi sge, %arg2, %c1_i32_3 : i32
    %c2_i32 = arith.constant 2 : i32
    %9 = arith.cmpi slt, %arg2, %c2_i32 : i32
    %10 = arith.andi %8, %9 : i1
    %11 = arith.extui %10 : i1 to i32
    %c0_i32_4 = arith.constant 0 : i32
    %12 = arith.cmpi ne, %11, %c0_i32_4 : i32
    scf.if %12 {
      %c0 = arith.constant 0 : index
      %c0_7 = arith.constant 0 : index
      %16 = vector.load %arg10[%c0, %c0_7] : memref<64x128xf32, #tpu.memory_space<vmem>>, vector<64x128xf32>
      %c0_8 = arith.constant 0 : index
      %c0_9 = arith.constant 0 : index
      %17 = vector.load %arg5[%c0_8, %c0_9] : memref<64x16xbf16, #tpu.memory_space<vmem>>, vector<64x16xbf16>
      %c0_10 = arith.constant 0 : index
      %c0_11 = arith.constant 0 : index
      %18 = vector.load %arg6[%c0_10, %c0_11] : memref<16x128xbf16, #tpu.memory_space<vmem>>, vector<16x128xbf16>
      %cst = arith.constant dense<0.000000e+00> : vector<64x128xf32>
      %19 = tpu.matmul %17, %18, %cst {dimension_numbers = #tpu.dot_dimension_numbers<[1], [0], [0], [1], [0, 0, 1, 1], [], []>} : vector<64x16xbf16>, vector<16x128xbf16>, vector<64x128xf32> -> vector<64x128xf32>
      %20 = arith.addf %16, %19 : vector<64x128xf32>
      %c0_12 = arith.constant 0 : index
      %c0_13 = arith.constant 0 : index
      %21 = vector.load %arg10[%c0_12, %c0_13] : memref<64x128xf32, #tpu.memory_space<vmem>>, vector<64x128xf32>
      tpu.vector_store %arg10[%c0_12, %c0_13], %20 {strides = array<i32>} : memref<64x128xf32, #tpu.memory_space<vmem>>, vector<64x128xf32>,
    } else {
    }
    %c1_i32_5 = arith.constant 1 : i32
    %13 = arith.cmpi eq, %arg2, %c1_i32_5 : i32
    %14 = arith.extui %13 : i1 to i32
    %c0_i32_6 = arith.constant 0 : i32
    %15 = arith.cmpi ne, %14, %c0_i32_6 : i32
    scf.if %15 {
      %c0 = arith.constant 0 : index
      %c0_7 = arith.constant 0 : index
      %16 = vector.load %arg10[%c0, %c0_7] : memref<64x128xf32, #tpu.memory_space<vmem>>, vector<64x128xf32>
      %c0_8 = arith.constant 0 : index
      %c0_9 = arith.constant 0 : index
      %17 = vector.load %arg9[%c0_8, %c0_9] : memref<64x128xf32, #tpu.memory_space<vmem>>, vector<64x128xf32>
      tpu.vector_store %arg9[%c0_8, %c0_9], %16 {strides = array<i32>} : memref<64x128xf32, #tpu.memory_space<vmem>>, vector<64x128xf32>,
      %cst = arith.constant 0.000000e+00 : f32
      %18 = vector.broadcast %cst : f32 to vector<64x128xf32>
      %19 = arith.maximumf %16, %18 : vector<64x128xf32>
      %20 = arith.truncf %19 : vector<64x128xf32> to vector<64x128xbf16>
      %c0_10 = arith.constant 0 : index
      %c0_11 = arith.constant 0 : index
      %21 = vector.load %arg8[%c0_10, %c0_11] : memref<64x128xbf16, #tpu.memory_space<vmem>>, vector<64x128xbf16>
      tpu.vector_store %arg8[%c0_10, %c0_11], %20 {strides = array<i32>} : memref<64x128xbf16, #tpu.memory_space<vmem>>, vector<64x128xbf16>,
    } else {
    }
    return
  }
  func.func @transform_0(%arg0: i32, %arg1: i32, %arg2: i32) -> (i32, i32) {
    %c0_i32 = arith.constant 0 : i32
    %0 = arith.subi %arg2, %c0_i32 : i32
    %c0_i32_0 = arith.constant 0 : i32
    %c0_i32_1 = arith.constant 0 : i32
    %1 = arith.maxsi %c0_i32_0, %0 : i32
    %2 = arith.minsi %c0_i32_1, %1 : i32
    %c0_i32_2 = arith.constant 0 : i32
    return %arg0, %2 : i32, i32
  }
  func.func @transform_1(%arg0: i32, %arg1: i32, %arg2: i32) -> (i32, i32) {
    %c0_i32 = arith.constant 0 : i32
    %0 = arith.subi %arg2, %c0_i32 : i32
    %c0_i32_0 = arith.constant 0 : i32
    %c0_i32_1 = arith.constant 0 : i32
    %1 = arith.maxsi %c0_i32_0, %0 : i32
    %2 = arith.minsi %c0_i32_1, %1 : i32
    %c0_i32_2 = arith.constant 0 : i32
    return %2, %arg1 : i32, i32
  }
  func.func @transform_2(%arg0: i32, %arg1: i32, %arg2: i32) -> (i32, i32) {
    %c1_i32 = arith.constant 1 : i32
    %0 = arith.subi %arg2, %c1_i32 : i32
    %c0_i32 = arith.constant 0 : i32
    %c0_i32_0 = arith.constant 0 : i32
    %1 = arith.maxsi %c0_i32, %0 : i32
    %2 = arith.minsi %c0_i32_0, %1 : i32
    %c0_i32_1 = arith.constant 0 : i32
    return %arg0, %2 : i32, i32
  }
  func.func @transform_3(%arg0: i32, %arg1: i32, %arg2: i32) -> (i32, i32) {
    %c1_i32 = arith.constant 1 : i32
    %0 = arith.subi %arg2, %c1_i32 : i32
    %c0_i32 = arith.constant 0 : i32
    %c0_i32_0 = arith.constant 0 : i32
    %1 = arith.maxsi %c0_i32, %0 : i32
    %2 = arith.minsi %c0_i32_0, %1 : i32
    %c0_i32_1 = arith.constant 0 : i32
    return %2, %arg1 : i32, i32
  }
  func.func @transform_4(%arg0: i32, %arg1: i32, %arg2: i32) -> (i32, i32) {
    %c0_i32 = arith.constant 0 : i32
    %c0_i32_0 = arith.constant 0 : i32
    return %c0_i32, %arg1 : i32, i32
  }
  func.func @transform_5(%arg0: i32, %arg1: i32, %arg2: i32) -> (i32, i32) {
    %c0_i32 = arith.constant 0 : i32
    return %arg0, %arg1 : i32, i32
  }
  func.func @transform_6(%arg0: i32, %arg1: i32, %arg2: i32) -> (i32, i32) {
    %c0_i32 = arith.constant 0 : i32
    return %arg0, %arg1 : i32, i32
  }
}

</mosaic_0001>

<llo_original>
// kernel: bottleneck_forward.3
$region0: #{bottleneck_forward.3}
  #allocation0 [shape = 'u32[]', space=smem, size = 0x4, offset = 0x4, fixed_abs, tag = 'smem constant byte address 0x4 - core index']
  #allocation1 [shape = 'u32[72,128]{1,0:T(1,128)}', space=vmem, size = 0x9000, scoped, tag = 'internal scratch']
  #allocation2 [shape = 'f32[64,128]{1,0:T(8,128)}', space=vmem, size = 0x8000, scoped, tag = 'scratch operand']
  %s0 = inlined_call_operand.vmem [shape: bf16[128,16], index: 0, kind: input, shape index: {}]
  %s1 = inlined_call_operand.vmem [shape: bf16[16,128], index: 1, kind: input, shape index: {}]
  %s2 = inlined_call_operand.vmem [shape: f32[1,128], index: 2, kind: input, shape index: {}]
  %s3 = inlined_call_operand.vmem [shape: bf16[128,128], index: 3, kind: output, shape index: {}]
  %s4 = sld [smem:[#allocation0]]
  $region53: #{bottleneck_forward.3} parent=0
    _
  %s6 = ssub.s32 1, %s4
  %s7 = scalar_select 0, %s6, %s4
  loop: start=0, step=1, limit=4
  $region2: #{bottleneck_forward.3} parent=0 // loop_pre_header
    _
  $region3: #{bottleneck_forward.3} parent=0 // loop_header
    %s9 = sphi 0, %s13
    %p10 = scmp.ge.s32.totalorder %s9, 4
    %s16 = sphi 0, %s35
    %s17 = sphi 0, %s31
    %s18 = sphi 0, %s27
    %s19 = sphi 0, %s16
    %s20 = sphi 0, %s17
    %s21 = sphi 0, %s18
    %s22 = sphi 0, %s19
    %s23 = sphi 0, %s20
    %s24 = sphi 0, %s21
    %s48 = sphi 0, %s50
    %s51 = sphi 0, %s48
    %s52 = sphi 0, %s51
    %s68 = sphi 0, %s52
    %s84 = sphi 0, %s86
    %s87 = sphi 0, %s84
    %s88 = sphi 0, %s87
    %s104 = sphi 0, %s88
    %s110 = sphi 0, %s112
    %s113 = sphi 0, %s110
    %s114 = sphi 0, %s113
    %s130 = sphi 0, %s114
    %s138 = sphi 0, %s140
    %s141 = sphi 0, %s138
    %s142 = sphi 0, %s141
    %s158 = sphi 0, %s142
  $region4: #{bottleneck_forward.3} parent=0 // loop_header_branch
    %12 = sbr.rel (%p10) target = $region8
  $region5: #{bottleneck_forward.3} parent=0 // loop_body
    %s14 = ssub.s32 %s9, 1
    %s15 = ssub.s32 %s9, 2
    %s25 = sadd.s32 1, %s18
    %p26 = scmp.ge.s32.totalorder %s25, 1
    %s27 = scalar_select %p26, 0, %s25
    %s28 = sadd.s32 1, %s17
    %s29 = scalar_select %p26, %s28, %s17
    %p30 = scmp.ge.s32.totalorder %s29, 1
    %s31 = scalar_select %p30, 0, %s29
    %s32 = sadd.s32 1, %s16
    %s33 = scalar_select %p30, %s32, %s16
    %p34 = scmp.ge.s32.totalorder %s33, 2
    %s35 = scalar_select %p34, 0, %s33
    %p36 = scmp.gt.s32.totalorder %s18, 0
    %s37 = scalar_select %p36, %s18, 0
    %p38 = scmp.lt.s32.totalorder %s37, 0
    %s39 = scalar_select %p38, %s37, 0
    %p40 = scmp.gt.s32.totalorder %s27, 0
    %s41 = scalar_select %p40, %s27, 0
    %p42 = scmp.lt.s32.totalorder %s41, 0
    %s43 = scalar_select %p42, %s41, 0
    %s44 = ssub.s32 %s16, %s35
    %s45 = ssub.s32 %s39, %s43
    %s46 = sor.u32 %s44, %s45
    %p47 = scmp.eq.s32.totalorder %s46, 0
    %s49 = sadd.s32 %s48, 1
    %s50 = scalar_select %p47, %s48, %s49
    %p53 = pneg %p47
    %p54 = scmp.eq.s32.totalorder %s9, 1
    %p55 = por %p53, %p54
    %p56 = scmp.ne.s32.totalorder %s48, %s51
    %p57 = scmp.eq.s32.totalorder %s9, 0
    %p58 = por %p56, %p57
    %p59 = scmp.ne.s32.totalorder %s48, %s51
    %p60 = scmp.eq.s32.totalorder %s14, 1
    %p61 = por %p59, %p60
    %p62 = scmp.ne.s32.totalorder %s51, %s52
    %p63 = scmp.eq.s32.totalorder %s14, 0
    %p64 = por %p62, %p63
    %p65 = scmp.ne.s32.totalorder %s51, %s52
    %p66 = scmp.eq.s32.totalorder %s15, 1
    %p67 = por %p65, %p66
    %p69 = scmp.ne.s32.totalorder %s52, %s68
    %p70 = scmp.eq.s32.totalorder %s15, 0
    %p71 = por %p69, %p70
    %p72 = scmp.gt.s32.totalorder %s18, 0
    %s73 = scalar_select %p72, %s18, 0
    %p74 = scmp.lt.s32.totalorder %s73, 0
    %s75 = scalar_select %p74, %s73, 0
    %p76 = scmp.gt.s32.totalorder %s27, 0
    %s77 = scalar_select %p76, %s27, 0
    %p78 = scmp.lt.s32.totalorder %s77, 0
    %s79 = scalar_select %p78, %s77, 0
    %s80 = ssub.s32 %s75, %s79
    %s81 = ssub.s32 %s17, %s31
    %s82 = sor.u32 %s80, %s81
    %p83 = scmp.eq.s32.totalorder %s82, 0
    %s85 = sadd.s32 %s84, 1
    %s86 = scalar_select %p83, %s84, %s85
    %p89 = pneg %p83
    %p90 = scmp.eq.s32.totalorder %s9, 1
    %p91 = por %p89, %p90
    %p92 = scmp.ne.s32.totalorder %s84, %s87
    %p93 = scmp.eq.s32.totalorder %s9, 0
    %p94 = por %p92, %p93
    %p95 = scmp.ne.s32.totalorder %s84, %s87
    %p96 = scmp.eq.s32.totalorder %s14, 1
    %p97 = por %p95, %p96
    %p98 = scmp.ne.s32.totalorder %s87, %s88
    %p99 = scmp.eq.s32.totalorder %s14, 0
    %p100 = por %p98, %p99
    %p101 = scmp.ne.s32.totalorder %s87, %s88
    %p102 = scmp.eq.s32.totalorder %s15, 1
    %p103 = por %p101, %p102
    %p105 = scmp.ne.s32.totalorder %s88, %s104
    %p106 = scmp.eq.s32.totalorder %s15, 0
    %p107 = por %p105, %p106
    %s108 = ssub.s32 %s17, %s31
    %p109 = scmp.eq.s32.totalorder %s108, 0
    %s111 = sadd.s32 %s110, 1
    %s112 = scalar_select %p109, %s110, %s111
    %p115 = pneg %p109
    %p116 = scmp.eq.s32.totalorder %s9, 1
    %p117 = por %p115, %p116
    %p118 = scmp.ne.s32.totalorder %s110, %s113
    %p119 = scmp.eq.s32.totalorder %s9, 0
    %p120 = por %p118, %p119
    %p121 = scmp.ne.s32.totalorder %s110, %s113
    %p122 = scmp.eq.s32.totalorder %s14, 1
    %p123 = por %p121, %p122
    %p124 = scmp.ne.s32.totalorder %s113, %s114
    %p125 = scmp.eq.s32.totalorder %s14, 0
    %p126 = por %p124, %p125
    %p127 = scmp.ne.s32.totalorder %s113, %s114
    %p128 = scmp.eq.s32.totalorder %s15, 1
    %p129 = por %p127, %p128
    %p131 = scmp.ne.s32.totalorder %s114, %s130
    %p132 = scmp.eq.s32.totalorder %s15, 0
    %p133 = por %p131, %p132
    %s134 = ssub.s32 %s16, %s35
    %s135 = ssub.s32 %s17, %s31
    %s136 = sor.u32 %s134, %s135
    %p137 = scmp.eq.s32.totalorder %s136, 0
    %s139 = sadd.s32 %s138, 1
    %s140 = scalar_select %p137, %s138, %s139
    %p143 = pneg %p137
    %p144 = scmp.eq.s32.totalorder %s9, 1
    %p145 = por %p143, %p144
    %p146 = scmp.ne.s32.totalorder %s138, %s141
    %p147 = scmp.eq.s32.totalorder %s9, 0
    %p148 = por %p146, %p147
    %p149 = scmp.ne.s32.totalorder %s138, %s141
    %p150 = scmp.eq.s32.totalorder %s14, 1
    %p151 = por %p149, %p150
    %p152 = scmp.ne.s32.totalorder %s141, %s142
    %p153 = scmp.eq.s32.totalorder %s14, 0
    %p154 = por %p152, %p153
    %p155 = scmp.ne.s32.totalorder %s141, %s142
    %p156 = scmp.eq.s32.totalorder %s15, 1
    %p157 = por %p155, %p156
    %p159 = scmp.ne.s32.totalorder %s142, %s158
    %p160 = scmp.eq.s32.totalorder %s15, 0
    %p161 = por %p159, %p160
    %p162 = scmp.le.s32.totalorder 1, %s9
    %p163 = scmp.lt.s32.totalorder %s9, 3
    %p164 = pnand %p162, %p163
    %p165 = pneg %p164
    // Predicated region
    $region9: #{bottleneck_forward.3} parent=5 // pred_check
      _
    $region10: #{bottleneck_forward.3} parent=5 // pred_check_branch
      %167 = sbr.rel (%p164) target = $region12
    $region11: #{bottleneck_forward.3} parent=5 // pred_region
      %s168 = ssub.s32 %s9, 1
      // Predicated region
      $region13: #{bottleneck_forward.3} parent=11 // pred_check
        %p169 = pneg %p100
      $region14: #{bottleneck_forward.3} parent=11 // pred_check_branch
        %171 = sbr.rel (%p169) target = $region16
      $region15: #{bottleneck_forward.3} parent=11 // pred_region
        %p172 = scmp.gt.s32.totalorder %s21, 0
        %s173 = scalar_select %p172, %s21, 0
        %p174 = scmp.lt.s32.totalorder %s173, 0
        %s175 = scalar_select %p174, %s173, 0
        %s176 = smul.u32 2, %s175
        %p177 = scmp.lt.s32.totalorder %s176, 1
        %s178 = scalar_select %p177, %s176, 1
        %p179 = scmp.lt.s32.totalorder %s20, 0
        %s180 = scalar_select %p179, %s20, 0
        %s181 = sadd.s32 %s180, %s178
        %s182 = smul.addr %s181, 4
        %s183 = scalar_lea.vmem %s1, %s182
        %p184 = scmp.gt.s32.totalorder %s21, 0
        %s185 = scalar_select %p184, %s21, 0
        %p186 = scmp.lt.s32.totalorder %s185, 0
        %s187 = scalar_select %p186, %s185, 0
        %s188 = smul.u32 2, %s187
      $region16: #{bottleneck_forward.3} parent=11 // pred_fallthru
        _
      // Predicated region
      $region17: #{bottleneck_forward.3} parent=11 // pred_check
        %p189 = pneg %p126
      $region18: #{bottleneck_forward.3} parent=11 // pred_check_branch
        %191 = sbr.rel (%p189) target = $region20
      $region19: #{bottleneck_forward.3} parent=11 // pred_region
        %p192 = scmp.lt.s32.totalorder %s20, 0
        %s193 = scalar_select %p192, %s20, 0
        %s194 = scalar_lea.vmem %s2, %s193
      $region20: #{bottleneck_forward.3} parent=11 // pred_fallthru
        _
    $region12: #{bottleneck_forward.3} parent=5 // pred_fallthru
      _
    %p195 = scmp.lt.s32.totalorder %s9, 2
    // Predicated region
    $region21: #{bottleneck_forward.3} parent=5 // pred_check
      %p196 = pneg %p195
    $region22: #{bottleneck_forward.3} parent=5 // pred_check_branch
      %198 = sbr.rel (%p196) target = $region24
    $region23: #{bottleneck_forward.3} parent=5 // pred_region
      // Predicated region
      $region25: #{bottleneck_forward.3} parent=23 // pred_check
        %p199 = pneg %p58
      $region26: #{bottleneck_forward.3} parent=23 // pred_check_branch
        %201 = sbr.rel (%p199) target = $region28
      $region27: #{bottleneck_forward.3} parent=23 // pred_region
        %p202 = scmp.gt.s32.totalorder %s18, 0
        %s203 = scalar_select %p202, %s18, 0
        %p204 = scmp.lt.s32.totalorder %s203, 0
        %s205 = scalar_select %p204, %s203, 0
        %s206 = smul.u32 8, %s16
        %p207 = scmp.lt.s32.totalorder %s206, 15
        %s208 = scalar_select %p207, %s206, 15
        %p209 = scmp.lt.s32.totalorder %s205, 0
        %s210 = scalar_select %p209, %s205, 0
        %s211 = sadd.s32 %s210, %s208
        %s212 = smul.addr %s211, 4
        %s213 = scalar_lea.vmem %s0, %s212
        %p214 = scmp.gt.s32.totalorder %s18, 0
        %s215 = scalar_select %p214, %s18, 0
        %p216 = scmp.lt.s32.totalorder %s215, 0
        %s217 = scalar_select %p216, %s215, 0
        %s218 = smul.u32 8, %s16
      $region28: #{bottleneck_forward.3} parent=23 // pred_fallthru
        _
    $region24: #{bottleneck_forward.3} parent=5 // pred_fallthru
      _
    %p219 = scmp.le.s32.totalorder 1, %s9
    %p220 = scmp.lt.s32.totalorder %s9, 3
    %p221 = pnand %p219, %p220
    %p222 = pneg %p221
    // Predicated region
    $region29: #{bottleneck_forward.3} parent=5 // pred_check
      _
    $region30: #{bottleneck_forward.3} parent=5 // pred_check_branch
      %224 = sbr.rel (%p221) target = $region32
    $region31: #{bottleneck_forward.3} parent=5 // pred_region
      %s225 = ssub.s32 %s9, 1
      %p226 = scmp.gt.s32.totalorder %s21, 0
      %s227 = scalar_select %p226, %s21, 0
      %p228 = scmp.lt.s32.totalorder %s227, 0
      %s229 = scalar_select %p228, %s227, 0
      %s230 = smul.u32 8, %s19
      %p231 = scmp.lt.s32.totalorder %s230, 15
      %s232 = scalar_select %p231, %s230, 15
      %p233 = scmp.lt.s32.totalorder %s229, 0
      %s234 = scalar_select %p233, %s229, 0
      %s235 = sadd.s32 %s234, %s232
      %s236 = smul.addr %s235, 4
      %s237 = scalar_lea.vmem %s0, %s236
      %p238 = pneg %p64
      %p239 = pneg %p61
      %p240 = scmp.gt.s32.totalorder %s21, 0
      %s241 = scalar_select %p240, %s21, 0
      %p242 = scmp.lt.s32.totalorder %s241, 0
      %s243 = scalar_select %p242, %s241, 0
      %s244 = smul.u32 2, %s243
      %p245 = scmp.lt.s32.totalorder %s244, 1
      %s246 = scalar_select %p245, %s244, 1
      %p247 = scmp.lt.s32.totalorder %s20, 0
      %s248 = scalar_select %p247, %s20, 0
      %s249 = sadd.s32 %s248, %s246
      %s250 = smul.addr %s249, 4
      %s251 = scalar_lea.vmem %s1, %s250
      %p252 = pneg %p100
      %p253 = pneg %p97
      %p254 = scmp.lt.s32.totalorder %s20, 0
      %s255 = scalar_select %p254, %s20, 0
      %s256 = scalar_lea.vmem %s2, %s255
      %p257 = pneg %p126
      %p258 = pneg %p123
      %p259 = pneg %p154
      %p260 = pneg %p151
      %s261 = smul.u32 8, %s19
      %p262 = scmp.lt.s32.totalorder %s261, 15
      %s263 = scalar_select %p262, %s261, 15
      %p264 = scmp.lt.s32.totalorder %s20, 0
      %s265 = scalar_select %p264, %s20, 0
      %s266 = sadd.s32 %s265, %s263
      %s267 = smul.addr %s266, 4
      %s268 = scalar_lea.vmem %s3, %s267
      %p269 = scmp.gt.s32.totalorder %s21, 0
      %s270 = scalar_select %p269, %s21, 0
      %p271 = scmp.lt.s32.totalorder %s270, 0
      %s272 = scalar_select %p271, %s270, 0
      %s273 = smul.u32 8, %s19
      %p274 = scmp.lt.s32.totalorder %s273, 15
      %s275 = scalar_select %p274, %s273, 15
      %p276 = scmp.lt.s32.totalorder %s272, 0
      %s277 = scalar_select %p276, %s272, 0
      %s278 = sadd.s32 %s277, %s275
      %s279 = smul.addr %s278, 4
      %s280 = scalar_lea.vmem %s0, %s279
      %p281 = scmp.gt.s32.totalorder %s21, 0
      %s282 = scalar_select %p281, %s21, 0
      %p283 = scmp.lt.s32.totalorder %s282, 0
      %s284 = scalar_select %p283, %s282, 0
      %s285 = smul.u32 8, %s19
      %p286 = scmp.gt.s32.totalorder %s21, 0
      %s287 = scalar_select %p286, %s21, 0
      %p288 = scmp.lt.s32.totalorder %s287, 0
      %s289 = scalar_select %p288, %s287, 0
      %s290 = smul.u32 2, %s289
      %p291 = scmp.lt.s32.totalorder %s290, 1
      %s292 = scalar_select %p291, %s290, 1
      %p293 = scmp.lt.s32.totalorder %s20, 0
      %s294 = scalar_select %p293, %s20, 0
      %s295 = sadd.s32 %s294, %s292
      %s296 = smul.addr %s295, 4
      %s297 = scalar_lea.vmem %s1, %s296
      %p298 = scmp.gt.s32.totalorder %s21, 0
      %s299 = scalar_select %p298, %s21, 0
      %p300 = scmp.lt.s32.totalorder %s299, 0
      %s301 = scalar_select %p300, %s299, 0
      %s302 = smul.u32 2, %s301
      %p303 = scmp.lt.s32.totalorder %s20, 0
      %s304 = scalar_select %p303, %s20, 0
      %s305 = scalar_lea.vmem %s2, %s304
      %s306 = smul.u32 8, %s19
      %p307 = scmp.lt.s32.totalorder %s306, 15
      %s308 = scalar_select %p307, %s306, 15
      %p309 = scmp.lt.s32.totalorder %s20, 0
      %s310 = scalar_select %p309, %s20, 0
      %s311 = sadd.s32 %s310, %s308
      %s312 = smul.addr %s311, 4
      %s313 = scalar_lea.vmem %s3, %s312
      %s314 = smul.u32 8, %s19
      %p316 = scmp.eq.s32.totalorder %s21, 0
      // Predicated region
      $region33: #{bottleneck_forward.3} parent=31 // pred_check
        %p317 = pneg %p316
      $region34: #{bottleneck_forward.3} parent=31 // pred_check_branch
        %319 = sbr.rel (%p317) target = $region36
      $region35: #{bottleneck_forward.3} parent=31 // pred_region
        %v320 = vld [vmem:[%s305] sm:$0x1]
        %v322 = vperm.slane %v320, 0
        %324 = vst [vmem:[#allocation2] sm:$0xff] %v322
        %325 = vst [vmem:[#allocation2 + $0x8] sm:$0xff] %v322
        %326 = vst [vmem:[#allocation2 + $0x10] sm:$0xff] %v322
        %327 = vst [vmem:[#allocation2 + $0x18] sm:$0xff] %v322
        %328 = vst [vmem:[#allocation2 + $0x20] sm:$0xff] %v322
        %329 = vst [vmem:[#allocation2 + $0x28] sm:$0xff] %v322
        %330 = vst [vmem:[#allocation2 + $0x30] sm:$0xff] %v322
        %331 = vst [vmem:[#allocation2 + $0x38] sm:$0xff] %v322
      $region36: #{bottleneck_forward.3} parent=31 // pred_fallthru
        _
      %v332 = vld [vmem:[#allocation2] sm:$0xff]
      %v333 = vld [vmem:[#allocation2 + $0x8] sm:$0xff]
      %v334 = vld [vmem:[#allocation2 + $0x10] sm:$0xff]
      %v335 = vld [vmem:[#allocation2 + $0x18] sm:$0xff]
      %v336 = vld [vmem:[#allocation2 + $0x20] sm:$0xff]
      %v337 = vld [vmem:[#allocation2 + $0x28] sm:$0xff]
      %v338 = vld [vmem:[#allocation2 + $0x30] sm:$0xff]
      %v339 = vld [vmem:[#allocation2 + $0x38] sm:$0xff]
      %v340 = vld [vmem:[%s280] sm:$0xf]
      %v341 = vld [vmem:[%s280 + $0x4] sm:$0xf]
      %v342 = vld [vmem:[%s280 + $0x8] sm:$0xf]
      %v343 = vld [vmem:[%s280 + $0xc] sm:$0xf]
      %v344 = vld [vmem:[%s280 + $0x10] sm:$0xf]
      %v345 = vld [vmem:[%s280 + $0x14] sm:$0xf]
      %v346 = vld [vmem:[%s280 + $0x18] sm:$0xf]
      %v347 = vld [vmem:[%s280 + $0x1c] sm:$0xf]
      %v348 = vld [vmem:[%s297] sm:$0xf]
      %v349 = vld [vmem:[%s297 + $0x4] sm:$0xf]
      %v358 = vunpack.c.l.b16 %v340
      %v359 = vunpack.c.l.b16 %v341
      %v360 = vunpack.c.l.b16 %v342
      %v361 = vunpack.c.l.b16 %v343
      %v362 = vunpack.c.l.b16 %v344
      %v363 = vunpack.c.l.b16 %v345
      %v364 = vunpack.c.l.b16 %v346
      %v365 = vunpack.c.l.b16 %v347
      %v366 = vpack.c.b16 %v359, %v358
      %v367 = vpack.c.b16 %v361, %v360
      %v368 = vpack.c.b16 %v363, %v362
      %v369 = vpack.c.b16 %v365, %v364
      %v372 = vunpack.c.l.b16 %v348
      %v373 = vunpack.c.l.b16 %v349
      %v374 = vpack.c.b16 %v373, %v372
      %vm376 = vcmask 130048
      %v378 = vsel %vm376, %v366, 0
      %v381 = vsel %vm376, %v367, 0
      %v384 = vsel %vm376, %v368, 0
      %v387 = vsel %vm376, %v369, 0
      %389 = vmatpush.bf16.msra.mxu0 0
      %390 = vmatpush.bf16.msra.mxu0 0
      %391 = vmatpush.bf16.msra.mxu0 0
      %392 = vmatpush.bf16.msra.mxu0 0
      %393 = vmatpush.bf16.msra.mxu0 0
      %394 = vmatpush.bf16.msra.mxu0 0
      %395 = vmatpush.bf16.msra.mxu0 0
      %396 = vmatpush.bf16.msra.mxu0 %v374
      %397 = vmatmul.bf16.gmra.mxu0 %v378
      %v398 = vpop.f32.mrf.mxu0
      %v399 = vadd.f32 0.0, %v398
      %v400 = vpop.f32.mrf.mxu0
      %v401 = vadd.f32 0.0, %v400
      %402 = vmatmul.bf16.gmra.mxu0 %v381
      %v403 = vpop.f32.mrf.mxu0
      %v404 = vadd.f32 0.0, %v403
      %v405 = vpop.f32.mrf.mxu0
      %v406 = vadd.f32 0.0, %v405
      %407 = vmatmul.bf16.gmra.mxu0 %v384
      %v408 = vpop.f32.mrf.mxu0
      %v409 = vadd.f32 0.0, %v408
      %v410 = vpop.f32.mrf.mxu0
      %v411 = vadd.f32 0.0, %v410
      %412 = vmatmul.bf16.gmra.mxu0 %v387
      %v413 = vpop.f32.mrf.mxu0
      %v414 = vadd.f32 0.0, %v413
      %v415 = vpop.f32.mrf.mxu0
      %v416 = vadd.f32 0.0, %v415
      %417 = vdwg.mxu0
      %v418 = vadd.f32 %v332, %v399
      %v419 = vadd.f32 %v333, %v401
      %v420 = vadd.f32 %v334, %v404
      %v421 = vadd.f32 %v335, %v406
      %v422 = vadd.f32 %v336, %v409
      %v423 = vadd.f32 %v337, %v411
      %v424 = vadd.f32 %v338, %v414
      %v425 = vadd.f32 %v339, %v416
      %426 = vst [vmem:[#allocation2] sm:$0xff] %v418
      %427 = vst [vmem:[#allocation2 + $0x8] sm:$0xff] %v419
      %428 = vst [vmem:[#allocation2 + $0x10] sm:$0xff] %v420
      %429 = vst [vmem:[#allocation2 + $0x18] sm:$0xff] %v421
      %430 = vst [vmem:[#allocation2 + $0x20] sm:$0xff] %v422
      %431 = vst [vmem:[#allocation2 + $0x28] sm:$0xff] %v423
      %432 = vst [vmem:[#allocation2 + $0x30] sm:$0xff] %v424
      %433 = vst [vmem:[#allocation2 + $0x38] sm:$0xff] %v425
      // Predicated region
      $region37: #{bottleneck_forward.3} parent=31 // pred_check
        %p434 = pneg %p316
      $region38: #{bottleneck_forward.3} parent=31 // pred_check_branch
        %436 = sbr.rel (%p434) target = $region40
      $region39: #{bottleneck_forward.3} parent=31 // pred_region
        %v437 = vld [vmem:[#allocation2] sm:$0xff]
        %v438 = vld [vmem:[#allocation2 + $0x8] sm:$0xff]
        %v439 = vld [vmem:[#allocation2 + $0x10] sm:$0xff]
        %v440 = vld [vmem:[#allocation2 + $0x18] sm:$0xff]
        %v441 = vld [vmem:[#allocation2 + $0x20] sm:$0xff]
        %v442 = vld [vmem:[#allocation2 + $0x28] sm:$0xff]
        %v443 = vld [vmem:[#allocation2 + $0x30] sm:$0xff]
        %v444 = vld [vmem:[#allocation2 + $0x38] sm:$0xff]
        %v445 = vmax.f32 %v437, 0.0
        %v446 = vmax.f32 %v438, 0.0
        %v447 = vmax.f32 %v439, 0.0
        %v448 = vmax.f32 %v440, 0.0
        %v449 = vmax.f32 %v441, 0.0
        %v450 = vmax.f32 %v442, 0.0
        %v451 = vmax.f32 %v443, 0.0
        %v452 = vmax.f32 %v444, 0.0
        %v453 = vpack.c.bf16 %v445, %v445
        %v454 = vpack.c.bf16 %v446, %v446
        %v455 = vpack.c.bf16 %v447, %v447
        %v456 = vpack.c.bf16 %v448, %v448
        %v457 = vpack.c.bf16 %v449, %v449
        %v458 = vpack.c.bf16 %v450, %v450
        %v459 = vpack.c.bf16 %v451, %v451
        %v460 = vpack.c.bf16 %v452, %v452
        %461 = vst [vmem:[%s313] sm:$0xf] %v453
        %462 = vst [vmem:[%s313 + $0x4] sm:$0xf] %v454
        %463 = vst [vmem:[%s313 + $0x8] sm:$0xf] %v455
        %464 = vst [vmem:[%s313 + $0xc] sm:$0xf] %v456
        %465 = vst [vmem:[%s313 + $0x10] sm:$0xf] %v457
        %466 = vst [vmem:[%s313 + $0x14] sm:$0xf] %v458
        %467 = vst [vmem:[%s313 + $0x18] sm:$0xf] %v459
        %468 = vst [vmem:[%s313 + $0x1c] sm:$0xf] %v460
      $region40: #{bottleneck_forward.3} parent=31 // pred_fallthru
        _
      %s469 = smul.u32 8, %s19
      %p470 = scmp.lt.s32.totalorder %s469, 15
      %s471 = scalar_select %p470, %s469, 15
      %p472 = scmp.lt.s32.totalorder %s20, 0
      %s473 = scalar_select %p472, %s20, 0
      %s474 = sadd.s32 %s473, %s471
      %s475 = smul.addr %s474, 4
      %s476 = scalar_lea.vmem %s3, %s475
      // Predicated region
      $region41: #{bottleneck_forward.3} parent=31 // pred_check
        %p477 = pneg %p151
      $region42: #{bottleneck_forward.3} parent=31 // pred_check_branch
        %479 = sbr.rel (%p477) target = $region44
      $region43: #{bottleneck_forward.3} parent=31 // pred_region
        %s480 = smul.u32 8, %s19
      $region44: #{bottleneck_forward.3} parent=31 // pred_fallthru
        _
    $region32: #{bottleneck_forward.3} parent=5 // pred_fallthru
      _
    %p481 = scmp.le.s32.totalorder 2, %s9
    // Predicated region
    $region45: #{bottleneck_forward.3} parent=5 // pred_check
      %p482 = pneg %p481
    $region46: #{bottleneck_forward.3} parent=5 // pred_check_branch
      %484 = sbr.rel (%p482) target = $region48
    $region47: #{bottleneck_forward.3} parent=5 // pred_region
      %s485 = ssub.s32 %s9, 2
      // Predicated region
      $region49: #{bottleneck_forward.3} parent=47 // pred_check
        %p486 = pneg %p157
      $region50: #{bottleneck_forward.3} parent=47 // pred_check_branch
        %488 = sbr.rel (%p486) target = $region52
      $region51: #{bottleneck_forward.3} parent=47 // pred_region
        %s489 = smul.u32 8, %s22
        %p490 = scmp.lt.s32.totalorder %s489, 15
        %s491 = scalar_select %p490, %s489, 15
        %p492 = scmp.lt.s32.totalorder %s23, 0
        %s493 = scalar_select %p492, %s23, 0
        %s494 = sadd.s32 %s493, %s491
        %s495 = smul.addr %s494, 4
        %s496 = scalar_lea.vmem %s3, %s495
      $region52: #{bottleneck_forward.3} parent=47 // pred_fallthru
        _
    $region48: #{bottleneck_forward.3} parent=5 // pred_fallthru
      _
  $region6: #{bottleneck_forward.3} parent=0 // loop_footer
    %s13 = sadd.s32 1, %s9
  $region7: #{bottleneck_forward.3} parent=0 // loop_footer_branch
    %8 = sbr.rel target = $region3
  $region8: #{bottleneck_forward.3} parent=0 // loop_exit
    _

// kernel: bottleneck_forward.5
$region0: #{bottleneck_forward.5}
  #allocation0 [shape = 'u32[]', space=smem, size = 0x4, offset = 0x4, fixed_abs, tag = 'smem constant byte address 0x4 - core index']
  #allocation1 [shape = 'u32[72,128]{1,0:T(1,128)}', space=vmem, size = 0x9000, scoped, tag = 'internal scratch']
  #allocation2 [shape = 'f32[64,128]{1,0:T(8,128)}', space=vmem, size = 0x8000, scoped, tag = 'scratch operand']
  %s0 = inlined_call_operand.vmem [shape: bf16[128,8], index: 0, kind: input, shape index: {}]
  %s1 = inlined_call_operand.vmem [shape: bf16[8,128], index: 1, kind: input, shape index: {}]
  %s2 = inlined_call_operand.vmem [shape: bf16[128,16], index: 2, kind: input, shape index: {}]
  %s3 = inlined_call_operand.vmem [shape: bf16[16,128], index: 3, kind: input, shape index: {}]
  %s4 = inlined_call_operand.vmem [shape: f32[1,128], index: 4, kind: input, shape index: {}]
  %s5 = inlined_call_operand.vmem [shape: bf16[128,128], index: 5, kind: output, shape index: {0}]
  %s6 = inlined_call_operand.hbm [shape: f32[128,128], index: 6, kind: output, shape index: {1}]
  %7 = xla_tuple %s5, %s6
  %s8 = sld [smem:[#allocation0]]
  $region77: #{bottleneck_forward.5} parent=0
    _
  %s10 = ssub.s32 1, %s8
  %s11 = scalar_select 0, %s10, %s8
  $region1: #{bottleneck_forward.5} parent=0
    #allocation3 [shape = 'u8[65536]{0}', space=vmem, size = 0x10000, scoped, tag = 'output window, operand 1']
    #allocation4 [shape = 's32[2]{0}', space=sflag, size = 0x8, scoped, tag = 'scoped memory for bottleneck_forward.5']
    %12 = vsyncpa [#allocation4], 0
    %s13 = scalar_lea.sflag [#allocation4], 1
    %14 = vsyncpa %s13, 0
    loop: start=0, step=1, limit=6
    $region2: #{bottleneck_forward.5} parent=1 // loop_pre_header
      _
    $region3: #{bottleneck_forward.5} parent=1 // loop_header
      %s16 = sphi 0, %s20
      %p17 = scmp.ge.s32.totalorder %s16, 6
      %s23 = sphi 0, %s42
      %s24 = sphi 0, %s38
      %s25 = sphi 0, %s34
      %s26 = sphi 0, %s23
      %s27 = sphi 0, %s24
      %s28 = sphi 0, %s25
      %s29 = sphi 0, %s26
      %s30 = sphi 0, %s27
      %s31 = sphi 0, %s28
      %s55 = sphi 0, %s57
      %s58 = sphi 0, %s55
      %s59 = sphi 0, %s58
      %s75 = sphi 0, %s59
      %s91 = sphi 0, %s93
      %s94 = sphi 0, %s91
      %s95 = sphi 0, %s94
      %s111 = sphi 0, %s95
      %s129 = sphi 0, %s131
      %s132 = sphi 0, %s129
      %s133 = sphi 0, %s132
      %s149 = sphi 0, %s133
      %s167 = sphi 0, %s169
      %s170 = sphi 0, %s167
      %s171 = sphi 0, %s170
      %s187 = sphi 0, %s171
      %s193 = sphi 0, %s195
      %s196 = sphi 0, %s193
      %s197 = sphi 0, %s196
      %s213 = sphi 0, %s197
      %s221 = sphi 0, %s223
      %s224 = sphi 0, %s221
      %s225 = sphi 0, %s224
      %s241 = sphi 0, %s225
      %s249 = sphi 0, %s251
      %s252 = sphi 0, %s249
      %s253 = sphi 0, %s252
      %s269 = sphi 0, %s253
    $region4: #{bottleneck_forward.5} parent=1 // loop_header_branch
      %19 = sbr.rel (%p17) target = $region8
    $region5: #{bottleneck_forward.5} parent=1 // loop_body
      %s21 = ssub.s32 %s16, 1
      %s22 = ssub.s32 %s16, 2
      %s32 = sadd.s32 1, %s25
      %p33 = scmp.ge.s32.totalorder %s32, 2
      %s34 = scalar_select %p33, 0, %s32
      %s35 = sadd.s32 1, %s24
      %s36 = scalar_select %p33, %s35, %s24
      %p37 = scmp.ge.s32.totalorder %s36, 1
      %s38 = scalar_select %p37, 0, %s36
      %s39 = sadd.s32 1, %s23
      %s40 = scalar_select %p37, %s39, %s23
      %p41 = scmp.ge.s32.totalorder %s40, 2
      %s42 = scalar_select %p41, 0, %s40
      %p43 = scmp.gt.s32.totalorder %s25, 0
      %s44 = scalar_select %p43, %s25, 0
      %p45 = scmp.lt.s32.totalorder %s44, 0
      %s46 = scalar_select %p45, %s44, 0
      %p47 = scmp.gt.s32.totalorder %s34, 0
      %s48 = scalar_select %p47, %s34, 0
      %p49 = scmp.lt.s32.totalorder %s48, 0
      %s50 = scalar_select %p49, %s48, 0
      %s51 = ssub.s32 %s23, %s42
      %s52 = ssub.s32 %s46, %s50
      %s53 = sor.u32 %s51, %s52
      %p54 = scmp.eq.s32.totalorder %s53, 0
      %s56 = sadd.s32 %s55, 1
      %s57 = scalar_select %p54, %s55, %s56
      %p60 = pneg %p54
      %p61 = scmp.eq.s32.totalorder %s16, 3
      %p62 = por %p60, %p61
      %p63 = scmp.ne.s32.totalorder %s55, %s58
      %p64 = scmp.eq.s32.totalorder %s16, 0
      %p65 = por %p63, %p64
      %p66 = scmp.ne.s32.totalorder %s55, %s58
      %p67 = scmp.eq.s32.totalorder %s21, 3
      %p68 = por %p66, %p67
      %p69 = scmp.ne.s32.totalorder %s58, %s59
      %p70 = scmp.eq.s32.totalorder %s21, 0
      %p71 = por %p69, %p70
      %p72 = scmp.ne.s32.totalorder %s58, %s59
      %p73 = scmp.eq.s32.totalorder %s22, 3
      %p74 = por %p72, %p73
      %p76 = scmp.ne.s32.totalorder %s59, %s75
      %p77 = scmp.eq.s32.totalorder %s22, 0
      %p78 = por %p76, %p77
      %p79 = scmp.gt.s32.totalorder %s25, 0
      %s80 = scalar_select %p79, %s25, 0
      %p81 = scmp.lt.s32.totalorder %s80, 0
      %s82 = scalar_select %p81, %s80, 0
      %p83 = scmp.gt.s32.totalorder %s34, 0
      %s84 = scalar_select %p83, %s34, 0
      %p85 = scmp.lt.s32.totalorder %s84, 0
      %s86 = scalar_select %p85, %s84, 0
      %s87 = ssub.s32 %s82, %s86
      %s88 = ssub.s32 %s24, %s38
      %s89 = sor.u32 %s87, %s88
      %p90 = scmp.eq.s32.totalorder %s89, 0
      %s92 = sadd.s32 %s91, 1
      %s93 = scalar_select %p90, %s91, %s92
      %p96 = pneg %p90
      %p97 = scmp.eq.s32.totalorder %s16, 3
      %p98 = por %p96, %p97
      %p99 = scmp.ne.s32.totalorder %s91, %s94
      %p100 = scmp.eq.s32.totalorder %s16, 0
      %p101 = por %p99, %p100
      %p102 = scmp.ne.s32.totalorder %s91, %s94
      %p103 = scmp.eq.s32.totalorder %s21, 3
      %p104 = por %p102, %p103
      %p105 = scmp.ne.s32.totalorder %s94, %s95
      %p106 = scmp.eq.s32.totalorder %s21, 0
      %p107 = por %p105, %p106
      %p108 = scmp.ne.s32.totalorder %s94, %s95
      %p109 = scmp.eq.s32.totalorder %s22, 3
      %p110 = por %p108, %p109
      %p112 = scmp.ne.s32.totalorder %s95, %s111
      %p113 = scmp.eq.s32.totalorder %s22, 0
      %p114 = por %p112, %p113
      %s115 = ssub.s32 %s25, 1
      %p116 = scmp.gt.s32.totalorder %s115, 0
      %s117 = scalar_select %p116, %s115, 0
      %p118 = scmp.lt.s32.totalorder %s117, 0
      %s119 = scalar_select %p118, %s117, 0
      %s120 = ssub.s32 %s34, 1
      %p121 = scmp.gt.s32.totalorder %s120, 0
      %s122 = scalar_select %p121, %s120, 0
      %p123 = scmp.lt.s32.totalorder %s122, 0
      %s124 = scalar_select %p123, %s122, 0
      %s125 = ssub.s32 %s23, %s42
      %s126 = ssub.s32 %s119, %s124
      %s127 = sor.u32 %s125, %s126
      %p128 = scmp.eq.s32.totalorder %s127, 0
      %s130 = sadd.s32 %s129, 1
      %s131 = scalar_select %p128, %s129, %s130
      %p134 = pneg %p128
      %p135 = scmp.eq.s32.totalorder %s16, 3
      %p136 = por %p134, %p135
      %p137 = scmp.ne.s32.totalorder %s129, %s132
      %p138 = scmp.eq.s32.totalorder %s16, 0
      %p139 = por %p137, %p138
      %p140 = scmp.ne.s32.totalorder %s129, %s132
      %p141 = scmp.eq.s32.totalorder %s21, 3
      %p142 = por %p140, %p141
      %p143 = scmp.ne.s32.totalorder %s132, %s133
      %p144 = scmp.eq.s32.totalorder %s21, 0
      %p145 = por %p143, %p144
      %p146 = scmp.ne.s32.totalorder %s132, %s133
      %p147 = scmp.eq.s32.totalorder %s22, 3
      %p148 = por %p146, %p147
      %p150 = scmp.ne.s32.totalorder %s133, %s149
      %p151 = scmp.eq.s32.totalorder %s22, 0
      %p152 = por %p150, %p151
      %s153 = ssub.s32 %s25, 1
      %p154 = scmp.gt.s32.totalorder %s153, 0
      %s155 = scalar_select %p154, %s153, 0
      %p156 = scmp.lt.s32.totalorder %s155, 0
      %s157 = scalar_select %p156, %s155, 0
      %s158 = ssub.s32 %s34, 1
      %p159 = scmp.gt.s32.totalorder %s158, 0
      %s160 = scalar_select %p159, %s158, 0
      %p161 = scmp.lt.s32.totalorder %s160, 0
      %s162 = scalar_select %p161, %s160, 0
      %s163 = ssub.s32 %s157, %s162
      %s164 = ssub.s32 %s24, %s38
      %s165 = sor.u32 %s163, %s164
      %p166 = scmp.eq.s32.totalorder %s165, 0
      %s168 = sadd.s32 %s167, 1
      %s169 = scalar_select %p166, %s167, %s168
      %p172 = pneg %p166
      %p173 = scmp.eq.s32.totalorder %s16, 3
      %p174 = por %p172, %p173
      %p175 = scmp.ne.s32.totalorder %s167, %s170
      %p176 = scmp.eq.s32.totalorder %s16, 0
      %p177 = por %p175, %p176
      %p178 = scmp.ne.s32.totalorder %s167, %s170
      %p179 = scmp.eq.s32.totalorder %s21, 3
      %p180 = por %p178, %p179
      %p181 = scmp.ne.s32.totalorder %s170, %s171
      %p182 = scmp.eq.s32.totalorder %s21, 0
      %p183 = por %p181, %p182
      %p184 = scmp.ne.s32.totalorder %s170, %s171
      %p185 = scmp.eq.s32.totalorder %s22, 3
      %p186 = por %p184, %p185
      %p188 = scmp.ne.s32.totalorder %s171, %s187
      %p189 = scmp.eq.s32.totalorder %s22, 0
      %p190 = por %p188, %p189
      %s191 = ssub.s32 %s24, %s38
      %p192 = scmp.eq.s32.totalorder %s191, 0
      %s194 = sadd.s32 %s193, 1
      %s195 = scalar_select %p192, %s193, %s194
      %p198 = pneg %p192
      %p199 = scmp.eq.s32.totalorder %s16, 3
      %p200 = por %p198, %p199
      %p201 = scmp.ne.s32.totalorder %s193, %s196
      %p202 = scmp.eq.s32.totalorder %s16, 0
      %p203 = por %p201, %p202
      %p204 = scmp.ne.s32.totalorder %s193, %s196
      %p205 = scmp.eq.s32.totalorder %s21, 3
      %p206 = por %p204, %p205
      %p207 = scmp.ne.s32.totalorder %s196, %s197
      %p208 = scmp.eq.s32.totalorder %s21, 0
      %p209 = por %p207, %p208
      %p210 = scmp.ne.s32.totalorder %s196, %s197
      %p211 = scmp.eq.s32.totalorder %s22, 3
      %p212 = por %p210, %p211
      %p214 = scmp.ne.s32.totalorder %s197, %s213
      %p215 = scmp.eq.s32.totalorder %s22, 0
      %p216 = por %p214, %p215
      %s217 = ssub.s32 %s23, %s42
      %s218 = ssub.s32 %s24, %s38
      %s219 = sor.u32 %s217, %s218
      %p220 = scmp.eq.s32.totalorder %s219, 0
      %s222 = sadd.s32 %s221, 1
      %s223 = scalar_select %p220, %s221, %s222
      %p226 = pneg %p220
      %p227 = scmp.eq.s32.totalorder %s16, 3
      %p228 = por %p226, %p227
      %p229 = scmp.ne.s32.totalorder %s221, %s224
      %p230 = scmp.eq.s32.totalorder %s16, 0
      %p231 = por %p229, %p230
      %p232 = scmp.ne.s32.totalorder %s221, %s224
      %p233 = scmp.eq.s32.totalorder %s21, 3
      %p234 = por %p232, %p233
      %p235 = scmp.ne.s32.totalorder %s224, %s225
      %p236 = scmp.eq.s32.totalorder %s21, 0
      %p237 = por %p235, %p236
      %p238 = scmp.ne.s32.totalorder %s224, %s225
      %p239 = scmp.eq.s32.totalorder %s22, 3
      %p240 = por %p238, %p239
      %p242 = scmp.ne.s32.totalorder %s225, %s241
      %p243 = scmp.eq.s32.totalorder %s22, 0
      %p244 = por %p242, %p243
      %s245 = ssub.s32 %s23, %s42
      %s246 = ssub.s32 %s24, %s38
      %s247 = sor.u32 %s245, %s246
      %p248 = scmp.eq.s32.totalorder %s247, 0
      %s250 = sadd.s32 %s249, 1
      %s251 = scalar_select %p248, %s249, %s250
      %p254 = pneg %p248
      %p255 = scmp.eq.s32.totalorder %s16, 3
      %p256 = por %p254, %p255
      %p257 = scmp.ne.s32.totalorder %s249, %s252
      %p258 = scmp.eq.s32.totalorder %s16, 0
      %p259 = por %p257, %p258
      %p260 = scmp.ne.s32.totalorder %s249, %s252
      %p261 = scmp.eq.s32.totalorder %s21, 3
      %p262 = por %p260, %p261
      %p263 = scmp.ne.s32.totalorder %s252, %s253
      %p264 = scmp.eq.s32.totalorder %s21, 0
      %p265 = por %p263, %p264
      %p266 = scmp.ne.s32.totalorder %s252, %s253
      %p267 = scmp.eq.s32.totalorder %s22, 3
      %p268 = por %p266, %p267
      %p270 = scmp.ne.s32.totalorder %s253, %s269
      %p271 = scmp.eq.s32.totalorder %s22, 0
      %p272 = por %p270, %p271
      %p273 = scmp.le.s32.totalorder 1, %s16
      %p274 = scmp.lt.s32.totalorder %s16, 5
      %p275 = pnand %p273, %p274
      %p276 = pneg %p275
      // Predicated region
      $region9: #{bottleneck_forward.5} parent=5 // pred_check
        _
      $region10: #{bottleneck_forward.5} parent=5 // pred_check_branch
        %278 = sbr.rel (%p275) target = $region12
      $region11: #{bottleneck_forward.5} parent=5 // pred_region
        %s279 = ssub.s32 %s16, 1
        // Predicated region
        $region13: #{bottleneck_forward.5} parent=11 // pred_check
          %p280 = pneg %p209
        $region14: #{bottleneck_forward.5} parent=11 // pred_check_branch
          %282 = sbr.rel (%p280) target = $region16
        $region15: #{bottleneck_forward.5} parent=11 // pred_region
          %p283 = scmp.lt.s32.totalorder %s27, 0
          %s284 = scalar_select %p283, %s27, 0
          %s285 = scalar_lea.vmem %s4, %s284
        $region16: #{bottleneck_forward.5} parent=11 // pred_fallthru
          _
      $region12: #{bottleneck_forward.5} parent=5 // pred_fallthru
        _
      %p286 = scmp.lt.s32.totalorder %s16, 4
      // Predicated region
      $region17: #{bottleneck_forward.5} parent=5 // pred_check
        %p287 = pneg %p286
      $region18: #{bottleneck_forward.5} parent=5 // pred_check_branch
        %289 = sbr.rel (%p287) target = $region20
      $region19: #{bottleneck_forward.5} parent=5 // pred_region
        // Predicated region
        $region21: #{bottleneck_forward.5} parent=19 // pred_check
          %p290 = pneg %p65
        $region22: #{bottleneck_forward.5} parent=19 // pred_check_branch
          %292 = sbr.rel (%p290) target = $region24
        $region23: #{bottleneck_forward.5} parent=19 // pred_region
          %p293 = scmp.gt.s32.totalorder %s25, 0
          %s294 = scalar_select %p293, %s25, 0
          %p295 = scmp.lt.s32.totalorder %s294, 0
          %s296 = scalar_select %p295, %s294, 0
          %s297 = smul.u32 8, %s23
          %p298 = scmp.lt.s32.totalorder %s297, 15
          %s299 = scalar_select %p298, %s297, 15
          %p300 = scmp.lt.s32.totalorder %s296, 0
          %s301 = scalar_select %p300, %s296, 0
          %s302 = sadd.s32 %s301, %s299
          %s303 = smul.addr %s302, 4
          %s304 = scalar_lea.vmem %s0, %s303
          %p305 = scmp.gt.s32.totalorder %s25, 0
          %s306 = scalar_select %p305, %s25, 0
          %p307 = scmp.lt.s32.totalorder %s306, 0
          %s308 = scalar_select %p307, %s306, 0
          %s309 = smul.u32 8, %s23
        $region24: #{bottleneck_forward.5} parent=19 // pred_fallthru
          _
        // Predicated region
        $region25: #{bottleneck_forward.5} parent=19 // pred_check
          %p310 = pneg %p101
        $region26: #{bottleneck_forward.5} parent=19 // pred_check_branch
          %312 = sbr.rel (%p310) target = $region28
        $region27: #{bottleneck_forward.5} parent=19 // pred_region
          %p313 = scmp.gt.s32.totalorder %s25, 0
          %s314 = scalar_select %p313, %s25, 0
          %p315 = scmp.lt.s32.totalorder %s314, 0
          %s316 = scalar_select %p315, %s314, 0
          %p317 = scmp.lt.s32.totalorder %s316, 0
          %s318 = scalar_select %p317, %s316, 0
          %p319 = scmp.lt.s32.totalorder %s24, 0
          %s320 = scalar_select %p319, %s24, 0
          %s321 = sadd.s32 %s320, %s318
          %s322 = smul.addr %s321, 4
          %s323 = scalar_lea.vmem %s1, %s322
          %p324 = scmp.gt.s32.totalorder %s25, 0
          %s325 = scalar_select %p324, %s25, 0
          %p326 = scmp.lt.s32.totalorder %s325, 0
          %s327 = scalar_select %p326, %s325, 0
        $region28: #{bottleneck_forward.5} parent=19 // pred_fallthru
          _
        // Predicated region
        $region29: #{bottleneck_forward.5} parent=19 // pred_check
          %p328 = pneg %p139
        $region30: #{bottleneck_forward.5} parent=19 // pred_check_branch
          %330 = sbr.rel (%p328) target = $region32
        $region31: #{bottleneck_forward.5} parent=19 // pred_region
          %s331 = ssub.s32 %s25, 1
          %p332 = scmp.gt.s32.totalorder %s331, 0
          %s333 = scalar_select %p332, %s331, 0
          %p334 = scmp.lt.s32.totalorder %s333, 0
          %s335 = scalar_select %p334, %s333, 0
          %s336 = smul.u32 8, %s23
          %p337 = scmp.lt.s32.totalorder %s336, 15
          %s338 = scalar_select %p337, %s336, 15
          %p339 = scmp.lt.s32.totalorder %s335, 0
          %s340 = scalar_select %p339, %s335, 0
          %s341 = sadd.s32 %s340, %s338
          %s342 = smul.addr %s341, 4
          %s343 = scalar_lea.vmem %s2, %s342
          %s344 = ssub.s32 %s25, 1
          %p345 = scmp.gt.s32.totalorder %s344, 0
          %s346 = scalar_select %p345, %s344, 0
          %p347 = scmp.lt.s32.totalorder %s346, 0
          %s348 = scalar_select %p347, %s346, 0
          %s349 = smul.u32 8, %s23
        $region32: #{bottleneck_forward.5} parent=19 // pred_fallthru
          _
        // Predicated region
        $region33: #{bottleneck_forward.5} parent=19 // pred_check
          %p350 = pneg %p177
        $region34: #{bottleneck_forward.5} parent=19 // pred_check_branch
          %352 = sbr.rel (%p350) target = $region36
        $region35: #{bottleneck_forward.5} parent=19 // pred_region
          %s353 = ssub.s32 %s25, 1
          %p354 = scmp.gt.s32.totalorder %s353, 0
          %s355 = scalar_select %p354, %s353, 0
          %p356 = scmp.lt.s32.totalorder %s355, 0
          %s357 = scalar_select %p356, %s355, 0
          %s358 = smul.u32 2, %s357
          %p359 = scmp.lt.s32.totalorder %s358, 1
          %s360 = scalar_select %p359, %s358, 1
          %p361 = scmp.lt.s32.totalorder %s24, 0
          %s362 = scalar_select %p361, %s24, 0
          %s363 = sadd.s32 %s362, %s360
          %s364 = smul.addr %s363, 4
          %s365 = scalar_lea.vmem %s3, %s364
          %s366 = ssub.s32 %s25, 1
          %p367 = scmp.gt.s32.totalorder %s366, 0
          %s368 = scalar_select %p367, %s366, 0
          %p369 = scmp.lt.s32.totalorder %s368, 0
          %s370 = scalar_select %p369, %s368, 0
          %s371 = smul.u32 2, %s370
        $region36: #{bottleneck_forward.5} parent=19 // pred_fallthru
          _
      $region20: #{bottleneck_forward.5} parent=5 // pred_fallthru
        _
      %p372 = scmp.le.s32.totalorder 1, %s16
      %p373 = scmp.lt.s32.totalorder %s16, 5
      %p374 = pnand %p372, %p373
      %p375 = pneg %p374
      // Predicated region
      $region37: #{bottleneck_forward.5} parent=5 // pred_check
        _
      $region38: #{bottleneck_forward.5} parent=5 // pred_check_branch
        %377 = sbr.rel (%p374) target = $region40
      $region39: #{bottleneck_forward.5} parent=5 // pred_region
        %s378 = ssub.s32 %s16, 1
        %p379 = scmp.gt.s32.totalorder %s28, 0
        %s380 = scalar_select %p379, %s28, 0
        %p381 = scmp.lt.s32.totalorder %s380, 0
        %s382 = scalar_select %p381, %s380, 0
        %s383 = smul.u32 8, %s26
        %p384 = scmp.lt.s32.totalorder %s383, 15
        %s385 = scalar_select %p384, %s383, 15
        %p386 = scmp.lt.s32.totalorder %s382, 0
        %s387 = scalar_select %p386, %s382, 0
        %s388 = sadd.s32 %s387, %s385
        %s389 = smul.addr %s388, 4
        %s390 = scalar_lea.vmem %s0, %s389
        %p391 = pneg %p71
        %p392 = pneg %p68
        %p393 = scmp.gt.s32.totalorder %s28, 0
        %s394 = scalar_select %p393, %s28, 0
        %p395 = scmp.lt.s32.totalorder %s394, 0
        %s396 = scalar_select %p395, %s394, 0
        %p397 = scmp.lt.s32.totalorder %s396, 0
        %s398 = scalar_select %p397, %s396, 0
        %p399 = scmp.lt.s32.totalorder %s27, 0
        %s400 = scalar_select %p399, %s27, 0
        %s401 = sadd.s32 %s400, %s398
        %s402 = smul.addr %s401, 4
        %s403 = scalar_lea.vmem %s1, %s402
        %p404 = pneg %p107
        %p405 = pneg %p104
        %s406 = ssub.s32 %s28, 1
        %p407 = scmp.gt.s32.totalorder %s406, 0
        %s408 = scalar_select %p407, %s406, 0
        %p409 = scmp.lt.s32.totalorder %s408, 0
        %s410 = scalar_select %p409, %s408, 0
        %s411 = smul.u32 8, %s26
        %p412 = scmp.lt.s32.totalorder %s411, 15
        %s413 = scalar_select %p412, %s411, 15
        %p414 = scmp.lt.s32.totalorder %s410, 0
        %s415 = scalar_select %p414, %s410, 0
        %s416 = sadd.s32 %s415, %s413
        %s417 = smul.addr %s416, 4
        %s418 = scalar_lea.vmem %s2, %s417
        %p419 = pneg %p145
        %p420 = pneg %p142
        %s421 = ssub.s32 %s28, 1
        %p422 = scmp.gt.s32.totalorder %s421, 0
        %s423 = scalar_select %p422, %s421, 0
        %p424 = scmp.lt.s32.totalorder %s423, 0
        %s425 = scalar_select %p424, %s423, 0
        %s426 = smul.u32 2, %s425
        %p427 = scmp.lt.s32.totalorder %s426, 1
        %s428 = scalar_select %p427, %s426, 1
        %p429 = scmp.lt.s32.totalorder %s27, 0
        %s430 = scalar_select %p429, %s27, 0
        %s431 = sadd.s32 %s430, %s428
        %s432 = smul.addr %s431, 4
        %s433 = scalar_lea.vmem %s3, %s432
        %p434 = pneg %p183
        %p435 = pneg %p180
        %p436 = scmp.lt.s32.totalorder %s27, 0
        %s437 = scalar_select %p436, %s27, 0
        %s438 = scalar_lea.vmem %s4, %s437
        %p439 = pneg %p209
        %p440 = pneg %p206
        %p441 = pneg %p237
        %p442 = pneg %p234
        %s443 = smul.u32 8, %s26
        %p444 = scmp.lt.s32.totalorder %s443, 15
        %s445 = scalar_select %p444, %s443, 15
        %p446 = scmp.lt.s32.totalorder %s27, 0
        %s447 = scalar_select %p446, %s27, 0
        %s448 = sadd.s32 %s447, %s445
        %s449 = smul.addr %s448, 4
        %s450 = scalar_lea.vmem %s5, %s449
        %p451 = pneg %p265
        %p452 = pneg %p262
        %s453 = sand.u32 %s252, 1
        %s454 = scalar_lea.sflag [#allocation4], %s453
        %s455 = sand.u32 %s252, 1
        %s456 = smul.addr %s455, 64
        %s457 = scalar_lea.vmem [#allocation3], %s456
        %p458 = scmp.gt.s32.totalorder %s28, 0
        %s459 = scalar_select %p458, %s28, 0
        %p460 = scmp.lt.s32.totalorder %s459, 0
        %s461 = scalar_select %p460, %s459, 0
        %s462 = smul.u32 8, %s26
        %p463 = scmp.lt.s32.totalorder %s462, 15
        %s464 = scalar_select %p463, %s462, 15
        %p465 = scmp.lt.s32.totalorder %s461, 0
        %s466 = scalar_select %p465, %s461, 0
        %s467 = sadd.s32 %s466, %s464
        %s468 = smul.addr %s467, 4
        %s469 = scalar_lea.vmem %s0, %s468
        %p470 = scmp.gt.s32.totalorder %s28, 0
        %s471 = scalar_select %p470, %s28, 0
        %p472 = scmp.lt.s32.totalorder %s471, 0
        %s473 = scalar_select %p472, %s471, 0
        %s474 = smul.u32 8, %s26
        %p475 = scmp.gt.s32.totalorder %s28, 0
        %s476 = scalar_select %p475, %s28, 0
        %p477 = scmp.lt.s32.totalorder %s476, 0
        %s478 = scalar_select %p477, %s476, 0
        %p479 = scmp.lt.s32.totalorder %s478, 0
        %s480 = scalar_select %p479, %s478, 0
        %p481 = scmp.lt.s32.totalorder %s27, 0
        %s482 = scalar_select %p481, %s27, 0
        %s483 = sadd.s32 %s482, %s480
        %s484 = smul.addr %s483, 4
        %s485 = scalar_lea.vmem %s1, %s484
        %p486 = scmp.gt.s32.totalorder %s28, 0
        %s487 = scalar_select %p486, %s28, 0
        %p488 = scmp.lt.s32.totalorder %s487, 0
        %s489 = scalar_select %p488, %s487, 0
        %s490 = ssub.s32 %s28, 1
        %p491 = scmp.gt.s32.totalorder %s490, 0
        %s492 = scalar_select %p491, %s490, 0
        %p493 = scmp.lt.s32.totalorder %s492, 0
        %s494 = scalar_select %p493, %s492, 0
        %s495 = smul.u32 8, %s26
        %p496 = scmp.lt.s32.totalorder %s495, 15
        %s497 = scalar_select %p496, %s495, 15
        %p498 = scmp.lt.s32.totalorder %s494, 0
        %s499 = scalar_select %p498, %s494, 0
        %s500 = sadd.s32 %s499, %s497
        %s501 = smul.addr %s500, 4
        %s502 = scalar_lea.vmem %s2, %s501
        %s503 = ssub.s32 %s28, 1
        %p504 = scmp.gt.s32.totalorder %s503, 0
        %s505 = scalar_select %p504, %s503, 0
        %p506 = scmp.lt.s32.totalorder %s505, 0
        %s507 = scalar_select %p506, %s505, 0
        %s508 = smul.u32 8, %s26
        %s509 = ssub.s32 %s28, 1
        %p510 = scmp.gt.s32.totalorder %s509, 0
        %s511 = scalar_select %p510, %s509, 0
        %p512 = scmp.lt.s32.totalorder %s511, 0
        %s513 = scalar_select %p512, %s511, 0
        %s514 = smul.u32 2, %s513
        %p515 = scmp.lt.s32.totalorder %s514, 1
        %s516 = scalar_select %p515, %s514, 1
        %p517 = scmp.lt.s32.totalorder %s27, 0
        %s518 = scalar_select %p517, %s27, 0
        %s519 = sadd.s32 %s518, %s516
        %s520 = smul.addr %s519, 4
        %s521 = scalar_lea.vmem %s3, %s520
        %s522 = ssub.s32 %s28, 1
        %p523 = scmp.gt.s32.totalorder %s522, 0
        %s524 = scalar_select %p523, %s522, 0
        %p525 = scmp.lt.s32.totalorder %s524, 0
        %s526 = scalar_select %p525, %s524, 0
        %s527 = smul.u32 2, %s526
        %p528 = scmp.lt.s32.totalorder %s27, 0
        %s529 = scalar_select %p528, %s27, 0
        %s530 = scalar_lea.vmem %s4, %s529
        %s531 = smul.u32 8, %s26
        %p532 = scmp.lt.s32.totalorder %s531, 15
        %s533 = scalar_select %p532, %s531, 15
        %p534 = scmp.lt.s32.totalorder %s27, 0
        %s535 = scalar_select %p534, %s27, 0
        %s536 = sadd.s32 %s535, %s533
        %s537 = smul.addr %s536, 4
        %s538 = scalar_lea.vmem %s5, %s537
        %s539 = smul.u32 8, %s26
        %s540 = smul.u32 8, %s26
        %p542 = scmp.eq.s32.totalorder %s28, 0
        // Predicated region
        $region41: #{bottleneck_forward.5} parent=39 // pred_check
          %p543 = pneg %p542
        $region42: #{bottleneck_forward.5} parent=39 // pred_check_branch
          %545 = sbr.rel (%p543) target = $region44
        $region43: #{bottleneck_forward.5} parent=39 // pred_region
          %v546 = vld [vmem:[%s530] sm:$0x1]
          %v548 = vperm.slane %v546, 0
          %550 = vst [vmem:[#allocation2] sm:$0xff] %v548
          %551 = vst [vmem:[#allocation2 + $0x8] sm:$0xff] %v548
          %552 = vst [vmem:[#allocation2 + $0x10] sm:$0xff] %v548
          %553 = vst [vmem:[#allocation2 + $0x18] sm:$0xff] %v548
          %554 = vst [vmem:[#allocation2 + $0x20] sm:$0xff] %v548
          %555 = vst [vmem:[#allocation2 + $0x28] sm:$0xff] %v548
          %556 = vst [vmem:[#allocation2 + $0x30] sm:$0xff] %v548
          %557 = vst [vmem:[#allocation2 + $0x38] sm:$0xff] %v548
        $region44: #{bottleneck_forward.5} parent=39 // pred_fallthru
          _
        %p558 = scmp.ge.s32.totalorder %s28, 0
        %p559 = scmp.lt.s32.totalorder %s28, 1
        %p560 = pnand %p558, %p559
        %p561 = pneg %p560
        // Predicated region
        $region45: #{bottleneck_forward.5} parent=39 // pred_check
          _
        $region46: #{bottleneck_forward.5} parent=39 // pred_check_branch
          %563 = sbr.rel (%p560) target = $region48
        $region47: #{bottleneck_forward.5} parent=39 // pred_region
          %v564 = vld [vmem:[#allocation2] sm:$0xff]
          %v565 = vld [vmem:[#allocation2 + $0x8] sm:$0xff]
          %v566 = vld [vmem:[#allocation2 + $0x10] sm:$0xff]
          %v567 = vld [vmem:[#allocation2 + $0x18] sm:$0xff]
          %v568 = vld [vmem:[#allocation2 + $0x20] sm:$0xff]
          %v569 = vld [vmem:[#allocation2 + $0x28] sm:$0xff]
          %v570 = vld [vmem:[#allocation2 + $0x30] sm:$0xff]
          %v571 = vld [vmem:[#allocation2 + $0x38] sm:$0xff]
          %v572 = vld [vmem:[%s469] sm:$0xf]
          %v573 = vld [vmem:[%s469 + $0x4] sm:$0xf]
          %v574 = vld [vmem:[%s469 + $0x8] sm:$0xf]
          %v575 = vld [vmem:[%s469 + $0xc] sm:$0xf]
          %v576 = vld [vmem:[%s469 + $0x10] sm:$0xf]
          %v577 = vld [vmem:[%s469 + $0x14] sm:$0xf]
          %v578 = vld [vmem:[%s469 + $0x18] sm:$0xf]
          %v579 = vld [vmem:[%s469 + $0x1c] sm:$0xf]
          %v580 = vld [vmem:[%s485] sm:$0xf]
          %v589 = vunpack.c.l.b16 %v572
          %v590 = vunpack.c.l.b16 %v573
          %v591 = vunpack.c.l.b16 %v574
          %v592 = vunpack.c.l.b16 %v575
          %v593 = vunpack.c.l.b16 %v576
          %v594 = vunpack.c.l.b16 %v577
          %v595 = vunpack.c.l.b16 %v578
          %v596 = vunpack.c.l.b16 %v579
          %v597 = vpack.c.b16 %v590, %v589
          %v598 = vpack.c.b16 %v592, %v591
          %v599 = vpack.c.b16 %v594, %v593
          %v600 = vpack.c.b16 %v596, %v595
          %vm601 = vcmask 64512
          %v603 = vsel %vm601, %v597, 0
          %v606 = vsel %vm601, %v598, 0
          %v609 = vsel %vm601, %v599, 0
          %v612 = vsel %vm601, %v600, 0
          %vm614 = vcmask 1043456
          %v616 = vsel %vm614, %v580, 0
          %618 = vmatpush.bf16.msra.mxu0 0
          %619 = vmatpush.bf16.msra.mxu0 0
          %620 = vmatpush.bf16.msra.mxu0 0
          %621 = vmatpush.bf16.msra.mxu0 0
          %622 = vmatpush.bf16.msra.mxu0 0
          %623 = vmatpush.bf16.msra.mxu0 0
          %624 = vmatpush.bf16.msra.mxu0 0
          %625 = vmatpush.bf16.msra.mxu0 %v616
          %626 = vmatmul.bf16.gmra.mxu0 %v603
          %v627 = vpop.f32.mrf.mxu0
          %v628 = vadd.f32 0.0, %v627
          %v629 = vpop.f32.mrf.mxu0
          %v630 = vadd.f32 0.0, %v629
          %631 = vmatmul.bf16.gmra.mxu0 %v606
          %v632 = vpop.f32.mrf.mxu0
          %v633 = vadd.f32 0.0, %v632
          %v634 = vpop.f32.mrf.mxu0
          %v635 = vadd.f32 0.0, %v634
          %636 = vmatmul.bf16.gmra.mxu0 %v609
          %v637 = vpop.f32.mrf.mxu0
          %v638 = vadd.f32 0.0, %v637
          %v639 = vpop.f32.mrf.mxu0
          %v640 = vadd.f32 0.0, %v639
          %641 = vmatmul.bf16.gmra.mxu0 %v612
          %v642 = vpop.f32.mrf.mxu0
          %v643 = vadd.f32 0.0, %v642
          %v644 = vpop.f32.mrf.mxu0
          %v645 = vadd.f32 0.0, %v644
          %646 = vdwg.mxu0
          %v647 = vadd.f32 %v564, %v628
          %v648 = vadd.f32 %v565, %v630
          %v649 = vadd.f32 %v566, %v633
          %v650 = vadd.f32 %v567, %v635
          %v651 = vadd.f32 %v568, %v638
          %v652 = vadd.f32 %v569, %v640
          %v653 = vadd.f32 %v570, %v643
          %v654 = vadd.f32 %v571, %v645
          %655 = vst [vmem:[#allocation2] sm:$0xff] %v647
          %656 = vst [vmem:[#allocation2 + $0x8] sm:$0xff] %v648
          %657 = vst [vmem:[#allocation2 + $0x10] sm:$0xff] %v649
          %658 = vst [vmem:[#allocation2 + $0x18] sm:$0xff] %v650
          %659 = vst [vmem:[#allocation2 + $0x20] sm:$0xff] %v651
          %660 = vst [vmem:[#allocation2 + $0x28] sm:$0xff] %v652
          %661 = vst [vmem:[#allocation2 + $0x30] sm:$0xff] %v653
          %662 = vst [vmem:[#allocation2 + $0x38] sm:$0xff] %v654
        $region48: #{bottleneck_forward.5} parent=39 // pred_fallthru
          _
        %p663 = scmp.ge.s32.totalorder %s28, 1
        %p664 = scmp.lt.s32.totalorder %s28, 2
        %p665 = pnand %p663, %p664
        %p666 = pneg %p665
        // Predicated region
        $region49: #{bottleneck_forward.5} parent=39 // pred_check
          _
        $region50: #{bottleneck_forward.5} parent=39 // pred_check_branch
          %668 = sbr.rel (%p665) target = $region52
        $region51: #{bottleneck_forward.5} parent=39 // pred_region
          %v669 = vld [vmem:[#allocation2] sm:$0xff]
          %v670 = vld [vmem:[#allocation2 + $0x8] sm:$0xff]
          %v671 = vld [vmem:[#allocation2 + $0x10] sm:$0xff]
          %v672 = vld [vmem:[#allocation2 + $0x18] sm:$0xff]
          %v673 = vld [vmem:[#allocation2 + $0x20] sm:$0xff]
          %v674 = vld [vmem:[#allocation2 + $0x28] sm:$0xff]
          %v675 = vld [vmem:[#allocation2 + $0x30] sm:$0xff]
          %v676 = vld [vmem:[#allocation2 + $0x38] sm:$0xff]
          %v677 = vld [vmem:[%s502] sm:$0xf]
          %v678 = vld [vmem:[%s502 + $0x4] sm:$0xf]
          %v679 = vld [vmem:[%s502 + $0x8] sm:$0xf]
          %v680 = vld [vmem:[%s502 + $0xc] sm:$0xf]
          %v681 = vld [vmem:[%s502 + $0x10] sm:$0xf]
          %v682 = vld [vmem:[%s502 + $0x14] sm:$0xf]
          %v683 = vld [vmem:[%s502 + $0x18] sm:$0xf]
          %v684 = vld [vmem:[%s502 + $0x1c] sm:$0xf]
          %v685 = vld [vmem:[%s521] sm:$0xf]
          %v686 = vld [vmem:[%s521 + $0x4] sm:$0xf]
          %v695 = vunpack.c.l.b16 %v677
          %v696 = vunpack.c.l.b16 %v678
          %v697 = vunpack.c.l.b16 %v679
          %v698 = vunpack.c.l.b16 %v680
          %v699 = vunpack.c.l.b16 %v681
          %v700 = vunpack.c.l.b16 %v682
          %v701 = vunpack.c.l.b16 %v683
          %v702 = vunpack.c.l.b16 %v684
          %v703 = vpack.c.b16 %v696, %v695
          %v704 = vpack.c.b16 %v698, %v697
          %v705 = vpack.c.b16 %v700, %v699
          %v706 = vpack.c.b16 %v702, %v701
          %v709 = vunpack.c.l.b16 %v685
          %v710 = vunpack.c.l.b16 %v686
          %v711 = vpack.c.b16 %v710, %v709
          %vm713 = vcmask 130048
          %v715 = vsel %vm713, %v703, 0
          %v718 = vsel %vm713, %v704, 0
          %v721 = vsel %vm713, %v705, 0
          %v724 = vsel %vm713, %v706, 0
          %726 = vmatpush.bf16.msra.mxu0 0
          %727 = vmatpush.bf16.msra.mxu0 0
          %728 = vmatpush.bf16.msra.mxu0 0
          %729 = vmatpush.bf16.msra.mxu0 0
          %730 = vmatpush.bf16.msra.mxu0 0
          %731 = vmatpush.bf16.msra.mxu0 0
          %732 = vmatpush.bf16.msra.mxu0 0
          %733 = vmatpush.bf16.msra.mxu0 %v711
          %734 = vmatmul.bf16.gmra.mxu0 %v715
          %v735 = vpop.f32.mrf.mxu0
          %v736 = vadd.f32 0.0, %v735
          %v737 = vpop.f32.mrf.mxu0
          %v738 = vadd.f32 0.0, %v737
          %739 = vmatmul.bf16.gmra.mxu0 %v718
          %v740 = vpop.f32.mrf.mxu0
          %v741 = vadd.f32 0.0, %v740
          %v742 = vpop.f32.mrf.mxu0
          %v743 = vadd.f32 0.0, %v742
          %744 = vmatmul.bf16.gmra.mxu0 %v721
          %v745 = vpop.f32.mrf.mxu0
          %v746 = vadd.f32 0.0, %v745
          %v747 = vpop.f32.mrf.mxu0
          %v748 = vadd.f32 0.0, %v747
          %749 = vmatmul.bf16.gmra.mxu0 %v724
          %v750 = vpop.f32.mrf.mxu0
          %v751 = vadd.f32 0.0, %v750
          %v752 = vpop.f32.mrf.mxu0
          %v753 = vadd.f32 0.0, %v752
          %754 = vdwg.mxu0
          %v755 = vadd.f32 %v669, %v736
          %v756 = vadd.f32 %v670, %v738
          %v757 = vadd.f32 %v671, %v741
          %v758 = vadd.f32 %v672, %v743
          %v759 = vadd.f32 %v673, %v746
          %v760 = vadd.f32 %v674, %v748
          %v761 = vadd.f32 %v675, %v751
          %v762 = vadd.f32 %v676, %v753
          %763 = vst [vmem:[#allocation2] sm:$0xff] %v755
          %764 = vst [vmem:[#allocation2 + $0x8] sm:$0xff] %v756
          %765 = vst [vmem:[#allocation2 + $0x10] sm:$0xff] %v757
          %766 = vst [vmem:[#allocation2 + $0x18] sm:$0xff] %v758
          %767 = vst [vmem:[#allocation2 + $0x20] sm:$0xff] %v759
          %768 = vst [vmem:[#allocation2 + $0x28] sm:$0xff] %v760
          %769 = vst [vmem:[#allocation2 + $0x30] sm:$0xff] %v761
          %770 = vst [vmem:[#allocation2 + $0x38] sm:$0xff] %v762
        $region52: #{bottleneck_forward.5} parent=39 // pred_fallthru
          _
        %p771 = scmp.eq.s32.totalorder %s28, 1
        // Predicated region
        $region53: #{bottleneck_forward.5} parent=39 // pred_check
          %p772 = pneg %p771
        $region54: #{bottleneck_forward.5} parent=39 // pred_check_branch
          %774 = sbr.rel (%p772) target = $region56
        $region55: #{bottleneck_forward.5} parent=39 // pred_region
          %v775 = vld [vmem:[#allocation2] sm:$0xff]
          %v776 = vld [vmem:[#allocation2 + $0x8] sm:$0xff]
          %v777 = vld [vmem:[#allocation2 + $0x10] sm:$0xff]
          %v778 = vld [vmem:[#allocation2 + $0x18] sm:$0xff]
          %v779 = vld [vmem:[#allocation2 + $0x20] sm:$0xff]
          %v780 = vld [vmem:[#allocation2 + $0x28] sm:$0xff]
          %v781 = vld [vmem:[#allocation2 + $0x30] sm:$0xff]
          %v782 = vld [vmem:[#allocation2 + $0x38] sm:$0xff]
          %783 = vst [vmem:[%s457] sm:$0xff] %v775
          %784 = vst [vmem:[%s457 + $0x8] sm:$0xff] %v776
          %785 = vst [vmem:[%s457 + $0x10] sm:$0xff] %v777
          %786 = vst [vmem:[%s457 + $0x18] sm:$0xff] %v778
          %787 = vst [vmem:[%s457 + $0x20] sm:$0xff] %v779
          %788 = vst [vmem:[%s457 + $0x28] sm:$0xff] %v780
          %789 = vst [vmem:[%s457 + $0x30] sm:$0xff] %v781
          %790 = vst [vmem:[%s457 + $0x38] sm:$0xff] %v782
          %v791 = vmax.f32 %v775, 0.0
          %v792 = vmax.f32 %v776, 0.0
          %v793 = vmax.f32 %v777, 0.0
          %v794 = vmax.f32 %v778, 0.0
          %v795 = vmax.f32 %v779, 0.0
          %v796 = vmax.f32 %v780, 0.0
          %v797 = vmax.f32 %v781, 0.0
          %v798 = vmax.f32 %v782, 0.0
          %v799 = vpack.c.bf16 %v791, %v791
          %v800 = vpack.c.bf16 %v792, %v792
          %v801 = vpack.c.bf16 %v793, %v793
          %v802 = vpack.c.bf16 %v794, %v794
          %v803 = vpack.c.bf16 %v795, %v795
          %v804 = vpack.c.bf16 %v796, %v796
          %v805 = vpack.c.bf16 %v797, %v797
          %v806 = vpack.c.bf16 %v798, %v798
          %807 = vst [vmem:[%s538] sm:$0xf] %v799
          %808 = vst [vmem:[%s538 + $0x4] sm:$0xf] %v800
          %809 = vst [vmem:[%s538 + $0x8] sm:$0xf] %v801
          %810 = vst [vmem:[%s538 + $0xc] sm:$0xf] %v802
          %811 = vst [vmem:[%s538 + $0x10] sm:$0xf] %v803
          %812 = vst [vmem:[%s538 + $0x14] sm:$0xf] %v804
          %813 = vst [vmem:[%s538 + $0x18] sm:$0xf] %v805
          %814 = vst [vmem:[%s538 + $0x1c] sm:$0xf] %v806
        $region56: #{bottleneck_forward.5} parent=39 // pred_fallthru
          _
        %s815 = smul.u32 8, %s26
        %p816 = scmp.lt.s32.totalorder %s815, 15
        %s817 = scalar_select %p816, %s815, 15
        %p818 = scmp.lt.s32.totalorder %s27, 0
        %s819 = scalar_select %p818, %s27, 0
        %s820 = sadd.s32 %s819, %s817
        %s821 = smul.addr %s820, 4
        %s822 = scalar_lea.vmem %s5, %s821
        %s823 = sand.u32 %s252, 1
        %s824 = scalar_lea.sflag [#allocation4], %s823
        %s825 = sand.u32 %s252, 1
        %s826 = smul.addr %s825, 64
        %s827 = scalar_lea.vmem [#allocation3], %s826
        // Predicated region
        $region57: #{bottleneck_forward.5} parent=39 // pred_check
          %p828 = pneg %p234
        $region58: #{bottleneck_forward.5} parent=39 // pred_check_branch
          %830 = sbr.rel (%p828) target = $region60
        $region59: #{bottleneck_forward.5} parent=39 // pred_region
          %s831 = smul.u32 8, %s26
        $region60: #{bottleneck_forward.5} parent=39 // pred_fallthru
          _
        // Predicated region
        $region61: #{bottleneck_forward.5} parent=39 // pred_check
          %p832 = pneg %p262
        $region62: #{bottleneck_forward.5} parent=39 // pred_check_branch
          %834 = sbr.rel (%p832) target = $region64
        $region63: #{bottleneck_forward.5} parent=39 // pred_region
          %s835 = smul.u32 8, %s26
          %837 = vsyncadd %s824, 0
          %s838 = sadd.s32 %s27, %s835
          %s839 = smul.addr %s838, 8
          %s840 = scalar_lea.hbm %s6, %s839
          %s841 = sshll.u32 %s827, 4
          %s842 = int_to_ptr.vmem [resolvable:$true] %s841
          %s843 = sshll.u32 %s840, 4
          %s844 = int_to_ptr.hbm [resolvable:$true] %s843
          %849 = dma.vmem_to_hbm [thread:$0]  %s842, 1024, %s844, %s824, 128, 128, 8
        $region64: #{bottleneck_forward.5} parent=39 // pred_fallthru
          _
      $region40: #{bottleneck_forward.5} parent=5 // pred_fallthru
        _
      %p850 = scmp.le.s32.totalorder 2, %s16
      // Predicated region
      $region65: #{bottleneck_forward.5} parent=5 // pred_check
        %p851 = pneg %p850
      $region66: #{bottleneck_forward.5} parent=5 // pred_check_branch
        %853 = sbr.rel (%p851) target = $region68
      $region67: #{bottleneck_forward.5} parent=5 // pred_region
        %s854 = ssub.s32 %s16, 2
        // Predicated region
        $region69: #{bottleneck_forward.5} parent=67 // pred_check
          %p855 = pneg %p240
        $region70: #{bottleneck_forward.5} parent=67 // pred_check_branch
          %857 = sbr.rel (%p855) target = $region72
        $region71: #{bottleneck_forward.5} parent=67 // pred_region
          %s858 = smul.u32 8, %s29
          %p859 = scmp.lt.s32.totalorder %s858, 15
          %s860 = scalar_select %p859, %s858, 15
          %p861 = scmp.lt.s32.totalorder %s30, 0
          %s862 = scalar_select %p861, %s30, 0
          %s863 = sadd.s32 %s862, %s860
          %s864 = smul.addr %s863, 4
          %s865 = scalar_lea.vmem %s5, %s864
        $region72: #{bottleneck_forward.5} parent=67 // pred_fallthru
          _
        // Predicated region
        $region73: #{bottleneck_forward.5} parent=67 // pred_check
          %p866 = pneg %p268
        $region74: #{bottleneck_forward.5} parent=67 // pred_check_branch
          %868 = sbr.rel (%p866) target = $region76
        $region75: #{bottleneck_forward.5} parent=67 // pred_region
          %s869 = sand.u32 %s253, 1
          %s870 = scalar_lea.sflag [#allocation4], %s869
          %s871 = sand.u32 %s253, 1
          %s872 = smul.addr %s871, 64
          %s873 = scalar_lea.vmem [#allocation3], %s872
          %875 = dma.done %s870, 1024
        $region76: #{bottleneck_forward.5} parent=67 // pred_fallthru
          _
      $region68: #{bottleneck_forward.5} parent=5 // pred_fallthru
        _
    $region6: #{bottleneck_forward.5} parent=1 // loop_footer
      %s20 = sadd.s32 1, %s16
    $region7: #{bottleneck_forward.5} parent=1 // loop_footer_branch
      %15 = sbr.rel target = $region3
    $region8: #{bottleneck_forward.5} parent=1 // loop_exit
      _
    %876 = vsyncpa [#allocation4], 1
    %s877 = scalar_lea.sflag [#allocation4], 1
    %878 = vsyncpa %s877, 1

// kernel: bottleneck_forward.4
$region0: #{bottleneck_forward.4}
  #allocation0 [shape = 'u32[]', space=smem, size = 0x4, offset = 0x4, fixed_abs, tag = 'smem constant byte address 0x4 - core index']
  #allocation1 [shape = 'u32[72,128]{1,0:T(1,128)}', space=vmem, size = 0x9000, scoped, tag = 'internal scratch']
  #allocation2 [shape = 'f32[80,128]{1,0:T(8,128)}', space=vmem, size = 0xa000, scoped, tag = 'scratch operand']
  %s0 = inlined_call_operand.vmem [shape: bf16[2,110,8], index: 0, kind: input, shape index: {}]
  %s1 = inlined_call_operand.vmem [shape: bf16[9,8,128], index: 1, kind: input, shape index: {}]
  %s2 = inlined_call_operand.vmem [shape: f32[1,128], index: 2, kind: input, shape index: {}]
  %s3 = inlined_call_operand.vmem [shape: bf16[2,80,128], index: 3, kind: output, shape index: {}]
  %s4 = sld [smem:[#allocation0]]
  $region45: #{bottleneck_forward.4} parent=0
    _
  %s6 = ssub.s32 1, %s4
  %s7 = scalar_select 0, %s6, %s4
  loop: start=0, step=1, limit=4
  $region2: #{bottleneck_forward.4} parent=0 // loop_pre_header
    _
  $region3: #{bottleneck_forward.4} parent=0 // loop_header
    %s9 = sphi 0, %s13
    %p10 = scmp.ge.s32.totalorder %s9, 4
    %s16 = sphi 0, %s28
    %s17 = sphi 0, %s24
    %s18 = sphi 0, %s16
    %s19 = sphi 0, %s17
    %s20 = sphi 0, %s18
    %s21 = sphi 0, %s19
    %s31 = sphi 0, %s33
    %s34 = sphi 0, %s31
    %s35 = sphi 0, %s34
    %s51 = sphi 0, %s35
    %s57 = sphi 0, %s59
    %s60 = sphi 0, %s57
    %s61 = sphi 0, %s60
    %s77 = sphi 0, %s61
    %s83 = sphi 0, %s85
    %s86 = sphi 0, %s83
    %s87 = sphi 0, %s86
    %s103 = sphi 0, %s87
    %s111 = sphi 0, %s113
    %s114 = sphi 0, %s111
    %s115 = sphi 0, %s114
    %s131 = sphi 0, %s115
  $region4: #{bottleneck_forward.4} parent=0 // loop_header_branch
    %12 = sbr.rel (%p10) target = $region8
  $region5: #{bottleneck_forward.4} parent=0 // loop_body
    %s14 = ssub.s32 %s9, 1
    %s15 = ssub.s32 %s9, 2
    %s22 = sadd.s32 1, %s17
    %p23 = scmp.ge.s32.totalorder %s22, 1
    %s24 = scalar_select %p23, 0, %s22
    %s25 = sadd.s32 1, %s16
    %s26 = scalar_select %p23, %s25, %s16
    %p27 = scmp.ge.s32.totalorder %s26, 2
    %s28 = scalar_select %p27, 0, %s26
    %s29 = ssub.s32 %s16, %s28
    %p30 = scmp.eq.s32.totalorder %s29, 0
    %s32 = sadd.s32 %s31, 1
    %s33 = scalar_select %p30, %s31, %s32
    %p36 = pneg %p30
    %p37 = scmp.eq.s32.totalorder %s9, 1
    %p38 = por %p36, %p37
    %p39 = scmp.ne.s32.totalorder %s31, %s34
    %p40 = scmp.eq.s32.totalorder %s9, 0
    %p41 = por %p39, %p40
    %p42 = scmp.ne.s32.totalorder %s31, %s34
    %p43 = scmp.eq.s32.totalorder %s14, 1
    %p44 = por %p42, %p43
    %p45 = scmp.ne.s32.totalorder %s34, %s35
    %p46 = scmp.eq.s32.totalorder %s14, 0
    %p47 = por %p45, %p46
    %p48 = scmp.ne.s32.totalorder %s34, %s35
    %p49 = scmp.eq.s32.totalorder %s15, 1
    %p50 = por %p48, %p49
    %p52 = scmp.ne.s32.totalorder %s35, %s51
    %p53 = scmp.eq.s32.totalorder %s15, 0
    %p54 = por %p52, %p53
    %s55 = ssub.s32 %s17, %s24
    %p56 = scmp.eq.s32.totalorder %s55, 0
    %s58 = sadd.s32 %s57, 1
    %s59 = scalar_select %p56, %s57, %s58
    %p62 = pneg %p56
    %p63 = scmp.eq.s32.totalorder %s9, 1
    %p64 = por %p62, %p63
    %p65 = scmp.ne.s32.totalorder %s57, %s60
    %p66 = scmp.eq.s32.totalorder %s9, 0
    %p67 = por %p65, %p66
    %p68 = scmp.ne.s32.totalorder %s57, %s60
    %p69 = scmp.eq.s32.totalorder %s14, 1
    %p70 = por %p68, %p69
    %p71 = scmp.ne.s32.totalorder %s60, %s61
    %p72 = scmp.eq.s32.totalorder %s14, 0
    %p73 = por %p71, %p72
    %p74 = scmp.ne.s32.totalorder %s60, %s61
    %p75 = scmp.eq.s32.totalorder %s15, 1
    %p76 = por %p74, %p75
    %p78 = scmp.ne.s32.totalorder %s61, %s77
    %p79 = scmp.eq.s32.totalorder %s15, 0
    %p80 = por %p78, %p79
    %s81 = ssub.s32 %s17, %s24
    %p82 = scmp.eq.s32.totalorder %s81, 0
    %s84 = sadd.s32 %s83, 1
    %s85 = scalar_select %p82, %s83, %s84
    %p88 = pneg %p82
    %p89 = scmp.eq.s32.totalorder %s9, 1
    %p90 = por %p88, %p89
    %p91 = scmp.ne.s32.totalorder %s83, %s86
    %p92 = scmp.eq.s32.totalorder %s9, 0
    %p93 = por %p91, %p92
    %p94 = scmp.ne.s32.totalorder %s83, %s86
    %p95 = scmp.eq.s32.totalorder %s14, 1
    %p96 = por %p94, %p95
    %p97 = scmp.ne.s32.totalorder %s86, %s87
    %p98 = scmp.eq.s32.totalorder %s14, 0
    %p99 = por %p97, %p98
    %p100 = scmp.ne.s32.totalorder %s86, %s87
    %p101 = scmp.eq.s32.totalorder %s15, 1
    %p102 = por %p100, %p101
    %p104 = scmp.ne.s32.totalorder %s87, %s103
    %p105 = scmp.eq.s32.totalorder %s15, 0
    %p106 = por %p104, %p105
    %s107 = ssub.s32 %s16, %s28
    %s108 = ssub.s32 %s17, %s24
    %s109 = sor.u32 %s107, %s108
    %p110 = scmp.eq.s32.totalorder %s109, 0
    %s112 = sadd.s32 %s111, 1
    %s113 = scalar_select %p110, %s111, %s112
    %p116 = pneg %p110
    %p117 = scmp.eq.s32.totalorder %s9, 1
    %p118 = por %p116, %p117
    %p119 = scmp.ne.s32.totalorder %s111, %s114
    %p120 = scmp.eq.s32.totalorder %s9, 0
    %p121 = por %p119, %p120
    %p122 = scmp.ne.s32.totalorder %s111, %s114
    %p123 = scmp.eq.s32.totalorder %s14, 1
    %p124 = por %p122, %p123
    %p125 = scmp.ne.s32.totalorder %s114, %s115
    %p126 = scmp.eq.s32.totalorder %s14, 0
    %p127 = por %p125, %p126
    %p128 = scmp.ne.s32.totalorder %s114, %s115
    %p129 = scmp.eq.s32.totalorder %s15, 1
    %p130 = por %p128, %p129
    %p132 = scmp.ne.s32.totalorder %s115, %s131
    %p133 = scmp.eq.s32.totalorder %s15, 0
    %p134 = por %p132, %p133
    %p135 = scmp.le.s32.totalorder 1, %s9
    %p136 = scmp.lt.s32.totalorder %s9, 3
    %p137 = pnand %p135, %p136
    %p138 = pneg %p137
    // Predicated region
    $region9: #{bottleneck_forward.4} parent=5 // pred_check
      _
    $region10: #{bottleneck_forward.4} parent=5 // pred_check_branch
      %140 = sbr.rel (%p137) target = $region12
    $region11: #{bottleneck_forward.4} parent=5 // pred_region
      %s141 = ssub.s32 %s9, 1
      // Predicated region
      $region13: #{bottleneck_forward.4} parent=11 // pred_check
        %p142 = pneg %p73
      $region14: #{bottleneck_forward.4} parent=11 // pred_check_branch
        %144 = sbr.rel (%p142) target = $region16
      $region15: #{bottleneck_forward.4} parent=11 // pred_region
        %p145 = scmp.lt.s32.totalorder %s19, 0
        %s146 = scalar_select %p145, %s19, 0
        %s147 = smul.addr %s146, 4
        %s148 = scalar_lea.vmem %s1, %s147
      $region16: #{bottleneck_forward.4} parent=11 // pred_fallthru
        _
      // Predicated region
      $region17: #{bottleneck_forward.4} parent=11 // pred_check
        %p149 = pneg %p99
      $region18: #{bottleneck_forward.4} parent=11 // pred_check_branch
        %151 = sbr.rel (%p149) target = $region20
      $region19: #{bottleneck_forward.4} parent=11 // pred_region
        %p152 = scmp.lt.s32.totalorder %s19, 0
        %s153 = scalar_select %p152, %s19, 0
        %s154 = scalar_lea.vmem %s2, %s153
      $region20: #{bottleneck_forward.4} parent=11 // pred_fallthru
        _
    $region12: #{bottleneck_forward.4} parent=5 // pred_fallthru
      _
    %p155 = scmp.lt.s32.totalorder %s9, 2
    // Predicated region
    $region21: #{bottleneck_forward.4} parent=5 // pred_check
      %p156 = pneg %p155
    $region22: #{bottleneck_forward.4} parent=5 // pred_check_branch
      %158 = sbr.rel (%p156) target = $region24
    $region23: #{bottleneck_forward.4} parent=5 // pred_region
      // Predicated region
      $region25: #{bottleneck_forward.4} parent=23 // pred_check
        %p159 = pneg %p41
      $region26: #{bottleneck_forward.4} parent=23 // pred_check_branch
        %161 = sbr.rel (%p159) target = $region28
      $region27: #{bottleneck_forward.4} parent=23 // pred_region
        %p162 = scmp.lt.s32.totalorder %s16, 1
        %s163 = scalar_select %p162, %s16, 1
        %s164 = smul.addr %s163, 14
        %s165 = smul.addr %s164, 4
        %s166 = scalar_lea.vmem %s0, %s165
      $region28: #{bottleneck_forward.4} parent=23 // pred_fallthru
        _
    $region24: #{bottleneck_forward.4} parent=5 // pred_fallthru
      _
    %p167 = scmp.le.s32.totalorder 1, %s9
    %p168 = scmp.lt.s32.totalorder %s9, 3
    %p169 = pnand %p167, %p168
    %p170 = pneg %p169
    // Predicated region
    $region29: #{bottleneck_forward.4} parent=5 // pred_check
      _
    $region30: #{bottleneck_forward.4} parent=5 // pred_check_branch
      %172 = sbr.rel (%p169) target = $region32
    $region31: #{bottleneck_forward.4} parent=5 // pred_region
      %s173 = ssub.s32 %s9, 1
      %p174 = scmp.lt.s32.totalorder %s18, 1
      %s175 = scalar_select %p174, %s18, 1
      %s176 = smul.addr %s175, 14
      %s177 = smul.addr %s176, 4
      %s178 = scalar_lea.vmem %s0, %s177
      %p179 = pneg %p47
      %p180 = pneg %p44
      %p181 = scmp.lt.s32.totalorder %s19, 0
      %s182 = scalar_select %p181, %s19, 0
      %s183 = smul.addr %s182, 4
      %s184 = scalar_lea.vmem %s1, %s183
      %p185 = pneg %p73
      %p186 = pneg %p70
      %p187 = scmp.lt.s32.totalorder %s19, 0
      %s188 = scalar_select %p187, %s19, 0
      %s189 = scalar_lea.vmem %s2, %s188
      %p190 = pneg %p99
      %p191 = pneg %p96
      %p192 = pneg %p127
      %p193 = pneg %p124
      %p194 = scmp.lt.s32.totalorder %s18, 1
      %s195 = scalar_select %p194, %s18, 1
      %p196 = scmp.lt.s32.totalorder %s19, 0
      %s197 = scalar_select %p196, %s19, 0
      %s198 = smul.addr %s195, 10
      %s199 = sadd.s32 %s197, %s198
      %s200 = smul.addr %s199, 4
      %s201 = scalar_lea.vmem %s3, %s200
      %p202 = scmp.lt.s32.totalorder %s18, 1
      %s203 = scalar_select %p202, %s18, 1
      %s204 = smul.addr %s203, 14
      %s205 = smul.addr %s204, 4
      %s206 = scalar_lea.vmem %s0, %s205
      %p207 = scmp.lt.s32.totalorder %s19, 0
      %s208 = scalar_select %p207, %s19, 0
      %s209 = smul.addr %s208, 4
      %s210 = scalar_lea.vmem %s1, %s209
      %p211 = scmp.lt.s32.totalorder %s19, 0
      %s212 = scalar_select %p211, %s19, 0
      %s213 = scalar_lea.vmem %s2, %s212
      %p214 = scmp.lt.s32.totalorder %s18, 1
      %s215 = scalar_select %p214, %s18, 1
      %p216 = scmp.lt.s32.totalorder %s19, 0
      %s217 = scalar_select %p216, %s19, 0
      %s218 = smul.addr %s215, 10
      %s219 = sadd.s32 %s217, %s218
      %s220 = smul.addr %s219, 4
      %s221 = scalar_lea.vmem %s3, %s220
      %v223 = vld [vmem:[%s213] sm:$0x1]
      %v225 = vperm.slane %v223, 0
      %227 = vst [vmem:[#allocation2] sm:$0xff] %v225
      %228 = vst [vmem:[#allocation2 + $0x8] sm:$0xff] %v225
      %229 = vst [vmem:[#allocation2 + $0x10] sm:$0xff] %v225
      %230 = vst [vmem:[#allocation2 + $0x18] sm:$0xff] %v225
      %231 = vst [vmem:[#allocation2 + $0x20] sm:$0xff] %v225
      %232 = vst [vmem:[#allocation2 + $0x28] sm:$0xff] %v225
      %233 = vst [vmem:[#allocation2 + $0x30] sm:$0xff] %v225
      %234 = vst [vmem:[#allocation2 + $0x38] sm:$0xff] %v225
      %235 = vst [vmem:[#allocation2 + $0x40] sm:$0xff] %v225
      %236 = vst [vmem:[#allocation2 + $0x48] sm:$0xff] %v225
      %v237 = vld [vmem:[#allocation2] sm:$0xff]
      %v238 = vld [vmem:[#allocation2 + $0x8] sm:$0xff]
      %v239 = vld [vmem:[#allocation2 + $0x10] sm:$0xff]
      %v240 = vld [vmem:[#allocation2 + $0x18] sm:$0xff]
      %v241 = vld [vmem:[#allocation2 + $0x20] sm:$0xff]
      %v242 = vld [vmem:[#allocation2 + $0x28] sm:$0xff]
      %v243 = vld [vmem:[#allocation2 + $0x30] sm:$0xff]
      %v244 = vld [vmem:[#allocation2 + $0x38] sm:$0xff]
      %v245 = vld [vmem:[#allocation2 + $0x40] sm:$0xff]
      %v246 = vld [vmem:[#allocation2 + $0x48] sm:$0xff]
      %v247 = vld [vmem:[%s206] sm:$0xf]
      %v248 = vld [vmem:[%s206 + $0x4] sm:$0xf]
      %v249 = vld [vmem:[%s206 + $0x8] sm:$0xf]
      %v250 = vld [vmem:[%s206 + $0xc] sm:$0xf]
      %v251 = vld [vmem:[%s206 + $0x10] sm:$0xf]
      %v252 = vld [vmem:[%s206 + $0x14] sm:$0xf]
      %v253 = vld [vmem:[%s206 + $0x18] sm:$0xf]
      %v254 = vld [vmem:[%s206 + $0x1c] sm:$0xf]
      %v255 = vld [vmem:[%s206 + $0x20] sm:$0xf]
      %v256 = vld [vmem:[%s206 + $0x24] sm:$0xf]
      %v257 = vld [vmem:[%s210] sm:$0xf]
      %v268 = vunpack.c.l.b16 %v247
      %v269 = vunpack.c.l.b16 %v248
      %v270 = vunpack.c.l.b16 %v249
      %v271 = vunpack.c.l.b16 %v250
      %v272 = vunpack.c.l.b16 %v251
      %v273 = vunpack.c.l.b16 %v252
      %v274 = vunpack.c.l.b16 %v253
      %v275 = vunpack.c.l.b16 %v254
      %v276 = vunpack.c.l.b16 %v255
      %v277 = vunpack.c.l.b16 %v256
      %v278 = vpack.c.b16 %v269, %v268
      %v279 = vpack.c.b16 %v271, %v270
      %v280 = vpack.c.b16 %v273, %v272
      %v281 = vpack.c.b16 %v275, %v274
      %v282 = vpack.c.b16 %v277, %v276
      %vm283 = vcmask 64512
      %v285 = vsel %vm283, %v278, 0
      %v288 = vsel %vm283, %v279, 0
      %v291 = vsel %vm283, %v280, 0
      %v294 = vsel %vm283, %v281, 0
      %v297 = vsel %vm283, %v282, 0
      %vm299 = vcmask 1043456
      %v301 = vsel %vm299, %v257, 0
      %303 = vmatpush.bf16.msra.mxu0 0
      %304 = vmatpush.bf16.msra.mxu0 0
      %305 = vmatpush.bf16.msra.mxu0 0
      %306 = vmatpush.bf16.msra.mxu0 0
      %307 = vmatpush.bf16.msra.mxu0 0
      %308 = vmatpush.bf16.msra.mxu0 0
      %309 = vmatpush.bf16.msra.mxu0 0
      %310 = vmatpush.bf16.msra.mxu0 %v301
      %311 = vmatmul.bf16.gmra.mxu0 %v285
      %v312 = vpop.f32.mrf.mxu0
      %v313 = vadd.f32 0.0, %v312
      %v314 = vpop.f32.mrf.mxu0
      %v315 = vadd.f32 0.0, %v314
      %316 = vmatmul.bf16.gmra.mxu0 %v288
      %v317 = vpop.f32.mrf.mxu0
      %v318 = vadd.f32 0.0, %v317
      %v319 = vpop.f32.mrf.mxu0
      %v320 = vadd.f32 0.0, %v319
      %321 = vmatmul.bf16.gmra.mxu0 %v291
      %v322 = vpop.f32.mrf.mxu0
      %v323 = vadd.f32 0.0, %v322
      %v324 = vpop.f32.mrf.mxu0
      %v325 = vadd.f32 0.0, %v324
      %326 = vmatmul.bf16.gmra.mxu0 %v294
      %v327 = vpop.f32.mrf.mxu0
      %v328 = vadd.f32 0.0, %v327
      %v329 = vpop.f32.mrf.mxu0
      %v330 = vadd.f32 0.0, %v329
      %331 = vmatmul.bf16.gmra.mxu0 %v297
      %v332 = vpop.f32.mrf.mxu0
      %v333 = vadd.f32 0.0, %v332
      %v334 = vpop.f32.mrf.mxu0
      %v335 = vadd.f32 0.0, %v334
      %336 = vdwg.mxu0
      %v337 = vadd.f32 %v237, %v313
      %v338 = vadd.f32 %v238, %v315
      %v339 = vadd.f32 %v239, %v318
      %v340 = vadd.f32 %v240, %v320
      %v341 = vadd.f32 %v241, %v323
      %v342 = vadd.f32 %v242, %v325
      %v343 = vadd.f32 %v243, %v328
      %v344 = vadd.f32 %v244, %v330
      %v345 = vadd.f32 %v245, %v333
      %v346 = vadd.f32 %v246, %v335
      %347 = vst [vmem:[#allocation2] sm:$0xff] %v337
      %348 = vst [vmem:[#allocation2 + $0x8] sm:$0xff] %v338
      %349 = vst [vmem:[#allocation2 + $0x10] sm:$0xff] %v339
      %350 = vst [vmem:[#allocation2 + $0x18] sm:$0xff] %v340
      %351 = vst [vmem:[#allocation2 + $0x20] sm:$0xff] %v341
      %352 = vst [vmem:[#allocation2 + $0x28] sm:$0xff] %v342
      %353 = vst [vmem:[#allocation2 + $0x30] sm:$0xff] %v343
      %354 = vst [vmem:[#allocation2 + $0x38] sm:$0xff] %v344
      %355 = vst [vmem:[#allocation2 + $0x40] sm:$0xff] %v345
      %356 = vst [vmem:[#allocation2 + $0x48] sm:$0xff] %v346
      %v357 = vld [vmem:[#allocation2] sm:$0xff]
      %v358 = vld [vmem:[#allocation2 + $0x8] sm:$0xff]
      %v359 = vld [vmem:[#allocation2 + $0x10] sm:$0xff]
      %v360 = vld [vmem:[#allocation2 + $0x18] sm:$0xff]
      %v361 = vld [vmem:[#allocation2 + $0x20] sm:$0xff]
      %v362 = vld [vmem:[#allocation2 + $0x28] sm:$0xff]
      %v363 = vld [vmem:[#allocation2 + $0x30] sm:$0xff]
      %v364 = vld [vmem:[#allocation2 + $0x38] sm:$0xff]
      %v365 = vld [vmem:[#allocation2 + $0x40] sm:$0xff]
      %v366 = vld [vmem:[#allocation2 + $0x48] sm:$0xff]
      %v367 = vld [vmem:[%s206] sm:$0xf]
      %v368 = vld [vmem:[%s206 + $0x4] sm:$0xf]
      %v369 = vld [vmem:[%s206 + $0x8] sm:$0xf]
      %v370 = vld [vmem:[%s206 + $0xc] sm:$0xf]
      %v371 = vld [vmem:[%s206 + $0x10] sm:$0xf]
      %v372 = vld [vmem:[%s206 + $0x14] sm:$0xf]
      %v373 = vld [vmem:[%s206 + $0x18] sm:$0xf]
      %v374 = vld [vmem:[%s206 + $0x1c] sm:$0xf]
      %v375 = vld [vmem:[%s206 + $0x20] sm:$0xf]
      %v376 = vld [vmem:[%s206 + $0x24] sm:$0xf]
      %v377 = vld [vmem:[%s206 + $0x28] sm:$0x1]
      %s378 = scalar_lea.vmem %s210, 4
      %v379 = vld [vmem:[%s378] sm:$0xf]
      %v391 = vunpack.c.l.b16 %v367
      %v392 = vunpack.c.l.b16 %v368
      %v393 = vunpack.c.l.b16 %v369
      %v394 = vunpack.c.l.b16 %v370
      %v395 = vunpack.c.l.b16 %v371
      %v396 = vunpack.c.l.b16 %v372
      %v397 = vunpack.c.l.b16 %v373
      %v398 = vunpack.c.l.b16 %v374
      %v399 = vunpack.c.l.b16 %v375
      %v400 = vunpack.c.l.b16 %v376
      %v401 = vunpack.c.l.b16 %v377
      %v402 = vpack.c.b16 %v392, %v391
      %v403 = vpack.c.b16 %v394, %v393
      %v404 = vpack.c.b16 %v396, %v395
      %v405 = vpack.c.b16 %v398, %v397
      %v406 = vpack.c.b16 %v400, %v399
      %v407 = vpack.c.b16 %v401, %v401
      %vm408 = vsmask.f32 7424
      %v410 = vshrl.u32 %v402, 16
      %v412 = vshll.u32 %v402, 16
      %v414 = vrot.slane %v412, 1
      %v415 = vor.u32 %v410, %v414
      %v417 = vshll.u32 %v403, 16
      %v419 = vrot.slane %v417, 1
      %v420 = vsel %vm408, %v415, %v419
      %v421 = vshrl.u32 %v403, 16
      %v423 = vor.u32 %v421, %v419
      %v425 = vshll.u32 %v404, 16
      %v427 = vrot.slane %v425, 1
      %v428 = vsel %vm408, %v423, %v427
      %v429 = vshrl.u32 %v404, 16
      %v431 = vor.u32 %v429, %v427
      %v433 = vshll.u32 %v405, 16
      %v435 = vrot.slane %v433, 1
      %v436 = vsel %vm408, %v431, %v435
      %v437 = vshrl.u32 %v405, 16
      %v439 = vor.u32 %v437, %v435
      %v441 = vshll.u32 %v406, 16
      %v443 = vrot.slane %v441, 1
      %v444 = vsel %vm408, %v439, %v443
      %v445 = vshrl.u32 %v406, 16
      %v447 = vor.u32 %v445, %v443
      %v449 = vshll.u32 %v407, 16
      %v451 = vrot.slane %v449, 1
      %v452 = vsel %vm408, %v447, %v451
      %v454 = vsel %vm283, %v420, 0
      %v457 = vsel %vm283, %v428, 0
      %v460 = vsel %vm283, %v436, 0
      %v463 = vsel %vm283, %v444, 0
      %v466 = vsel %vm283, %v452, 0
      %v469 = vsel %vm299, %v379, 0
      %471 = vmatpush.bf16.msra.mxu0 0
      %472 = vmatpush.bf16.msra.mxu0 0
      %473 = vmatpush.bf16.msra.mxu0 0
      %474 = vmatpush.bf16.msra.mxu0 0
      %475 = vmatpush.bf16.msra.mxu0 0
      %476 = vmatpush.bf16.msra.mxu0 0
      %477 = vmatpush.bf16.msra.mxu0 0
      %478 = vmatpush.bf16.msra.mxu0 %v469
      %479 = vmatmul.bf16.gmra.mxu0 %v454
      %v480 = vpop.f32.mrf.mxu0
      %v481 = vadd.f32 0.0, %v480
      %v482 = vpop.f32.mrf.mxu0
      %v483 = vadd.f32 0.0, %v482
      %484 = vmatmul.bf16.gmra.mxu0 %v457
      %v485 = vpop.f32.mrf.mxu0
      %v486 = vadd.f32 0.0, %v485
      %v487 = vpop.f32.mrf.mxu0
      %v488 = vadd.f32 0.0, %v487
      %489 = vmatmul.bf16.gmra.mxu0 %v460
      %v490 = vpop.f32.mrf.mxu0
      %v491 = vadd.f32 0.0, %v490
      %v492 = vpop.f32.mrf.mxu0
      %v493 = vadd.f32 0.0, %v492
      %494 = vmatmul.bf16.gmra.mxu0 %v463
      %v495 = vpop.f32.mrf.mxu0
      %v496 = vadd.f32 0.0, %v495
      %v497 = vpop.f32.mrf.mxu0
      %v498 = vadd.f32 0.0, %v497
      %499 = vmatmul.bf16.gmra.mxu0 %v466
      %v500 = vpop.f32.mrf.mxu0
      %v501 = vadd.f32 0.0, %v500
      %v502 = vpop.f32.mrf.mxu0
      %v503 = vadd.f32 0.0, %v502
      %504 = vdwg.mxu0
      %v505 = vadd.f32 %v357, %v481
      %v506 = vadd.f32 %v358, %v483
      %v507 = vadd.f32 %v359, %v486
      %v508 = vadd.f32 %v360, %v488
      %v509 = vadd.f32 %v361, %v491
      %v510 = vadd.f32 %v362, %v493
      %v511 = vadd.f32 %v363, %v496
      %v512 = vadd.f32 %v364, %v498
      %v513 = vadd.f32 %v365, %v501
      %v514 = vadd.f32 %v366, %v503
      %515 = vst [vmem:[#allocation2] sm:$0xff] %v505
      %516 = vst [vmem:[#allocation2 + $0x8] sm:$0xff] %v506
      %517 = vst [vmem:[#allocation2 + $0x10] sm:$0xff] %v507
      %518 = vst [vmem:[#allocation2 + $0x18] sm:$0xff] %v508
      %519 = vst [vmem:[#allocation2 + $0x20] sm:$0xff] %v509
      %520 = vst [vmem:[#allocation2 + $0x28] sm:$0xff] %v510
      %521 = vst [vmem:[#allocation2 + $0x30] sm:$0xff] %v511
      %522 = vst [vmem:[#allocation2 + $0x38] sm:$0xff] %v512
      %523 = vst [vmem:[#allocation2 + $0x40] sm:$0xff] %v513
      %524 = vst [vmem:[#allocation2 + $0x48] sm:$0xff] %v514
      %v525 = vld [vmem:[#allocation2] sm:$0xff]
      %v526 = vld [vmem:[#allocation2 + $0x8] sm:$0xff]
      %v527 = vld [vmem:[#allocation2 + $0x10] sm:$0xff]
      %v528 = vld [vmem:[#allocation2 + $0x18] sm:$0xff]
      %v529 = vld [vmem:[#allocation2 + $0x20] sm:$0xff]
      %v530 = vld [vmem:[#allocation2 + $0x28] sm:$0xff]
      %v531 = vld [vmem:[#allocation2 + $0x30] sm:$0xff]
      %v532 = vld [vmem:[#allocation2 + $0x38] sm:$0xff]
      %v533 = vld [vmem:[#allocation2 + $0x40] sm:$0xff]
      %v534 = vld [vmem:[#allocation2 + $0x48] sm:$0xff]
      %v535 = vld [vmem:[%s206] sm:$0xe]
      %v536 = vld [vmem:[%s206 + $0x4] sm:$0xf]
      %v537 = vld [vmem:[%s206 + $0x8] sm:$0xf]
      %v538 = vld [vmem:[%s206 + $0xc] sm:$0xf]
      %v539 = vld [vmem:[%s206 + $0x10] sm:$0xf]
      %v540 = vld [vmem:[%s206 + $0x14] sm:$0xf]
      %v541 = vld [vmem:[%s206 + $0x18] sm:$0xf]
      %v542 = vld [vmem:[%s206 + $0x1c] sm:$0xf]
      %v543 = vld [vmem:[%s206 + $0x20] sm:$0xf]
      %v544 = vld [vmem:[%s206 + $0x24] sm:$0xf]
      %v545 = vld [vmem:[%s206 + $0x28] sm:$0x1]
      %s546 = scalar_lea.vmem %s210, 8
      %v547 = vld [vmem:[%s546] sm:$0xf]
      %v559 = vunpack.c.l.b16 %v535
      %v560 = vunpack.c.l.b16 %v536
      %v561 = vunpack.c.l.b16 %v537
      %v562 = vunpack.c.l.b16 %v538
      %v563 = vunpack.c.l.b16 %v539
      %v564 = vunpack.c.l.b16 %v540
      %v565 = vunpack.c.l.b16 %v541
      %v566 = vunpack.c.l.b16 %v542
      %v567 = vunpack.c.l.b16 %v543
      %v568 = vunpack.c.l.b16 %v544
      %v569 = vunpack.c.l.b16 %v545
      %v570 = vpack.c.b16 %v560, %v559
      %v571 = vpack.c.b16 %v562, %v561
      %v572 = vpack.c.b16 %v564, %v563
      %v573 = vpack.c.b16 %v566, %v565
      %v574 = vpack.c.b16 %v568, %v567
      %v575 = vpack.c.b16 %v569, %v569
      %vm576 = vcmask 1046528
      %v577 = vrot.slane %v570, 1
      %v578 = vrot.slane %v571, 1
      %v579 = vsel %vm576, %v577, %v578
      %v580 = vrot.slane %v572, 1
      %v581 = vsel %vm576, %v578, %v580
      %v582 = vrot.slane %v573, 1
      %v583 = vsel %vm576, %v580, %v582
      %v584 = vrot.slane %v574, 1
      %v585 = vsel %vm576, %v582, %v584
      %v586 = vrot.slane %v575, 1
      %v587 = vsel %vm576, %v584, %v586
      %v589 = vsel %vm283, %v579, 0
      %v592 = vsel %vm283, %v581, 0
      %v595 = vsel %vm283, %v583, 0
      %v598 = vsel %vm283, %v585, 0
      %v601 = vsel %vm283, %v587, 0
      %v604 = vsel %vm299, %v547, 0
      %606 = vmatpush.bf16.msra.mxu0 0
      %607 = vmatpush.bf16.msra.mxu0 0
      %608 = vmatpush.bf16.msra.mxu0 0
      %609 = vmatpush.bf16.msra.mxu0 0
      %610 = vmatpush.bf16.msra.mxu0 0
      %611 = vmatpush.bf16.msra.mxu0 0
      %612 = vmatpush.bf16.msra.mxu0 0
      %613 = vmatpush.bf16.msra.mxu0 %v604
      %614 = vmatmul.bf16.gmra.mxu0 %v589
      %v615 = vpop.f32.mrf.mxu0
      %v616 = vadd.f32 0.0, %v615
      %v617 = vpop.f32.mrf.mxu0
      %v618 = vadd.f32 0.0, %v617
      %619 = vmatmul.bf16.gmra.mxu0 %v592
      %v620 = vpop.f32.mrf.mxu0
      %v621 = vadd.f32 0.0, %v620
      %v622 = vpop.f32.mrf.mxu0
      %v623 = vadd.f32 0.0, %v622
      %624 = vmatmul.bf16.gmra.mxu0 %v595
      %v625 = vpop.f32.mrf.mxu0
      %v626 = vadd.f32 0.0, %v625
      %v627 = vpop.f32.mrf.mxu0
      %v628 = vadd.f32 0.0, %v627
      %629 = vmatmul.bf16.gmra.mxu0 %v598
      %v630 = vpop.f32.mrf.mxu0
      %v631 = vadd.f32 0.0, %v630
      %v632 = vpop.f32.mrf.mxu0
      %v633 = vadd.f32 0.0, %v632
      %634 = vmatmul.bf16.gmra.mxu0 %v601
      %v635 = vpop.f32.mrf.mxu0
      %v636 = vadd.f32 0.0, %v635
      %v637 = vpop.f32.mrf.mxu0
      %v638 = vadd.f32 0.0, %v637
      %639 = vdwg.mxu0
      %v640 = vadd.f32 %v525, %v616
      %v641 = vadd.f32 %v526, %v618
      %v642 = vadd.f32 %v527, %v621
      %v643 = vadd.f32 %v528, %v623
      %v644 = vadd.f32 %v529, %v626
      %v645 = vadd.f32 %v530, %v628
      %v646 = vadd.f32 %v531, %v631
      %v647 = vadd.f32 %v532, %v633
      %v648 = vadd.f32 %v533, %v636
      %v649 = vadd.f32 %v534, %v638
      %650 = vst [vmem:[#allocation2] sm:$0xff] %v640
      %651 = vst [vmem:[#allocation2 + $0x8] sm:$0xff] %v641
      %652 = vst [vmem:[#allocation2 + $0x10] sm:$0xff] %v642
      %653 = vst [vmem:[#allocation2 + $0x18] sm:$0xff] %v643
      %654 = vst [vmem:[#allocation2 + $0x20] sm:$0xff] %v644
      %655 = vst [vmem:[#allocation2 + $0x28] sm:$0xff] %v645
      %656 = vst [vmem:[#allocation2 + $0x30] sm:$0xff] %v646
      %657 = vst [vmem:[#allocation2 + $0x38] sm:$0xff] %v647
      %658 = vst [vmem:[#allocation2 + $0x40] sm:$0xff] %v648
      %659 = vst [vmem:[#allocation2 + $0x48] sm:$0xff] %v649
      %v660 = vld [vmem:[#allocation2] sm:$0xff]
      %v661 = vld [vmem:[#allocation2 + $0x8] sm:$0xff]
      %v662 = vld [vmem:[#allocation2 + $0x10] sm:$0xff]
      %v663 = vld [vmem:[#allocation2 + $0x18] sm:$0xff]
      %v664 = vld [vmem:[#allocation2 + $0x20] sm:$0xff]
      %v665 = vld [vmem:[#allocation2 + $0x28] sm:$0xff]
      %v666 = vld [vmem:[#allocation2 + $0x30] sm:$0xff]
      %v667 = vld [vmem:[#allocation2 + $0x38] sm:$0xff]
      %v668 = vld [vmem:[#allocation2 + $0x40] sm:$0xff]
      %v669 = vld [vmem:[#allocation2 + $0x48] sm:$0xff]
      %v670 = vld [vmem:[%s206 + $0x4] sm:$0xe]
      %v671 = vld [vmem:[%s206 + $0x8] sm:$0xf]
      %v672 = vld [vmem:[%s206 + $0xc] sm:$0xf]
      %v673 = vld [vmem:[%s206 + $0x10] sm:$0xf]
      %v674 = vld [vmem:[%s206 + $0x14] sm:$0xf]
      %v675 = vld [vmem:[%s206 + $0x18] sm:$0xf]
      %v676 = vld [vmem:[%s206 + $0x1c] sm:$0xf]
      %v677 = vld [vmem:[%s206 + $0x20] sm:$0xf]
      %v678 = vld [vmem:[%s206 + $0x24] sm:$0xf]
      %v679 = vld [vmem:[%s206 + $0x28] sm:$0xf]
      %v680 = vld [vmem:[%s206 + $0x2c] sm:$0x1]
      %s681 = scalar_lea.vmem %s210, 12
      %v682 = vld [vmem:[%s681] sm:$0xf]
      %v694 = vunpack.c.l.b16 %v670
      %v695 = vunpack.c.l.b16 %v671
      %v696 = vunpack.c.l.b16 %v672
      %v697 = vunpack.c.l.b16 %v673
      %v698 = vunpack.c.l.b16 %v674
      %v699 = vunpack.c.l.b16 %v675
      %v700 = vunpack.c.l.b16 %v676
      %v701 = vunpack.c.l.b16 %v677
      %v702 = vunpack.c.l.b16 %v678
      %v703 = vunpack.c.l.b16 %v679
      %v704 = vunpack.c.l.b16 %v680
      %v705 = vpack.c.b16 %v695, %v694
      %v706 = vpack.c.b16 %v697, %v696
      %v707 = vpack.c.b16 %v699, %v698
      %v708 = vpack.c.b16 %v701, %v700
      %v709 = vpack.c.b16 %v703, %v702
      %v710 = vpack.c.b16 %v704, %v704
      %v711 = vrot.slane %v705, 1
      %v712 = vrot.slane %v706, 1
      %v713 = vsel %vm576, %v711, %v712
      %v714 = vrot.slane %v707, 1
      %v715 = vsel %vm576, %v712, %v714
      %v716 = vrot.slane %v708, 1
      %v717 = vsel %vm576, %v714, %v716
      %v718 = vrot.slane %v709, 1
      %v719 = vsel %vm576, %v716, %v718
      %v720 = vrot.slane %v710, 1
      %v721 = vsel %vm576, %v718, %v720
      %v723 = vsel %vm283, %v713, 0
      %v726 = vsel %vm283, %v715, 0
      %v729 = vsel %vm283, %v717, 0
      %v732 = vsel %vm283, %v719, 0
      %v735 = vsel %vm283, %v721, 0
      %v738 = vsel %vm299, %v682, 0
      %740 = vmatpush.bf16.msra.mxu0 0
      %741 = vmatpush.bf16.msra.mxu0 0
      %742 = vmatpush.bf16.msra.mxu0 0
      %743 = vmatpush.bf16.msra.mxu0 0
      %744 = vmatpush.bf16.msra.mxu0 0
      %745 = vmatpush.bf16.msra.mxu0 0
      %746 = vmatpush.bf16.msra.mxu0 0
      %747 = vmatpush.bf16.msra.mxu0 %v738
      %748 = vmatmul.bf16.gmra.mxu0 %v723
      %v749 = vpop.f32.mrf.mxu0
      %v750 = vadd.f32 0.0, %v749
      %v751 = vpop.f32.mrf.mxu0
      %v752 = vadd.f32 0.0, %v751
      %753 = vmatmul.bf16.gmra.mxu0 %v726
      %v754 = vpop.f32.mrf.mxu0
      %v755 = vadd.f32 0.0, %v754
      %v756 = vpop.f32.mrf.mxu0
      %v757 = vadd.f32 0.0, %v756
      %758 = vmatmul.bf16.gmra.mxu0 %v729
      %v759 = vpop.f32.mrf.mxu0
      %v760 = vadd.f32 0.0, %v759
      %v761 = vpop.f32.mrf.mxu0
      %v762 = vadd.f32 0.0, %v761
      %763 = vmatmul.bf16.gmra.mxu0 %v732
      %v764 = vpop.f32.mrf.mxu0
      %v765 = vadd.f32 0.0, %v764
      %v766 = vpop.f32.mrf.mxu0
      %v767 = vadd.f32 0.0, %v766
      %768 = vmatmul.bf16.gmra.mxu0 %v735
      %v769 = vpop.f32.mrf.mxu0
      %v770 = vadd.f32 0.0, %v769
      %v771 = vpop.f32.mrf.mxu0
      %v772 = vadd.f32 0.0, %v771
      %773 = vdwg.mxu0
      %v774 = vadd.f32 %v660, %v750
      %v775 = vadd.f32 %v661, %v752
      %v776 = vadd.f32 %v662, %v755
      %v777 = vadd.f32 %v663, %v757
      %v778 = vadd.f32 %v664, %v760
      %v779 = vadd.f32 %v665, %v762
      %v780 = vadd.f32 %v666, %v765
      %v781 = vadd.f32 %v667, %v767
      %v782 = vadd.f32 %v668, %v770
      %v783 = vadd.f32 %v669, %v772
      %784 = vst [vmem:[#allocation2] sm:$0xff] %v774
      %785 = vst [vmem:[#allocation2 + $0x8] sm:$0xff] %v775
      %786 = vst [vmem:[#allocation2 + $0x10] sm:$0xff] %v776
      %787 = vst [vmem:[#allocation2 + $0x18] sm:$0xff] %v777
      %788 = vst [vmem:[#allocation2 + $0x20] sm:$0xff] %v778
      %789 = vst [vmem:[#allocation2 + $0x28] sm:$0xff] %v779
      %790 = vst [vmem:[#allocation2 + $0x30] sm:$0xff] %v780
      %791 = vst [vmem:[#allocation2 + $0x38] sm:$0xff] %v781
      %792 = vst [vmem:[#allocation2 + $0x40] sm:$0xff] %v782
      %793 = vst [vmem:[#allocation2 + $0x48] sm:$0xff] %v783
      %v794 = vld [vmem:[#allocation2] sm:$0xff]
      %v795 = vld [vmem:[#allocation2 + $0x8] sm:$0xff]
      %v796 = vld [vmem:[#allocation2 + $0x10] sm:$0xff]
      %v797 = vld [vmem:[#allocation2 + $0x18] sm:$0xff]
      %v798 = vld [vmem:[#allocation2 + $0x20] sm:$0xff]
      %v799 = vld [vmem:[#allocation2 + $0x28] sm:$0xff]
      %v800 = vld [vmem:[#allocation2 + $0x30] sm:$0xff]
      %v801 = vld [vmem:[#allocation2 + $0x38] sm:$0xff]
      %v802 = vld [vmem:[#allocation2 + $0x40] sm:$0xff]
      %v803 = vld [vmem:[#allocation2 + $0x48] sm:$0xff]
      %v804 = vld [vmem:[%s206 + $0x4] sm:$0xe]
      %v805 = vld [vmem:[%s206 + $0x8] sm:$0xf]
      %v806 = vld [vmem:[%s206 + $0xc] sm:$0xf]
      %v807 = vld [vmem:[%s206 + $0x10] sm:$0xf]
      %v808 = vld [vmem:[%s206 + $0x14] sm:$0xf]
      %v809 = vld [vmem:[%s206 + $0x18] sm:$0xf]
      %v810 = vld [vmem:[%s206 + $0x1c] sm:$0xf]
      %v811 = vld [vmem:[%s206 + $0x20] sm:$0xf]
      %v812 = vld [vmem:[%s206 + $0x24] sm:$0xf]
      %v813 = vld [vmem:[%s206 + $0x28] sm:$0xf]
      %v814 = vld [vmem:[%s206 + $0x2c] sm:$0x3]
      %s815 = scalar_lea.vmem %s210, 16
      %v816 = vld [vmem:[%s815] sm:$0xf]
      %v828 = vunpack.c.l.b16 %v804
      %v829 = vunpack.c.l.b16 %v805
      %v830 = vunpack.c.l.b16 %v806
      %v831 = vunpack.c.l.b16 %v807
      %v832 = vunpack.c.l.b16 %v808
      %v833 = vunpack.c.l.b16 %v809
      %v834 = vunpack.c.l.b16 %v810
      %v835 = vunpack.c.l.b16 %v811
      %v836 = vunpack.c.l.b16 %v812
      %v837 = vunpack.c.l.b16 %v813
      %v838 = vunpack.c.l.b16 %v814
      %v839 = vpack.c.b16 %v829, %v828
      %v840 = vpack.c.b16 %v831, %v830
      %v841 = vpack.c.b16 %v833, %v832
      %v842 = vpack.c.b16 %v835, %v834
      %v843 = vpack.c.b16 %v837, %v836
      %v844 = vpack.c.b16 %v838, %v838
      %vm845 = vsmask.f32 6400
      %v847 = vshrl.u32 %v839, 16
      %v849 = vrot.slane %v847, 1
      %v850 = vshll.u32 %v839, 16
      %v852 = vrot.slane %v850, 2
      %v853 = vor.u32 %v849, %v852
      %v855 = vshrl.u32 %v840, 16
      %v857 = vrot.slane %v855, 1
      %v858 = vshll.u32 %v840, 16
      %v860 = vrot.slane %v858, 2
      %v861 = vor.u32 %v857, %v860
      %v862 = vsel %vm845, %v853, %v861
      %v864 = vshrl.u32 %v841, 16
      %v866 = vrot.slane %v864, 1
      %v867 = vshll.u32 %v841, 16
      %v869 = vrot.slane %v867, 2
      %v870 = vor.u32 %v866, %v869
      %v871 = vsel %vm845, %v861, %v870
      %v873 = vshrl.u32 %v842, 16
      %v875 = vrot.slane %v873, 1
      %v876 = vshll.u32 %v842, 16
      %v878 = vrot.slane %v876, 2
      %v879 = vor.u32 %v875, %v878
      %v880 = vsel %vm845, %v870, %v879
      %v882 = vshrl.u32 %v843, 16
      %v884 = vrot.slane %v882, 1
      %v885 = vshll.u32 %v843, 16
      %v887 = vrot.slane %v885, 2
      %v888 = vor.u32 %v884, %v887
      %v889 = vsel %vm845, %v879, %v888
      %v891 = vshrl.u32 %v844, 16
      %v893 = vrot.slane %v891, 1
      %v894 = vshll.u32 %v844, 16
      %v896 = vrot.slane %v894, 2
      %v897 = vor.u32 %v893, %v896
      %v898 = vsel %vm845, %v888, %v897
      %v900 = vsel %vm283, %v862, 0
      %v903 = vsel %vm283, %v871, 0
      %v906 = vsel %vm283, %v880, 0
      %v909 = vsel %vm283, %v889, 0
      %v912 = vsel %vm283, %v898, 0
      %v915 = vsel %vm299, %v816, 0
      %917 = vmatpush.bf16.msra.mxu0 0
      %918 = vmatpush.bf16.msra.mxu0 0
      %919 = vmatpush.bf16.msra.mxu0 0
      %920 = vmatpush.bf16.msra.mxu0 0
      %921 = vmatpush.bf16.msra.mxu0 0
      %922 = vmatpush.bf16.msra.mxu0 0
      %923 = vmatpush.bf16.msra.mxu0 0
      %924 = vmatpush.bf16.msra.mxu0 %v915
      %925 = vmatmul.bf16.gmra.mxu0 %v900
      %v926 = vpop.f32.mrf.mxu0
      %v927 = vadd.f32 0.0, %v926
      %v928 = vpop.f32.mrf.mxu0
      %v929 = vadd.f32 0.0, %v928
      %930 = vmatmul.bf16.gmra.mxu0 %v903
      %v931 = vpop.f32.mrf.mxu0
      %v932 = vadd.f32 0.0, %v931
      %v933 = vpop.f32.mrf.mxu0
      %v934 = vadd.f32 0.0, %v933
      %935 = vmatmul.bf16.gmra.mxu0 %v906
      %v936 = vpop.f32.mrf.mxu0
      %v937 = vadd.f32 0.0, %v936
      %v938 = vpop.f32.mrf.mxu0
      %v939 = vadd.f32 0.0, %v938
      %940 = vmatmul.bf16.gmra.mxu0 %v909
      %v941 = vpop.f32.mrf.mxu0
      %v942 = vadd.f32 0.0, %v941
      %v943 = vpop.f32.mrf.mxu0
      %v944 = vadd.f32 0.0, %v943
      %945 = vmatmul.bf16.gmra.mxu0 %v912
      %v946 = vpop.f32.mrf.mxu0
      %v947 = vadd.f32 0.0, %v946
      %v948 = vpop.f32.mrf.mxu0
      %v949 = vadd.f32 0.0, %v948
      %950 = vdwg.mxu0
      %v951 = vadd.f32 %v794, %v927
      %v952 = vadd.f32 %v795, %v929
      %v953 = vadd.f32 %v796, %v932
      %v954 = vadd.f32 %v797, %v934
      %v955 = vadd.f32 %v798, %v937
      %v956 = vadd.f32 %v799, %v939
      %v957 = vadd.f32 %v800, %v942
      %v958 = vadd.f32 %v801, %v944
      %v959 = vadd.f32 %v802, %v947
      %v960 = vadd.f32 %v803, %v949
      %961 = vst [vmem:[#allocation2] sm:$0xff] %v951
      %962 = vst [vmem:[#allocation2 + $0x8] sm:$0xff] %v952
      %963 = vst [vmem:[#allocation2 + $0x10] sm:$0xff] %v953
      %964 = vst [vmem:[#allocation2 + $0x18] sm:$0xff] %v954
      %965 = vst [vmem:[#allocation2 + $0x20] sm:$0xff] %v955
      %966 = vst [vmem:[#allocation2 + $0x28] sm:$0xff] %v956
      %967 = vst [vmem:[#allocation2 + $0x30] sm:$0xff] %v957
      %968 = vst [vmem:[#allocation2 + $0x38] sm:$0xff] %v958
      %969 = vst [vmem:[#allocation2 + $0x40] sm:$0xff] %v959
      %970 = vst [vmem:[#allocation2 + $0x48] sm:$0xff] %v960
      %v971 = vld [vmem:[#allocation2] sm:$0xff]
      %v972 = vld [vmem:[#allocation2 + $0x8] sm:$0xff]
      %v973 = vld [vmem:[#allocation2 + $0x10] sm:$0xff]
      %v974 = vld [vmem:[#allocation2 + $0x18] sm:$0xff]
      %v975 = vld [vmem:[#allocation2 + $0x20] sm:$0xff]
      %v976 = vld [vmem:[#allocation2 + $0x28] sm:$0xff]
      %v977 = vld [vmem:[#allocation2 + $0x30] sm:$0xff]
      %v978 = vld [vmem:[#allocation2 + $0x38] sm:$0xff]
      %v979 = vld [vmem:[#allocation2 + $0x40] sm:$0xff]
      %v980 = vld [vmem:[#allocation2 + $0x48] sm:$0xff]
      %v981 = vld [vmem:[%s206 + $0x4] sm:$0xc]
      %v982 = vld [vmem:[%s206 + $0x8] sm:$0xf]
      %v983 = vld [vmem:[%s206 + $0xc] sm:$0xf]
      %v984 = vld [vmem:[%s206 + $0x10] sm:$0xf]
      %v985 = vld [vmem:[%s206 + $0x14] sm:$0xf]
      %v986 = vld [vmem:[%s206 + $0x18] sm:$0xf]
      %v987 = vld [vmem:[%s206 + $0x1c] sm:$0xf]
      %v988 = vld [vmem:[%s206 + $0x20] sm:$0xf]
      %v989 = vld [vmem:[%s206 + $0x24] sm:$0xf]
      %v990 = vld [vmem:[%s206 + $0x28] sm:$0xf]
      %v991 = vld [vmem:[%s206 + $0x2c] sm:$0x3]
      %s992 = scalar_lea.vmem %s210, 20
      %v993 = vld [vmem:[%s992] sm:$0xf]
      %v1005 = vunpack.c.l.b16 %v981
      %v1006 = vunpack.c.l.b16 %v982
      %v1007 = vunpack.c.l.b16 %v983
      %v1008 = vunpack.c.l.b16 %v984
      %v1009 = vunpack.c.l.b16 %v985
      %v1010 = vunpack.c.l.b16 %v986
      %v1011 = vunpack.c.l.b16 %v987
      %v1012 = vunpack.c.l.b16 %v988
      %v1013 = vunpack.c.l.b16 %v989
      %v1014 = vunpack.c.l.b16 %v990
      %v1015 = vunpack.c.l.b16 %v991
      %v1016 = vpack.c.b16 %v1006, %v1005
      %v1017 = vpack.c.b16 %v1008, %v1007
      %v1018 = vpack.c.b16 %v1010, %v1009
      %v1019 = vpack.c.b16 %v1012, %v1011
      %v1020 = vpack.c.b16 %v1014, %v1013
      %v1021 = vpack.c.b16 %v1015, %v1015
      %vm1022 = vcmask 1045504
      %v1023 = vrot.slane %v1016, 2
      %v1024 = vrot.slane %v1017, 2
      %v1025 = vsel %vm1022, %v1023, %v1024
      %v1026 = vrot.slane %v1018, 2
      %v1027 = vsel %vm1022, %v1024, %v1026
      %v1028 = vrot.slane %v1019, 2
      %v1029 = vsel %vm1022, %v1026, %v1028
      %v1030 = vrot.slane %v1020, 2
      %v1031 = vsel %vm1022, %v1028, %v1030
      %v1032 = vrot.slane %v1021, 2
      %v1033 = vsel %vm1022, %v1030, %v1032
      %v1035 = vsel %vm283, %v1025, 0
      %v1038 = vsel %vm283, %v1027, 0
      %v1041 = vsel %vm283, %v1029, 0
      %v1044 = vsel %vm283, %v1031, 0
      %v1047 = vsel %vm283, %v1033, 0
      %v1050 = vsel %vm299, %v993, 0
      %1052 = vmatpush.bf16.msra.mxu0 0
      %1053 = vmatpush.bf16.msra.mxu0 0
      %1054 = vmatpush.bf16.msra.mxu0 0
      %1055 = vmatpush.bf16.msra.mxu0 0
      %1056 = vmatpush.bf16.msra.mxu0 0
      %1057 = vmatpush.bf16.msra.mxu0 0
      %1058 = vmatpush.bf16.msra.mxu0 0
      %1059 = vmatpush.bf16.msra.mxu0 %v1050
      %1060 = vmatmul.bf16.gmra.mxu0 %v1035
      %v1061 = vpop.f32.mrf.mxu0
      %v1062 = vadd.f32 0.0, %v1061
      %v1063 = vpop.f32.mrf.mxu0
      %v1064 = vadd.f32 0.0, %v1063
      %1065 = vmatmul.bf16.gmra.mxu0 %v1038
      %v1066 = vpop.f32.mrf.mxu0
      %v1067 = vadd.f32 0.0, %v1066
      %v1068 = vpop.f32.mrf.mxu0
      %v1069 = vadd.f32 0.0, %v1068
      %1070 = vmatmul.bf16.gmra.mxu0 %v1041
      %v1071 = vpop.f32.mrf.mxu0
      %v1072 = vadd.f32 0.0, %v1071
      %v1073 = vpop.f32.mrf.mxu0
      %v1074 = vadd.f32 0.0, %v1073
      %1075 = vmatmul.bf16.gmra.mxu0 %v1044
      %v1076 = vpop.f32.mrf.mxu0
      %v1077 = vadd.f32 0.0, %v1076
      %v1078 = vpop.f32.mrf.mxu0
      %v1079 = vadd.f32 0.0, %v1078
      %1080 = vmatmul.bf16.gmra.mxu0 %v1047
      %v1081 = vpop.f32.mrf.mxu0
      %v1082 = vadd.f32 0.0, %v1081
      %v1083 = vpop.f32.mrf.mxu0
      %v1084 = vadd.f32 0.0, %v1083
      %1085 = vdwg.mxu0
      %v1086 = vadd.f32 %v971, %v1062
      %v1087 = vadd.f32 %v972, %v1064
      %v1088 = vadd.f32 %v973, %v1067
      %v1089 = vadd.f32 %v974, %v1069
      %v1090 = vadd.f32 %v975, %v1072
      %v1091 = vadd.f32 %v976, %v1074
      %v1092 = vadd.f32 %v977, %v1077
      %v1093 = vadd.f32 %v978, %v1079
      %v1094 = vadd.f32 %v979, %v1082
      %v1095 = vadd.f32 %v980, %v1084
      %1096 = vst [vmem:[#allocation2] sm:$0xff] %v1086
      %1097 = vst [vmem:[#allocation2 + $0x8] sm:$0xff] %v1087
      %1098 = vst [vmem:[#allocation2 + $0x10] sm:$0xff] %v1088
      %1099 = vst [vmem:[#allocation2 + $0x18] sm:$0xff] %v1089
      %1100 = vst [vmem:[#allocation2 + $0x20] sm:$0xff] %v1090
      %1101 = vst [vmem:[#allocation2 + $0x28] sm:$0xff] %v1091
      %1102 = vst [vmem:[#allocation2 + $0x30] sm:$0xff] %v1092
      %1103 = vst [vmem:[#allocation2 + $0x38] sm:$0xff] %v1093
      %1104 = vst [vmem:[#allocation2 + $0x40] sm:$0xff] %v1094
      %1105 = vst [vmem:[#allocation2 + $0x48] sm:$0xff] %v1095
      %v1106 = vld [vmem:[#allocation2] sm:$0xff]
      %v1107 = vld [vmem:[#allocation2 + $0x8] sm:$0xff]
      %v1108 = vld [vmem:[#allocation2 + $0x10] sm:$0xff]
      %v1109 = vld [vmem:[#allocation2 + $0x18] sm:$0xff]
      %v1110 = vld [vmem:[#allocation2 + $0x20] sm:$0xff]
      %v1111 = vld [vmem:[#allocation2 + $0x28] sm:$0xff]
      %v1112 = vld [vmem:[#allocation2 + $0x30] sm:$0xff]
      %v1113 = vld [vmem:[#allocation2 + $0x38] sm:$0xff]
      %v1114 = vld [vmem:[#allocation2 + $0x40] sm:$0xff]
      %v1115 = vld [vmem:[#allocation2 + $0x48] sm:$0xff]
      %v1116 = vld [vmem:[%s206 + $0x8] sm:$0xc]
      %v1117 = vld [vmem:[%s206 + $0xc] sm:$0xf]
      %v1118 = vld [vmem:[%s206 + $0x10] sm:$0xf]
      %v1119 = vld [vmem:[%s206 + $0x14] sm:$0xf]
      %v1120 = vld [vmem:[%s206 + $0x18] sm:$0xf]
      %v1121 = vld [vmem:[%s206 + $0x1c] sm:$0xf]
      %v1122 = vld [vmem:[%s206 + $0x20] sm:$0xf]
      %v1123 = vld [vmem:[%s206 + $0x24] sm:$0xf]
      %v1124 = vld [vmem:[%s206 + $0x28] sm:$0xf]
      %v1125 = vld [vmem:[%s206 + $0x2c] sm:$0xf]
      %v1126 = vld [vmem:[%s206 + $0x30] sm:$0x3]
      %s1127 = scalar_lea.vmem %s210, 24
      %v1128 = vld [vmem:[%s1127] sm:$0xf]
      %v1140 = vunpack.c.l.b16 %v1116
      %v1141 = vunpack.c.l.b16 %v1117
      %v1142 = vunpack.c.l.b16 %v1118
      %v1143 = vunpack.c.l.b16 %v1119
      %v1144 = vunpack.c.l.b16 %v1120
      %v1145 = vunpack.c.l.b16 %v1121
      %v1146 = vunpack.c.l.b16 %v1122
      %v1147 = vunpack.c.l.b16 %v1123
      %v1148 = vunpack.c.l.b16 %v1124
      %v1149 = vunpack.c.l.b16 %v1125
      %v1150 = vunpack.c.l.b16 %v1126
      %v1151 = vpack.c.b16 %v1141, %v1140
      %v1152 = vpack.c.b16 %v1143, %v1142
      %v1153 = vpack.c.b16 %v1145, %v1144
      %v1154 = vpack.c.b16 %v1147, %v1146
      %v1155 = vpack.c.b16 %v1149, %v1148
      %v1156 = vpack.c.b16 %v1150, %v1150
      %v1157 = vrot.slane %v1151, 2
      %v1158 = vrot.slane %v1152, 2
      %v1159 = vsel %vm1022, %v1157, %v1158
      %v1160 = vrot.slane %v1153, 2
      %v1161 = vsel %vm1022, %v1158, %v1160
      %v1162 = vrot.slane %v1154, 2
      %v1163 = vsel %vm1022, %v1160, %v1162
      %v1164 = vrot.slane %v1155, 2
      %v1165 = vsel %vm1022, %v1162, %v1164
      %v1166 = vrot.slane %v1156, 2
      %v1167 = vsel %vm1022, %v1164, %v1166
      %v1169 = vsel %vm283, %v1159, 0
      %v1172 = vsel %vm283, %v1161, 0
      %v1175 = vsel %vm283, %v1163, 0
      %v1178 = vsel %vm283, %v1165, 0
      %v1181 = vsel %vm283, %v1167, 0
      %v1184 = vsel %vm299, %v1128, 0
      %1186 = vmatpush.bf16.msra.mxu0 0
      %1187 = vmatpush.bf16.msra.mxu0 0
      %1188 = vmatpush.bf16.msra.mxu0 0
      %1189 = vmatpush.bf16.msra.mxu0 0
      %1190 = vmatpush.bf16.msra.mxu0 0
      %1191 = vmatpush.bf16.msra.mxu0 0
      %1192 = vmatpush.bf16.msra.mxu0 0
      %1193 = vmatpush.bf16.msra.mxu0 %v1184
      %1194 = vmatmul.bf16.gmra.mxu0 %v1169
      %v1195 = vpop.f32.mrf.mxu0
      %v1196 = vadd.f32 0.0, %v1195
      %v1197 = vpop.f32.mrf.mxu0
      %v1198 = vadd.f32 0.0, %v1197
      %1199 = vmatmul.bf16.gmra.mxu0 %v1172
      %v1200 = vpop.f32.mrf.mxu0
      %v1201 = vadd.f32 0.0, %v1200
      %v1202 = vpop.f32.mrf.mxu0
      %v1203 = vadd.f32 0.0, %v1202
      %1204 = vmatmul.bf16.gmra.mxu0 %v1175
      %v1205 = vpop.f32.mrf.mxu0
      %v1206 = vadd.f32 0.0, %v1205
      %v1207 = vpop.f32.mrf.mxu0
      %v1208 = vadd.f32 0.0, %v1207
      %1209 = vmatmul.bf16.gmra.mxu0 %v1178
      %v1210 = vpop.f32.mrf.mxu0
      %v1211 = vadd.f32 0.0, %v1210
      %v1212 = vpop.f32.mrf.mxu0
      %v1213 = vadd.f32 0.0, %v1212
      %1214 = vmatmul.bf16.gmra.mxu0 %v1181
      %v1215 = vpop.f32.mrf.mxu0
      %v1216 = vadd.f32 0.0, %v1215
      %v1217 = vpop.f32.mrf.mxu0
      %v1218 = vadd.f32 0.0, %v1217
      %1219 = vdwg.mxu0
      %v1220 = vadd.f32 %v1106, %v1196
      %v1221 = vadd.f32 %v1107, %v1198
      %v1222 = vadd.f32 %v1108, %v1201
      %v1223 = vadd.f32 %v1109, %v1203
      %v1224 = vadd.f32 %v1110, %v1206
      %v1225 = vadd.f32 %v1111, %v1208
      %v1226 = vadd.f32 %v1112, %v1211
      %v1227 = vadd.f32 %v1113, %v1213
      %v1228 = vadd.f32 %v1114, %v1216
      %v1229 = vadd.f32 %v1115, %v1218
      %1230 = vst [vmem:[#allocation2] sm:$0xff] %v1220
      %1231 = vst [vmem:[#allocation2 + $0x8] sm:$0xff] %v1221
      %1232 = vst [vmem:[#allocation2 + $0x10] sm:$0xff] %v1222
      %1233 = vst [vmem:[#allocation2 + $0x18] sm:$0xff] %v1223
      %1234 = vst [vmem:[#allocation2 + $0x20] sm:$0xff] %v1224
      %1235 = vst [vmem:[#allocation2 + $0x28] sm:$0xff] %v1225
      %1236 = vst [vmem:[#allocation2 + $0x30] sm:$0xff] %v1226
      %1237 = vst [vmem:[#allocation2 + $0x38] sm:$0xff] %v1227
      %1238 = vst [vmem:[#allocation2 + $0x40] sm:$0xff] %v1228
      %1239 = vst [vmem:[#allocation2 + $0x48] sm:$0xff] %v1229
      %v1240 = vld [vmem:[#allocation2] sm:$0xff]
      %v1241 = vld [vmem:[#allocation2 + $0x8] sm:$0xff]
      %v1242 = vld [vmem:[#allocation2 + $0x10] sm:$0xff]
      %v1243 = vld [vmem:[#allocation2 + $0x18] sm:$0xff]
      %v1244 = vld [vmem:[#allocation2 + $0x20] sm:$0xff]
      %v1245 = vld [vmem:[#allocation2 + $0x28] sm:$0xff]
      %v1246 = vld [vmem:[#allocation2 + $0x30] sm:$0xff]
      %v1247 = vld [vmem:[#allocation2 + $0x38] sm:$0xff]
      %v1248 = vld [vmem:[#allocation2 + $0x40] sm:$0xff]
      %v1249 = vld [vmem:[#allocation2 + $0x48] sm:$0xff]
      %v1250 = vld [vmem:[%s206 + $0x8] sm:$0xc]
      %v1251 = vld [vmem:[%s206 + $0xc] sm:$0xf]
      %v1252 = vld [vmem:[%s206 + $0x10] sm:$0xf]
      %v1253 = vld [vmem:[%s206 + $0x14] sm:$0xf]
      %v1254 = vld [vmem:[%s206 + $0x18] sm:$0xf]
      %v1255 = vld [vmem:[%s206 + $0x1c] sm:$0xf]
      %v1256 = vld [vmem:[%s206 + $0x20] sm:$0xf]
      %v1257 = vld [vmem:[%s206 + $0x24] sm:$0xf]
      %v1258 = vld [vmem:[%s206 + $0x28] sm:$0xf]
      %v1259 = vld [vmem:[%s206 + $0x2c] sm:$0xf]
      %v1260 = vld [vmem:[%s206 + $0x30] sm:$0x7]
      %s1261 = scalar_lea.vmem %s210, 28
      %v1262 = vld [vmem:[%s1261] sm:$0xf]
      %v1274 = vunpack.c.l.b16 %v1250
      %v1275 = vunpack.c.l.b16 %v1251
      %v1276 = vunpack.c.l.b16 %v1252
      %v1277 = vunpack.c.l.b16 %v1253
      %v1278 = vunpack.c.l.b16 %v1254
      %v1279 = vunpack.c.l.b16 %v1255
      %v1280 = vunpack.c.l.b16 %v1256
      %v1281 = vunpack.c.l.b16 %v1257
      %v1282 = vunpack.c.l.b16 %v1258
      %v1283 = vunpack.c.l.b16 %v1259
      %v1284 = vunpack.c.l.b16 %v1260
      %v1285 = vpack.c.b16 %v1275, %v1274
      %v1286 = vpack.c.b16 %v1277, %v1276
      %v1287 = vpack.c.b16 %v1279, %v1278
      %v1288 = vpack.c.b16 %v1281, %v1280
      %v1289 = vpack.c.b16 %v1283, %v1282
      %v1290 = vpack.c.b16 %v1284, %v1284
      %vm1291 = vsmask.f32 5376
      %v1293 = vshrl.u32 %v1285, 16
      %v1295 = vrot.slane %v1293, 2
      %v1296 = vshll.u32 %v1285, 16
      %v1298 = vrot.slane %v1296, 3
      %v1299 = vor.u32 %v1295, %v1298
      %v1301 = vshrl.u32 %v1286, 16
      %v1303 = vrot.slane %v1301, 2
      %v1304 = vshll.u32 %v1286, 16
      %v1306 = vrot.slane %v1304, 3
      %v1307 = vor.u32 %v1303, %v1306
      %v1308 = vsel %vm1291, %v1299, %v1307
      %v1310 = vshrl.u32 %v1287, 16
      %v1312 = vrot.slane %v1310, 2
      %v1313 = vshll.u32 %v1287, 16
      %v1315 = vrot.slane %v1313, 3
      %v1316 = vor.u32 %v1312, %v1315
      %v1317 = vsel %vm1291, %v1307, %v1316
      %v1319 = vshrl.u32 %v1288, 16
      %v1321 = vrot.slane %v1319, 2
      %v1322 = vshll.u32 %v1288, 16
      %v1324 = vrot.slane %v1322, 3
      %v1325 = vor.u32 %v1321, %v1324
      %v1326 = vsel %vm1291, %v1316, %v1325
      %v1328 = vshrl.u32 %v1289, 16
      %v1330 = vrot.slane %v1328, 2
      %v1331 = vshll.u32 %v1289, 16
      %v1333 = vrot.slane %v1331, 3
      %v1334 = vor.u32 %v1330, %v1333
      %v1335 = vsel %vm1291, %v1325, %v1334
      %v1337 = vshrl.u32 %v1290, 16
      %v1339 = vrot.slane %v1337, 2
      %v1340 = vshll.u32 %v1290, 16
      %v1342 = vrot.slane %v1340, 3
      %v1343 = vor.u32 %v1339, %v1342
      %v1344 = vsel %vm1291, %v1334, %v1343
      %v1346 = vsel %vm283, %v1308, 0
      %v1349 = vsel %vm283, %v1317, 0
      %v1352 = vsel %vm283, %v1326, 0
      %v1355 = vsel %vm283, %v1335, 0
      %v1358 = vsel %vm283, %v1344, 0
      %v1361 = vsel %vm299, %v1262, 0
      %1363 = vmatpush.bf16.msra.mxu0 0
      %1364 = vmatpush.bf16.msra.mxu0 0
      %1365 = vmatpush.bf16.msra.mxu0 0
      %1366 = vmatpush.bf16.msra.mxu0 0
      %1367 = vmatpush.bf16.msra.mxu0 0
      %1368 = vmatpush.bf16.msra.mxu0 0
      %1369 = vmatpush.bf16.msra.mxu0 0
      %1370 = vmatpush.bf16.msra.mxu0 %v1361
      %1371 = vmatmul.bf16.gmra.mxu0 %v1346
      %v1372 = vpop.f32.mrf.mxu0
      %v1373 = vadd.f32 0.0, %v1372
      %v1374 = vpop.f32.mrf.mxu0
      %v1375 = vadd.f32 0.0, %v1374
      %1376 = vmatmul.bf16.gmra.mxu0 %v1349
      %v1377 = vpop.f32.mrf.mxu0
      %v1378 = vadd.f32 0.0, %v1377
      %v1379 = vpop.f32.mrf.mxu0
      %v1380 = vadd.f32 0.0, %v1379
      %1381 = vmatmul.bf16.gmra.mxu0 %v1352
      %v1382 = vpop.f32.mrf.mxu0
      %v1383 = vadd.f32 0.0, %v1382
      %v1384 = vpop.f32.mrf.mxu0
      %v1385 = vadd.f32 0.0, %v1384
      %1386 = vmatmul.bf16.gmra.mxu0 %v1355
      %v1387 = vpop.f32.mrf.mxu0
      %v1388 = vadd.f32 0.0, %v1387
      %v1389 = vpop.f32.mrf.mxu0
      %v1390 = vadd.f32 0.0, %v1389
      %1391 = vmatmul.bf16.gmra.mxu0 %v1358
      %v1392 = vpop.f32.mrf.mxu0
      %v1393 = vadd.f32 0.0, %v1392
      %v1394 = vpop.f32.mrf.mxu0
      %v1395 = vadd.f32 0.0, %v1394
      %1396 = vdwg.mxu0
      %v1397 = vadd.f32 %v1240, %v1373
      %v1398 = vadd.f32 %v1241, %v1375
      %v1399 = vadd.f32 %v1242, %v1378
      %v1400 = vadd.f32 %v1243, %v1380
      %v1401 = vadd.f32 %v1244, %v1383
      %v1402 = vadd.f32 %v1245, %v1385
      %v1403 = vadd.f32 %v1246, %v1388
      %v1404 = vadd.f32 %v1247, %v1390
      %v1405 = vadd.f32 %v1248, %v1393
      %v1406 = vadd.f32 %v1249, %v1395
      %1407 = vst [vmem:[#allocation2] sm:$0xff] %v1397
      %1408 = vst [vmem:[#allocation2 + $0x8] sm:$0xff] %v1398
      %1409 = vst [vmem:[#allocation2 + $0x10] sm:$0xff] %v1399
      %1410 = vst [vmem:[#allocation2 + $0x18] sm:$0xff] %v1400
      %1411 = vst [vmem:[#allocation2 + $0x20] sm:$0xff] %v1401
      %1412 = vst [vmem:[#allocation2 + $0x28] sm:$0xff] %v1402
      %1413 = vst [vmem:[#allocation2 + $0x30] sm:$0xff] %v1403
      %1414 = vst [vmem:[#allocation2 + $0x38] sm:$0xff] %v1404
      %1415 = vst [vmem:[#allocation2 + $0x40] sm:$0xff] %v1405
      %1416 = vst [vmem:[#allocation2 + $0x48] sm:$0xff] %v1406
      %v1417 = vld [vmem:[#allocation2] sm:$0xff]
      %v1418 = vld [vmem:[#allocation2 + $0x8] sm:$0xff]
      %v1419 = vld [vmem:[#allocation2 + $0x10] sm:$0xff]
      %v1420 = vld [vmem:[#allocation2 + $0x18] sm:$0xff]
      %v1421 = vld [vmem:[#allocation2 + $0x20] sm:$0xff]
      %v1422 = vld [vmem:[#allocation2 + $0x28] sm:$0xff]
      %v1423 = vld [vmem:[#allocation2 + $0x30] sm:$0xff]
      %v1424 = vld [vmem:[#allocation2 + $0x38] sm:$0xff]
      %v1425 = vld [vmem:[#allocation2 + $0x40] sm:$0xff]
      %v1426 = vld [vmem:[#allocation2 + $0x48] sm:$0xff]
      %v1427 = vld [vmem:[%s206 + $0x8] sm:$0x8]
      %v1428 = vld [vmem:[%s206 + $0xc] sm:$0xf]
      %v1429 = vld [vmem:[%s206 + $0x10] sm:$0xf]
      %v1430 = vld [vmem:[%s206 + $0x14] sm:$0xf]
      %v1431 = vld [vmem:[%s206 + $0x18] sm:$0xf]
      %v1432 = vld [vmem:[%s206 + $0x1c] sm:$0xf]
      %v1433 = vld [vmem:[%s206 + $0x20] sm:$0xf]
      %v1434 = vld [vmem:[%s206 + $0x24] sm:$0xf]
      %v1435 = vld [vmem:[%s206 + $0x28] sm:$0xf]
      %v1436 = vld [vmem:[%s206 + $0x2c] sm:$0xf]
      %v1437 = vld [vmem:[%s206 + $0x30] sm:$0x7]
      %s1438 = scalar_lea.vmem %s210, 32
      %v1439 = vld [vmem:[%s1438] sm:$0xf]
      %v1451 = vunpack.c.l.b16 %v1427
      %v1452 = vunpack.c.l.b16 %v1428
      %v1453 = vunpack.c.l.b16 %v1429
      %v1454 = vunpack.c.l.b16 %v1430
      %v1455 = vunpack.c.l.b16 %v1431
      %v1456 = vunpack.c.l.b16 %v1432
      %v1457 = vunpack.c.l.b16 %v1433
      %v1458 = vunpack.c.l.b16 %v1434
      %v1459 = vunpack.c.l.b16 %v1435
      %v1460 = vunpack.c.l.b16 %v1436
      %v1461 = vunpack.c.l.b16 %v1437
      %v1462 = vpack.c.b16 %v1452, %v1451
      %v1463 = vpack.c.b16 %v1454, %v1453
      %v1464 = vpack.c.b16 %v1456, %v1455
      %v1465 = vpack.c.b16 %v1458, %v1457
      %v1466 = vpack.c.b16 %v1460, %v1459
      %v1467 = vpack.c.b16 %v1461, %v1461
      %vm1468 = vcmask 1044480
      %v1469 = vrot.slane %v1462, 3
      %v1470 = vrot.slane %v1463, 3
      %v1471 = vsel %vm1468, %v1469, %v1470
      %v1472 = vrot.slane %v1464, 3
      %v1473 = vsel %vm1468, %v1470, %v1472
      %v1474 = vrot.slane %v1465, 3
      %v1475 = vsel %vm1468, %v1472, %v1474
      %v1476 = vrot.slane %v1466, 3
      %v1477 = vsel %vm1468, %v1474, %v1476
      %v1478 = vrot.slane %v1467, 3
      %v1479 = vsel %vm1468, %v1476, %v1478
      %v1481 = vsel %vm283, %v1471, 0
      %v1484 = vsel %vm283, %v1473, 0
      %v1487 = vsel %vm283, %v1475, 0
      %v1490 = vsel %vm283, %v1477, 0
      %v1493 = vsel %vm283, %v1479, 0
      %v1496 = vsel %vm299, %v1439, 0
      %1498 = vmatpush.bf16.msra.mxu0 0
      %1499 = vmatpush.bf16.msra.mxu0 0
      %1500 = vmatpush.bf16.msra.mxu0 0
      %1501 = vmatpush.bf16.msra.mxu0 0
      %1502 = vmatpush.bf16.msra.mxu0 0
      %1503 = vmatpush.bf16.msra.mxu0 0
      %1504 = vmatpush.bf16.msra.mxu0 0
      %1505 = vmatpush.bf16.msra.mxu0 %v1496
      %1506 = vmatmul.bf16.gmra.mxu0 %v1481
      %v1507 = vpop.f32.mrf.mxu0
      %v1508 = vadd.f32 0.0, %v1507
      %v1509 = vpop.f32.mrf.mxu0
      %v1510 = vadd.f32 0.0, %v1509
      %1511 = vmatmul.bf16.gmra.mxu0 %v1484
      %v1512 = vpop.f32.mrf.mxu0
      %v1513 = vadd.f32 0.0, %v1512
      %v1514 = vpop.f32.mrf.mxu0
      %v1515 = vadd.f32 0.0, %v1514
      %1516 = vmatmul.bf16.gmra.mxu0 %v1487
      %v1517 = vpop.f32.mrf.mxu0
      %v1518 = vadd.f32 0.0, %v1517
      %v1519 = vpop.f32.mrf.mxu0
      %v1520 = vadd.f32 0.0, %v1519
      %1521 = vmatmul.bf16.gmra.mxu0 %v1490
      %v1522 = vpop.f32.mrf.mxu0
      %v1523 = vadd.f32 0.0, %v1522
      %v1524 = vpop.f32.mrf.mxu0
      %v1525 = vadd.f32 0.0, %v1524
      %1526 = vmatmul.bf16.gmra.mxu0 %v1493
      %v1527 = vpop.f32.mrf.mxu0
      %v1528 = vadd.f32 0.0, %v1527
      %v1529 = vpop.f32.mrf.mxu0
      %v1530 = vadd.f32 0.0, %v1529
      %1531 = vdwg.mxu0
      %v1532 = vadd.f32 %v1417, %v1508
      %v1533 = vadd.f32 %v1418, %v1510
      %v1534 = vadd.f32 %v1419, %v1513
      %v1535 = vadd.f32 %v1420, %v1515
      %v1536 = vadd.f32 %v1421, %v1518
      %v1537 = vadd.f32 %v1422, %v1520
      %v1538 = vadd.f32 %v1423, %v1523
      %v1539 = vadd.f32 %v1424, %v1525
      %v1540 = vadd.f32 %v1425, %v1528
      %v1541 = vadd.f32 %v1426, %v1530
      %1542 = vst [vmem:[#allocation2] sm:$0xff] %v1532
      %1543 = vst [vmem:[#allocation2 + $0x8] sm:$0xff] %v1533
      %1544 = vst [vmem:[#allocation2 + $0x10] sm:$0xff] %v1534
      %1545 = vst [vmem:[#allocation2 + $0x18] sm:$0xff] %v1535
      %1546 = vst [vmem:[#allocation2 + $0x20] sm:$0xff] %v1536
      %1547 = vst [vmem:[#allocation2 + $0x28] sm:$0xff] %v1537
      %1548 = vst [vmem:[#allocation2 + $0x30] sm:$0xff] %v1538
      %1549 = vst [vmem:[#allocation2 + $0x38] sm:$0xff] %v1539
      %1550 = vst [vmem:[#allocation2 + $0x40] sm:$0xff] %v1540
      %1551 = vst [vmem:[#allocation2 + $0x48] sm:$0xff] %v1541
      %v1552 = vld [vmem:[#allocation2] sm:$0xff]
      %v1553 = vld [vmem:[#allocation2 + $0x8] sm:$0xff]
      %v1554 = vld [vmem:[#allocation2 + $0x10] sm:$0xff]
      %v1555 = vld [vmem:[#allocation2 + $0x18] sm:$0xff]
      %v1556 = vld [vmem:[#allocation2 + $0x20] sm:$0xff]
      %v1557 = vld [vmem:[#allocation2 + $0x28] sm:$0xff]
      %v1558 = vld [vmem:[#allocation2 + $0x30] sm:$0xff]
      %v1559 = vld [vmem:[#allocation2 + $0x38] sm:$0xff]
      %v1560 = vld [vmem:[#allocation2 + $0x40] sm:$0xff]
      %v1561 = vld [vmem:[#allocation2 + $0x48] sm:$0xff]
      %v1562 = vmax.f32 %v1552, 0.0
      %v1563 = vmax.f32 %v1553, 0.0
      %v1564 = vmax.f32 %v1554, 0.0
      %v1565 = vmax.f32 %v1555, 0.0
      %v1566 = vmax.f32 %v1556, 0.0
      %v1567 = vmax.f32 %v1557, 0.0
      %v1568 = vmax.f32 %v1558, 0.0
      %v1569 = vmax.f32 %v1559, 0.0
      %v1570 = vmax.f32 %v1560, 0.0
      %v1571 = vmax.f32 %v1561, 0.0
      %v1572 = vpack.c.bf16 %v1562, %v1562
      %v1573 = vpack.c.bf16 %v1563, %v1563
      %v1574 = vpack.c.bf16 %v1564, %v1564
      %v1575 = vpack.c.bf16 %v1565, %v1565
      %v1576 = vpack.c.bf16 %v1566, %v1566
      %v1577 = vpack.c.bf16 %v1567, %v1567
      %v1578 = vpack.c.bf16 %v1568, %v1568
      %v1579 = vpack.c.bf16 %v1569, %v1569
      %v1580 = vpack.c.bf16 %v1570, %v1570
      %v1581 = vpack.c.bf16 %v1571, %v1571
      %1582 = vst [vmem:[%s221] sm:$0xf] %v1572
      %1583 = vst [vmem:[%s221 + $0x4] sm:$0xf] %v1573
      %1584 = vst [vmem:[%s221 + $0x8] sm:$0xf] %v1574
      %1585 = vst [vmem:[%s221 + $0xc] sm:$0xf] %v1575
      %1586 = vst [vmem:[%s221 + $0x10] sm:$0xf] %v1576
      %1587 = vst [vmem:[%s221 + $0x14] sm:$0xf] %v1577
      %1588 = vst [vmem:[%s221 + $0x18] sm:$0xf] %v1578
      %1589 = vst [vmem:[%s221 + $0x1c] sm:$0xf] %v1579
      %1590 = vst [vmem:[%s221 + $0x20] sm:$0xf] %v1580
      %1591 = vst [vmem:[%s221 + $0x24] sm:$0xf] %v1581
      %p1592 = scmp.lt.s32.totalorder %s18, 1
      %s1593 = scalar_select %p1592, %s18, 1
      %p1594 = scmp.lt.s32.totalorder %s19, 0
      %s1595 = scalar_select %p1594, %s19, 0
      %s1596 = smul.addr %s1593, 10
      %s1597 = sadd.s32 %s1595, %s1596
      %s1598 = smul.addr %s1597, 4
      %s1599 = scalar_lea.vmem %s3, %s1598
      // Predicated region
      $region33: #{bottleneck_forward.4} parent=31 // pred_check
        %p1600 = pneg %p124
      $region34: #{bottleneck_forward.4} parent=31 // pred_check_branch
        %1602 = sbr.rel (%p1600) target = $region36
      $region35: #{bottleneck_forward.4} parent=31 // pred_region
        _
      $region36: #{bottleneck_forward.4} parent=31 // pred_fallthru
        _
    $region32: #{bottleneck_forward.4} parent=5 // pred_fallthru
      _
    %p1603 = scmp.le.s32.totalorder 2, %s9
    // Predicated region
    $region37: #{bottleneck_forward.4} parent=5 // pred_check
      %p1604 = pneg %p1603
    $region38: #{bottleneck_forward.4} parent=5 // pred_check_branch
      %1606 = sbr.rel (%p1604) target = $region40
    $region39: #{bottleneck_forward.4} parent=5 // pred_region
      %s1607 = ssub.s32 %s9, 2
      // Predicated region
      $region41: #{bottleneck_forward.4} parent=39 // pred_check
        %p1608 = pneg %p130
      $region42: #{bottleneck_forward.4} parent=39 // pred_check_branch
        %1610 = sbr.rel (%p1608) target = $region44
      $region43: #{bottleneck_forward.4} parent=39 // pred_region
        %p1611 = scmp.lt.s32.totalorder %s20, 1
        %s1612 = scalar_select %p1611, %s20, 1
        %p1613 = scmp.lt.s32.totalorder %s21, 0
        %s1614 = scalar_select %p1613, %s21, 0
        %s1615 = smul.addr %s1612, 10
        %s1616 = sadd.s32 %s1614, %s1615
        %s1617 = smul.addr %s1616, 4
        %s1618 = scalar_lea.vmem %s3, %s1617
      $region44: #{bottleneck_forward.4} parent=39 // pred_fallthru
        _
    $region40: #{bottleneck_forward.4} parent=5 // pred_fallthru
      _
  $region6: #{bottleneck_forward.4} parent=0 // loop_footer
    %s13 = sadd.s32 1, %s9
  $region7: #{bottleneck_forward.4} parent=0 // loop_footer_branch
    %8 = sbr.rel target = $region3
  $region8: #{bottleneck_forward.4} parent=0 // loop_exit
    _

</llo_original>
